<compile_context>
chip_gen: v7x
topology: tpu7x:2x2x1
jax: 0.10.0
libtpu: 0.0.40
codegen_flags: <defaults>
</compile_context>

<pallas_src>
import functools
import math

import jax
import jax.numpy as jnp
from jax.experimental import pallas as pl
from jax.experimental.pallas import tpu as pltpu


# --------------------------------------------------------------------------
# small helpers
# --------------------------------------------------------------------------
def _layer_norm_f32(x, gamma, beta, eps=1e-5):
    """fp32-upcasting LayerNorm (matches the CLIP `LayerNorm` subclass)."""
    xf = x.astype(jnp.float32)
    mu = jnp.mean(xf, axis=-1, keepdims=True)
    var = jnp.mean(jnp.square(xf - mu), axis=-1, keepdims=True)
    return (xf - mu) * jax.lax.rsqrt(var + eps) * gamma + beta


def _swap01(t):
    """(A, B, C) -> (B, A, C); the minor (lane) dim is untouched."""
    a, b, c = t.shape
    try:
        r = pltpu.einshape("mhd->hmd", t)
        if r.shape == (b, a, c):
            return r
    except Exception:  # pragma: no cover - fall back to a plain transpose
        pass
    return jnp.swapaxes(t, 0, 1)


def _round_up(x, m):
    return -(-x // m) * m


# --------------------------------------------------------------------------
# kernel: one whole residual block for an (Nb, Lp, E) tile of the batch
# --------------------------------------------------------------------------
def _resblock_kernel(n_head, lk,
                     x_ref, mask_ref,
                     win_ref, bin_ref, wo_ref, bo_ref,
                     g1_ref, b1_ref, g2_ref, b2_ref,
                     wfc_ref, bfc_ref, wpr_ref, bpr_ref,
                     o_ref):
    Nb, Lp, E = x_ref.shape
    H = n_head
    hd = E // H
    M = Nb * Lp
    cdt = win_ref.dtype                       # MXU operand dtype (bf16)

    # (Nb, Lp, E) tile -> (M, E): pure leading-dim flatten, no relayout.
    x2 = x_ref[...].reshape(M, E)             # f32 residual stream

    # ---- x = x + attn(ln_1(x)) ---------------------------------------------
    xn = _layer_norm_f32(x2, g1_ref[...], b1_ref[...])
    qkv = jnp.dot(xn.astype(cdt), win_ref[...],
                  preferred_element_type=jnp.float32) + bin_ref[...]   # (M, 3E)
    qkv = qkv.astype(cdt)

    # relayout #1 (bf16): (M, 3E) -> (3H, M, hd); rows of M are (batch, seq)
    # ordered so every (head, batch) pair is a contiguous (Lp, hd) slab.
    qkv_h = _swap01(qkv.reshape(M, 3 * H, hd))
    q = qkv_h[0 * H:1 * H].reshape(H * Nb, Lp, hd)   # 1/sqrt(hd) already folded
    kv = qkv_h[1 * H:3 * H].reshape(2 * H * Nb, Lp, hd)
    if lk > Lp:                                      # lane-dense key axis
        kv = jnp.concatenate(
            [kv, jnp.zeros((2 * H * Nb, lk - Lp, hd), cdt)], axis=1)
    k = kv[:H * Nb]
    v = kv[H * Nb:]

    mask = mask_ref[...]                      # (Lp, Lk) additive mask, f32
    s = jnp.einsum("bqd,bkd->bqk", q, k,
                   preferred_element_type=jnp.float32) + mask[None, :, :]
    m = jnp.max(s, axis=-1, keepdims=True)
    p = jnp.exp(s - m)
    p = p * pl.reciprocal(jnp.sum(p, axis=-1, keepdims=True), approx=True)
    o = jnp.einsum("bqk,bkd->bqd", p.astype(cdt), v,
                   preferred_element_type=jnp.float32)   # (H*Nb, Lp, hd) f32

    # relayout #2 (bf16): merge heads back into the lane dim -> (M, E)
    attn = _swap01(o.astype(cdt).reshape(H, M, hd)).reshape(M, E)
    attn = jnp.dot(attn, wo_ref[...],
                   preferred_element_type=jnp.float32) + bo_ref[...]
    x2 = x2 + attn

    # ---- x = x + mlp(ln_2(x)) ------------------------------------------------
    xn2 = _layer_norm_f32(x2, g2_ref[...], b2_ref[...])
    h1 = jnp.dot(xn2.astype(cdt), wfc_ref[...],
                 preferred_element_type=jnp.float32) + bfc_ref[...]
    h1 = h1 * jax.nn.sigmoid(1.702 * h1)      # QuickGELU (EUP)
    h2 = jnp.dot(h1.astype(cdt), wpr_ref[...],
                 preferred_element_type=jnp.float32) + bpr_ref[...]

    o_ref[...] = (x2 + h2).reshape(Nb, Lp, E).astype(o_ref.dtype)


# --------------------------------------------------------------------------
# wrapper
# --------------------------------------------------------------------------
def _vmem_limit_bytes():
    cap = 64 * 1024 * 1024                    # conservative default (v7x)
    try:
        cap = int(pltpu.get_tpu_info().vmem_capacity_bytes)
    except Exception:  # pragma: no cover
        pass
    return int(min(int(cap * 0.85), 100 * 1024 * 1024))


def _default_target_rows():
    """~1024 rows per grid step on 128 MiB chips (v5e/v6e), ~512 on v7x."""
    cap = 64 * 1024 * 1024
    try:
        cap = int(pltpu.get_tpu_info().vmem_capacity_bytes)
    except Exception:  # pragma: no cover
        pass
    return 1024 if cap >= 96 * 1024 * 1024 else 512


def _pick_block_batch(N, Lp, target_rows):
    """Largest divisor Nb of N with Nb*Lp <= target_rows.  Prefers >= 4 grid
    steps (>= 2 per v7x TensorCore) so the x-tile pipeline stays busy, then
    >= 2 steps, and never falls back to the full batch."""
    divs = [d for d in range(1, N + 1) if N % d == 0]
    fits = [d for d in divs if d * Lp <= max(target_rows, Lp)] or [1]
    for min_steps in (4, 2, 1):
        cand = [d for d in fits if N // d >= min_steps]
        if cand:
            return max(cand)
    return 1
    # TODO(synk): prime/awkward batch sizes fall back to tiny Nb; a ragged last
    # block (masked writes) would allow near-target tiles for any N.


def _const_spec(shape):
    """Grid-invariant operand: constant index_map + single-buffered pipeline."""
    idx = lambda b: (0,) * len(shape)
    try:
        return pl.BlockSpec(shape, idx, pipeline_mode=pl.Buffered(1))
    except Exception:  # pragma: no cover - older BlockSpec signature
        return pl.BlockSpec(shape, idx)


def _residual_block_padded(x_nle, params, mask, n_head, target_rows=None):
    """One CLIP ResidualAttentionBlock on the padded batch-major stream.
    x_nle: (N, Lp, E) f32; mask: (Lp, Lk) f32 additive. Returns (N, Lp, E)."""
    N, Lp, E = x_nle.shape
    Lk = mask.shape[1]
    if target_rows is None:
        target_rows = _default_target_rows()
    Nb = _pick_block_batch(N, Lp, target_rows)
    grid = (N // Nb,)

    kernel = functools.partial(_resblock_kernel, n_head, Lk)
    return pl.pallas_call(
        kernel,
        out_shape=jax.ShapeDtypeStruct((N, Lp, E), x_nle.dtype),
        grid_spec=pltpu.PrefetchScalarGridSpec(
            num_scalar_prefetch=0,
            grid=grid,
            in_specs=[
                pl.BlockSpec((Nb, Lp, E), lambda b: (b, 0, 0)),    # x tile
                _const_spec((Lp, Lk)),                             # additive mask
                _const_spec((E, 3 * E)), _const_spec((1, 3 * E)),  # fused QKV proj
                _const_spec((E, E)), _const_spec((1, E)),          # out proj
                _const_spec((1, E)), _const_spec((1, E)),          # ln_1 gamma/beta
                _const_spec((1, E)), _const_spec((1, E)),          # ln_2 gamma/beta
                _const_spec((E, 4 * E)), _const_spec((1, 4 * E)),  # c_fc
                _const_spec((4 * E, E)), _const_spec((1, E)),      # c_proj
            ],
            out_specs=pl.BlockSpec((Nb, Lp, E), lambda b: (b, 0, 0)),
        ),
        input_output_aliases={0: 0},          # residual stream updated in place
        compiler_params=pltpu.CompilerParams(
            dimension_semantics=("parallel",),
            vmem_limit_bytes=_vmem_limit_bytes(),
        ),
    )(x_nle, mask,
      params["w_in"], params["b_in"], params["wo"], params["bo"],
      params["g1"], params["b1"], params["g2"], params["b2"],
      params["wfc"], params["bfc"], params["wpr"], params["bpr"])


def transformer_forward(x_lne, layer_params, attn_mask, n_head,
                        maple_prompts=None, target_rows=None):
    """CLIP text Transformer: sequential ResidualAttentionBlocks.
    x_lne: (L, N, E) f32 -> (L, N, E) f32.  Padding, mask construction and the
    (seq, batch) transpose are paid once for the whole stack."""
    L, N, E = x_lne.shape
    Lp = _round_up(L, 8)                      # query/M axis: sublane multiple
    Lk = _round_up(Lp, 128)                   # key axis: lane-dense

    x = jnp.swapaxes(x_lne, 0, 1)             # (N, L, E) batch-major
    if Lp != L:
        x = jnp.concatenate([x, jnp.zeros((N, Lp - L, E), x.dtype)], axis=1)

    mask = jnp.zeros((Lp, Lk), jnp.float32)
    if attn_mask is not None:
        mask = mask.at[:L, :L].set(attn_mask.astype(jnp.float32))
    mask = mask.at[:, L:].set(-1e9)           # nobody attends to padded keys

    for i, p in enumerate(layer_params):
        if maple_prompts is not None and i > 0:
            # maple_prompts splice (plain JAX, between kernel calls)
            npr = maple_prompts[i - 1].shape[0]
            ctx = jnp.broadcast_to(
                maple_prompts[i - 1].astype(x.dtype)[None], (N, npr, E))
            x = jnp.concatenate([x[:, :1], ctx, x[:, 1 + npr:]], axis=1)
        x = _residual_block_padded(x, p, mask, n_head, target_rows)

    return jnp.swapaxes(x, 0, 1)[:L]          # back to (L, N, E), drop padding


def prepare_block_params(raw, n_head, compute_dtype=jnp.bfloat16):
    """torch-layout weights -> kernel layout: pre-transposed, QKV fused,
    1/sqrt(head_dim) folded into the Q projection, bf16 matmul weights."""
    E = raw["out_w"].shape[0]
    scale = 1.0 / math.sqrt(E // n_head)
    wq, wk, wv = (raw["in_proj_w"][:E], raw["in_proj_w"][E:2 * E],
                  raw["in_proj_w"][2 * E:])
    bq, bk, bv = (raw["in_proj_b"][:E], raw["in_proj_b"][E:2 * E],
                  raw["in_proj_b"][2 * E:])
    w_in = jnp.concatenate([wq.T * scale, wk.T, wv.T], axis=1)       # (E, 3E)
    b_in = jnp.concatenate([bq * scale, bk, bv]).reshape(1, 3 * E)
    f32 = jnp.float32
    return {
        "w_in": w_in.astype(compute_dtype), "b_in": b_in.astype(f32),
        "wo": raw["out_w"].T.astype(compute_dtype),
        "bo": raw["out_b"].reshape(1, E).astype(f32),
        "g1": raw["ln1_w"].reshape(1, E).astype(f32),
        "b1": raw["ln1_b"].reshape(1, E).astype(f32),
        "g2": raw["ln2_w"].reshape(1, E).astype(f32),
        "b2": raw["ln2_b"].reshape(1, E).astype(f32),
        "wfc": raw["fc_w"].T.astype(compute_dtype),
        "bfc": raw["fc_b"].reshape(1, 4 * E).astype(f32),
        "wpr": raw["proj_w"].T.astype(compute_dtype),
        "bpr": raw["proj_b"].reshape(1, E).astype(f32),
    }


# --------------------------------------------------------------------------
# pure-JAX reference (f32, torch-layout weights)
# --------------------------------------------------------------------------
def _reference_block(x, raw, attn_mask, n_head):
    L, N, E = x.shape
    hd = E // n_head

    def ln(t, g, b):
        mu = jnp.mean(t, -1, keepdims=True)
        var = jnp.mean((t - mu) ** 2, -1, keepdims=True)
        return (t - mu) / jnp.sqrt(var + 1e-5) * g + b

    xn = ln(x, raw["ln1_w"], raw["ln1_b"])
    qkv = xn @ raw["in_proj_w"].T + raw["in_proj_b"]
    q, k, v = jnp.split(qkv, 3, axis=-1)
    q = q.reshape(L, N, n_head, hd) / math.sqrt(hd)
    k = k.reshape(L, N, n_head, hd)
    v = v.reshape(L, N, n_head, hd)
    s = jnp.einsum("qnhd,knhd->nhqk", q, k) + attn_mask
    p = jax.nn.softmax(s, axis=-1)
    o = jnp.einsum("nhqk,knhd->qnhd", p, v).reshape(L, N, E)
    x = x + o @ raw["out_w"].T + raw["out_b"]
    xn2 = ln(x, raw["ln2_w"], raw["ln2_b"])
    h = xn2 @ raw["fc_w"].T + raw["fc_b"]
    h = h * jax.nn.sigmoid(1.702 * h)
    return x + h @ raw["proj_w"].T + raw["proj_b"]


def _reference_transformer(x, raw_layers, attn_mask, n_head):
    for raw in raw_layers:
        x = _reference_block(x, raw, attn_mask, n_head)
    return x


# --------------------------------------------------------------------------
if __name__ == "__main__":
    # seq (deliberately NOT a multiple of 8), batch, width, heads, layers
    L, N, E, H = 7, 16, 32, 4
    LAYERS = 2

    key = jax.random.PRNGKey(0)

    def nrm(k, shape, scale=0.02):
        return (scale * jax.random.normal(k, shape)).astype(jnp.float32)

    layer_keys = jax.random.split(key, LAYERS + 1)
    raw_layers = []
    for lk_ in layer_keys[:LAYERS]:
        ks = jax.random.split(lk_, 12)
        raw_layers.append({
            "in_proj_w": nrm(ks[0], (3 * E, E)),
            "in_proj_b": nrm(ks[1], (3 * E,)),
            "out_w": nrm(ks[2], (E, E)),
            "out_b": nrm(ks[3], (E,)),
            "ln1_w": 1.0 + nrm(ks[4], (E,)),
            "ln1_b": nrm(ks[5], (E,)),
            "ln2_w": 1.0 + nrm(ks[6], (E,)),
            "ln2_b": nrm(ks[7], (E,)),
            "fc_w": nrm(ks[8], (4 * E, E)),
            "fc_b": nrm(ks[9], (4 * E,)),
            "proj_w": nrm(ks[10], (E, 4 * E)),
            "proj_b": nrm(ks[11], (E,)),
        })

    # CLIP text-encoder style causal additive mask.
    attn_mask = jnp.where(
        jnp.arange(L)[None, :] > jnp.arange(L)[:, None], -1e9, 0.0
    ).astype(jnp.float32)

    x = jax.random.normal(layer_keys[-1], (L, N, E), dtype=jnp.float32)

    layer_params = [prepare_block_params(raw, H) for raw in raw_layers]

    fwd = jax.jit(functools.partial(transformer_forward, n_head=H))
    out = jax.block_until_ready(fwd(x, layer_params, attn_mask))

    ref = _reference_transformer(x, raw_layers, attn_mask, H)
    assert out.shape == (L, N, E)
    max_err = float(jnp.max(jnp.abs(out - ref)))
    # bf16 matmul operands (f32 accumulation) + approx softmax reciprocal.
    assert jnp.allclose(out, ref, atol=2e-2, rtol=2e-2), (
        f"mismatch vs reference (max abs err {max_err:.2e})")

    print("KERNEL_OK")
</pallas_src>

<mosaic_0001>
module attributes {stable_mosaic.version = 11 : i64} {
  func.func @_resblock_kernel(%arg0: i32, %arg1: memref<4x8x32xf32, #tpu.memory_space<vmem>>, %arg2: memref<8x128xf32, #tpu.memory_space<vmem>>, %arg3: memref<32x96xbf16, #tpu.memory_space<vmem>>, %arg4: memref<1x96xf32, #tpu.memory_space<vmem>>, %arg5: memref<32x32xbf16, #tpu.memory_space<vmem>>, %arg6: memref<1x32xf32, #tpu.memory_space<vmem>>, %arg7: memref<1x32xf32, #tpu.memory_space<vmem>>, %arg8: memref<1x32xf32, #tpu.memory_space<vmem>>, %arg9: memref<1x32xf32, #tpu.memory_space<vmem>>, %arg10: memref<1x32xf32, #tpu.memory_space<vmem>>, %arg11: memref<32x128xbf16, #tpu.memory_space<vmem>>, %arg12: memref<1x128xf32, #tpu.memory_space<vmem>>, %arg13: memref<128x32xbf16, #tpu.memory_space<vmem>>, %arg14: memref<1x32xf32, #tpu.memory_space<vmem>>, %arg15: memref<4x8x32xf32, #tpu.memory_space<vmem>>) attributes {dimension_semantics = [#tpu.dimension_semantics<parallel>], iteration_bounds = array<i64: 4>, scalar_prefetch = 0 : i64, scratch_operands = 0 : i64, tpu.core_type = #tpu.core_type<tc>, window_params = [{transform_indices = @transform_0, window_bounds = array<i64: 4, 8, 32>}, {pipeline_mode = #tpu.pipeline_mode<synchronous>, transform_indices = @transform_1, window_bounds = array<i64: 8, 128>}, {pipeline_mode = #tpu.pipeline_mode<synchronous>, transform_indices = @transform_2, window_bounds = array<i64: 32, 96>}, {pipeline_mode = #tpu.pipeline_mode<synchronous>, transform_indices = @transform_3, window_bounds = array<i64: 1, 96>}, {pipeline_mode = #tpu.pipeline_mode<synchronous>, transform_indices = @transform_4, window_bounds = array<i64: 32, 32>}, {pipeline_mode = #tpu.pipeline_mode<synchronous>, transform_indices = @transform_5, window_bounds = array<i64: 1, 32>}, {pipeline_mode = #tpu.pipeline_mode<synchronous>, transform_indices = @transform_6, window_bounds = array<i64: 1, 32>}, {pipeline_mode = #tpu.pipeline_mode<synchronous>, transform_indices = @transform_7, window_bounds = array<i64: 1, 32>}, {pipeline_mode = #tpu.pipeline_mode<synchronous>, transform_indices = @transform_8, window_bounds = array<i64: 1, 32>}, {pipeline_mode = #tpu.pipeline_mode<synchronous>, transform_indices = @transform_9, window_bounds = array<i64: 1, 32>}, {pipeline_mode = #tpu.pipeline_mode<synchronous>, transform_indices = @transform_10, window_bounds = array<i64: 32, 128>}, {pipeline_mode = #tpu.pipeline_mode<synchronous>, transform_indices = @transform_11, window_bounds = array<i64: 1, 128>}, {pipeline_mode = #tpu.pipeline_mode<synchronous>, transform_indices = @transform_12, window_bounds = array<i64: 128, 32>}, {pipeline_mode = #tpu.pipeline_mode<synchronous>, transform_indices = @transform_13, window_bounds = array<i64: 1, 32>}, {transform_indices = @transform_14, window_bounds = array<i64: 4, 8, 32>}]} {
    %c0 = arith.constant 0 : index
    %c0_0 = arith.constant 0 : index
    %c0_1 = arith.constant 0 : index
    %0 = vector.load %arg1[%c0, %c0_0, %c0_1] : memref<4x8x32xf32, #tpu.memory_space<vmem>>, vector<4x8x32xf32>
    %1 = vector.shape_cast %0 : vector<4x8x32xf32> to vector<32x32xf32>
    %c0_2 = arith.constant 0 : index
    %c0_3 = arith.constant 0 : index
    %2 = vector.load %arg7[%c0_2, %c0_3] : memref<1x32xf32, #tpu.memory_space<vmem>>, vector<1x32xf32>
    %c0_4 = arith.constant 0 : index
    %c0_5 = arith.constant 0 : index
    %3 = vector.load %arg8[%c0_4, %c0_5] : memref<1x32xf32, #tpu.memory_space<vmem>>, vector<1x32xf32>
    %cst = arith.constant dense<0.000000e+00> : vector<32xf32>
    %4 = vector.multi_reduction <add>, %1, %cst [1] : vector<32x32xf32> to vector<32xf32>
    %5 = vector.shape_cast %4 : vector<32xf32> to vector<32x1xf32>
    %cst_6 = arith.constant 3.200000e+01 : f32
    %6 = vector.broadcast %cst_6 : f32 to vector<32x1xf32>
    %7 = arith.divf %5, %6 : vector<32x1xf32>
    %8 = vector.broadcast %7 : vector<32x1xf32> to vector<32x32xf32>
    %9 = arith.subf %1, %8 : vector<32x32xf32>
    %10 = arith.mulf %9, %9 : vector<32x32xf32>
    %cst_7 = arith.constant dense<0.000000e+00> : vector<32xf32>
    %11 = vector.multi_reduction <add>, %10, %cst_7 [1] : vector<32x32xf32> to vector<32xf32>
    %12 = vector.shape_cast %11 : vector<32xf32> to vector<32x1xf32>
    %cst_8 = arith.constant 3.200000e+01 : f32
    %13 = vector.broadcast %cst_8 : f32 to vector<32x1xf32>
    %14 = arith.divf %12, %13 : vector<32x1xf32>
    %15 = vector.broadcast %7 : vector<32x1xf32> to vector<32x32xf32>
    %16 = arith.subf %1, %15 : vector<32x32xf32>
    %cst_9 = arith.constant 9.99999974E-6 : f32
    %17 = vector.broadcast %cst_9 : f32 to vector<32x1xf32>
    %18 = arith.addf %14, %17 : vector<32x1xf32>
    %19 = math.rsqrt %18 : vector<32x1xf32>
    %20 = vector.broadcast %19 : vector<32x1xf32> to vector<32x32xf32>
    %21 = arith.mulf %16, %20 : vector<32x32xf32>
    %22 = vector.broadcast %2 : vector<1x32xf32> to vector<32x32xf32>
    %23 = arith.mulf %21, %22 : vector<32x32xf32>
    %24 = vector.broadcast %3 : vector<1x32xf32> to vector<32x32xf32>
    %25 = arith.addf %23, %24 : vector<32x32xf32>
    %26 = arith.truncf %25 : vector<32x32xf32> to vector<32x32xbf16>
    %c0_10 = arith.constant 0 : index
    %c0_11 = arith.constant 0 : index
    %27 = vector.load %arg3[%c0_10, %c0_11] : memref<32x96xbf16, #tpu.memory_space<vmem>>, vector<32x96xbf16>
    %cst_12 = arith.constant dense<0.000000e+00> : vector<32x96xf32>
    %28 = tpu.matmul %26, %27, %cst_12 {dimension_numbers = #tpu.dot_dimension_numbers<[1], [0], [0], [1], [0, 0, 1, 1], [], []>} : vector<32x32xbf16>, vector<32x96xbf16>, vector<32x96xf32> -> vector<32x96xf32>
    %c0_13 = arith.constant 0 : index
    %c0_14 = arith.constant 0 : index
    %29 = vector.load %arg4[%c0_13, %c0_14] : memref<1x96xf32, #tpu.memory_space<vmem>>, vector<1x96xf32>
    %30 = vector.broadcast %29 : vector<1x96xf32> to vector<32x96xf32>
    %31 = arith.addf %28, %30 : vector<32x96xf32>
    %32 = arith.truncf %31 : vector<32x96xf32> to vector<32x96xbf16>
    %33 = vector.shape_cast %32 : vector<32x96xbf16> to vector<32x12x8xbf16>
    %34 = tpu.transpose %33, [1, 0, 2] : vector<32x12x8xbf16> -> vector<12x32x8xbf16>
    %35 = vector.extract_strided_slice %34 {offsets = [0, 0, 0], sizes = [4, 32, 8], strides = [1, 1, 1]} : vector<12x32x8xbf16> to vector<4x32x8xbf16>
    %36 = vector.shape_cast %35 : vector<4x32x8xbf16> to vector<16x8x8xbf16>
    %37 = vector.extract_strided_slice %34 {offsets = [4, 0, 0], sizes = [8, 32, 8], strides = [1, 1, 1]} : vector<12x32x8xbf16> to vector<8x32x8xbf16>
    %38 = vector.shape_cast %37 : vector<8x32x8xbf16> to vector<32x8x8xbf16>
    %cst_15 = arith.constant 0.000000e+00 : bf16
    %39 = vector.broadcast %cst_15 : bf16 to vector<32x120x8xbf16>
    %40 = tpu.concatenate %38, %39 in 1 : vector<32x8x8xbf16>, vector<32x120x8xbf16> -> vector<32x128x8xbf16>
    %41 = vector.extract_strided_slice %40 {offsets = [0, 0, 0], sizes = [16, 128, 8], strides = [1, 1, 1]} : vector<32x128x8xbf16> to vector<16x128x8xbf16>
    %42 = vector.extract_strided_slice %40 {offsets = [16, 0, 0], sizes = [16, 128, 8], strides = [1, 1, 1]} : vector<32x128x8xbf16> to vector<16x128x8xbf16>
    %c0_16 = arith.constant 0 : index
    %c0_17 = arith.constant 0 : index
    %43 = vector.load %arg2[%c0_16, %c0_17] : memref<8x128xf32, #tpu.memory_space<vmem>>, vector<8x128xf32>
    "tpu.trace_start"() <{level = 10 : i32, message = "bqd,bkd->bqk"}> : () -> ()
    %cst_18 = arith.constant dense<0.000000e+00> : vector<16x8x128xf32>
    %44 = tpu.matmul %36, %41, %cst_18 {dimension_numbers = #tpu.dot_dimension_numbers<[2], [2], [1], [1], [0, 0, 0, 1, 1, 1], [0], [0]>} : vector<16x8x8xbf16>, vector<16x128x8xbf16>, vector<16x8x128xf32> -> vector<16x8x128xf32>
    "tpu.trace_stop"() : () -> ()
    %45 = vector.shape_cast %43 : vector<8x128xf32> to vector<1x8x128xf32>
    %46 = vector.broadcast %45 : vector<1x8x128xf32> to vector<16x8x128xf32>
    %47 = arith.addf %44, %46 : vector<16x8x128xf32>
    %cst_19 = arith.constant dense<0xFF800000> : vector<16x8xf32>
    %48 = vector.multi_reduction <maximumf>, %47, %cst_19 [2] : vector<16x8x128xf32> to vector<16x8xf32>
    %49 = vector.shape_cast %48 : vector<16x8xf32> to vector<16x8x1xf32>
    %50 = vector.broadcast %49 : vector<16x8x1xf32> to vector<16x8x128xf32>
    %51 = arith.subf %47, %50 : vector<16x8x128xf32>
    %52 = math.exp %51 : vector<16x8x128xf32>
    %cst_20 = arith.constant dense<0.000000e+00> : vector<16x8xf32>
    %53 = vector.multi_reduction <add>, %52, %cst_20 [2] : vector<16x8x128xf32> to vector<16x8xf32>
    %54 = vector.shape_cast %53 : vector<16x8xf32> to vector<16x8x1xf32>
    %55 = tpu.reciprocal %54 {approx = true} : vector<16x8x1xf32> -> vector<16x8x1xf32>
    %56 = vector.broadcast %55 : vector<16x8x1xf32> to vector<16x8x128xf32>
    %57 = arith.mulf %52, %56 : vector<16x8x128xf32>
    %58 = arith.truncf %57 : vector<16x8x128xf32> to vector<16x8x128xbf16>
    "tpu.trace_start"() <{level = 10 : i32, message = "bqk,bkd->bqd"}> : () -> ()
    %cst_21 = arith.constant dense<0.000000e+00> : vector<16x8x8xf32>
    %59 = tpu.matmul %58, %42, %cst_21 {dimension_numbers = #tpu.dot_dimension_numbers<[2], [1], [1], [2], [0, 0, 0, 1, 1, 2], [0], [0]>} : vector<16x8x128xbf16>, vector<16x128x8xbf16>, vector<16x8x8xf32> -> vector<16x8x8xf32>
    "tpu.trace_stop"() : () -> ()
    %60 = arith.truncf %59 : vector<16x8x8xf32> to vector<16x8x8xbf16>
    %61 = vector.shape_cast %60 : vector<16x8x8xbf16> to vector<4x32x8xbf16>
    %62 = tpu.transpose %61, [1, 0, 2] : vector<4x32x8xbf16> -> vector<32x4x8xbf16>
    %63 = vector.shape_cast %62 : vector<32x4x8xbf16> to vector<32x32xbf16>
    %c0_22 = arith.constant 0 : index
    %c0_23 = arith.constant 0 : index
    %64 = vector.load %arg5[%c0_22, %c0_23] : memref<32x32xbf16, #tpu.memory_space<vmem>>, vector<32x32xbf16>
    %cst_24 = arith.constant dense<0.000000e+00> : vector<32x32xf32>
    %65 = tpu.matmul %63, %64, %cst_24 {dimension_numbers = #tpu.dot_dimension_numbers<[1], [0], [0], [1], [0, 0, 1, 1], [], []>} : vector<32x32xbf16>, vector<32x32xbf16>, vector<32x32xf32> -> vector<32x32xf32>
    %c0_25 = arith.constant 0 : index
    %c0_26 = arith.constant 0 : index
    %66 = vector.load %arg6[%c0_25, %c0_26] : memref<1x32xf32, #tpu.memory_space<vmem>>, vector<1x32xf32>
    %67 = vector.broadcast %66 : vector<1x32xf32> to vector<32x32xf32>
    %68 = arith.addf %65, %67 : vector<32x32xf32>
    %69 = arith.addf %1, %68 : vector<32x32xf32>
    %c0_27 = arith.constant 0 : index
    %c0_28 = arith.constant 0 : index
    %70 = vector.load %arg9[%c0_27, %c0_28] : memref<1x32xf32, #tpu.memory_space<vmem>>, vector<1x32xf32>
    %c0_29 = arith.constant 0 : index
    %c0_30 = arith.constant 0 : index
    %71 = vector.load %arg10[%c0_29, %c0_30] : memref<1x32xf32, #tpu.memory_space<vmem>>, vector<1x32xf32>
    %cst_31 = arith.constant dense<0.000000e+00> : vector<32xf32>
    %72 = vector.multi_reduction <add>, %69, %cst_31 [1] : vector<32x32xf32> to vector<32xf32>
    %73 = vector.shape_cast %72 : vector<32xf32> to vector<32x1xf32>
    %cst_32 = arith.constant 3.200000e+01 : f32
    %74 = vector.broadcast %cst_32 : f32 to vector<32x1xf32>
    %75 = arith.divf %73, %74 : vector<32x1xf32>
    %76 = vector.broadcast %75 : vector<32x1xf32> to vector<32x32xf32>
    %77 = arith.subf %69, %76 : vector<32x32xf32>
    %78 = arith.mulf %77, %77 : vector<32x32xf32>
    %cst_33 = arith.constant dense<0.000000e+00> : vector<32xf32>
    %79 = vector.multi_reduction <add>, %78, %cst_33 [1] : vector<32x32xf32> to vector<32xf32>
    %80 = vector.shape_cast %79 : vector<32xf32> to vector<32x1xf32>
    %cst_34 = arith.constant 3.200000e+01 : f32
    %81 = vector.broadcast %cst_34 : f32 to vector<32x1xf32>
    %82 = arith.divf %80, %81 : vector<32x1xf32>
    %83 = vector.broadcast %75 : vector<32x1xf32> to vector<32x32xf32>
    %84 = arith.subf %69, %83 : vector<32x32xf32>
    %cst_35 = arith.constant 9.99999974E-6 : f32
    %85 = vector.broadcast %cst_35 : f32 to vector<32x1xf32>
    %86 = arith.addf %82, %85 : vector<32x1xf32>
    %87 = math.rsqrt %86 : vector<32x1xf32>
    %88 = vector.broadcast %87 : vector<32x1xf32> to vector<32x32xf32>
    %89 = arith.mulf %84, %88 : vector<32x32xf32>
    %90 = vector.broadcast %70 : vector<1x32xf32> to vector<32x32xf32>
    %91 = arith.mulf %89, %90 : vector<32x32xf32>
    %92 = vector.broadcast %71 : vector<1x32xf32> to vector<32x32xf32>
    %93 = arith.addf %91, %92 : vector<32x32xf32>
    %94 = arith.truncf %93 : vector<32x32xf32> to vector<32x32xbf16>
    %c0_36 = arith.constant 0 : index
    %c0_37 = arith.constant 0 : index
    %95 = vector.load %arg11[%c0_36, %c0_37] : memref<32x128xbf16, #tpu.memory_space<vmem>>, vector<32x128xbf16>
    %cst_38 = arith.constant dense<0.000000e+00> : vector<32x128xf32>
    %96 = tpu.matmul %94, %95, %cst_38 {dimension_numbers = #tpu.dot_dimension_numbers<[1], [0], [0], [1], [0, 0, 1, 1], [], []>} : vector<32x32xbf16>, vector<32x128xbf16>, vector<32x128xf32> -> vector<32x128xf32>
    %c0_39 = arith.constant 0 : index
    %c0_40 = arith.constant 0 : index
    %97 = vector.load %arg12[%c0_39, %c0_40] : memref<1x128xf32, #tpu.memory_space<vmem>>, vector<1x128xf32>
    %98 = vector.broadcast %97 : vector<1x128xf32> to vector<32x128xf32>
    %99 = arith.addf %96, %98 : vector<32x128xf32>
    %cst_41 = arith.constant 1.702000e+00 : f32
    %100 = vector.broadcast %cst_41 : f32 to vector<32x128xf32>
    %101 = arith.mulf %100, %99 : vector<32x128xf32>
    %102 = arith.negf %101 : vector<32x128xf32>
    %103 = math.exp %102 : vector<32x128xf32>
    %cst_42 = arith.constant 1.000000e+00 : f32
    %104 = vector.broadcast %cst_42 : f32 to vector<32x128xf32>
    %105 = arith.addf %104, %103 : vector<32x128xf32>
    %106 = arith.divf %104, %105 : vector<32x128xf32>
    %107 = arith.mulf %99, %106 : vector<32x128xf32>
    %108 = arith.truncf %107 : vector<32x128xf32> to vector<32x128xbf16>
    %c0_43 = arith.constant 0 : index
    %c0_44 = arith.constant 0 : index
    %109 = vector.load %arg13[%c0_43, %c0_44] : memref<128x32xbf16, #tpu.memory_space<vmem>>, vector<128x32xbf16>
    %cst_45 = arith.constant dense<0.000000e+00> : vector<32x32xf32>
    %110 = tpu.matmul %108, %109, %cst_45 {dimension_numbers = #tpu.dot_dimension_numbers<[1], [0], [0], [1], [0, 0, 1, 1], [], []>} : vector<32x128xbf16>, vector<128x32xbf16>, vector<32x32xf32> -> vector<32x32xf32>
    %c0_46 = arith.constant 0 : index
    %c0_47 = arith.constant 0 : index
    %111 = vector.load %arg14[%c0_46, %c0_47] : memref<1x32xf32, #tpu.memory_space<vmem>>, vector<1x32xf32>
    %112 = vector.broadcast %111 : vector<1x32xf32> to vector<32x32xf32>
    %113 = arith.addf %110, %112 : vector<32x32xf32>
    %114 = arith.addf %69, %113 : vector<32x32xf32>
    %115 = vector.shape_cast %114 : vector<32x32xf32> to vector<4x8x32xf32>
    %c0_48 = arith.constant 0 : index
    %c0_49 = arith.constant 0 : index
    %c0_50 = arith.constant 0 : index
    %116 = vector.load %arg15[%c0_48, %c0_49, %c0_50] : memref<4x8x32xf32, #tpu.memory_space<vmem>>, vector<4x8x32xf32>
    tpu.vector_store %arg15[%c0_48, %c0_49, %c0_50], %115 {strides = array<i32>} : memref<4x8x32xf32, #tpu.memory_space<vmem>>, vector<4x8x32xf32>,
    return
  }
  func.func @transform_0(%arg0: i32) -> (i32, i32, i32) {
    %c0_i32 = arith.constant 0 : i32
    %c0_i32_0 = arith.constant 0 : i32
    %c0_i32_1 = arith.constant 0 : i32
    return %arg0, %c0_i32, %c0_i32_0 : i32, i32, i32
  }
  func.func @transform_1(%arg0: i32) -> (i32, i32) {
    %c0_i32 = arith.constant 0 : i32
    %c0_i32_0 = arith.constant 0 : i32
    %c0_i32_1 = arith.constant 0 : i32
    return %c0_i32, %c0_i32_0 : i32, i32
  }
  func.func @transform_2(%arg0: i32) -> (i32, i32) {
    %c0_i32 = arith.constant 0 : i32
    %c0_i32_0 = arith.constant 0 : i32
    %c0_i32_1 = arith.constant 0 : i32
    return %c0_i32, %c0_i32_0 : i32, i32
  }
  func.func @transform_3(%arg0: i32) -> (i32, i32) {
    %c0_i32 = arith.constant 0 : i32
    %c0_i32_0 = arith.constant 0 : i32
    %c0_i32_1 = arith.constant 0 : i32
    return %c0_i32, %c0_i32_0 : i32, i32
  }
  func.func @transform_4(%arg0: i32) -> (i32, i32) {
    %c0_i32 = arith.constant 0 : i32
    %c0_i32_0 = arith.constant 0 : i32
    %c0_i32_1 = arith.constant 0 : i32
    return %c0_i32, %c0_i32_0 : i32, i32
  }
  func.func @transform_5(%arg0: i32) -> (i32, i32) {
    %c0_i32 = arith.constant 0 : i32
    %c0_i32_0 = arith.constant 0 : i32
    %c0_i32_1 = arith.constant 0 : i32
    return %c0_i32, %c0_i32_0 : i32, i32
  }
  func.func @transform_6(%arg0: i32) -> (i32, i32) {
    %c0_i32 = arith.constant 0 : i32
    %c0_i32_0 = arith.constant 0 : i32
    %c0_i32_1 = arith.constant 0 : i32
    return %c0_i32, %c0_i32_0 : i32, i32
  }
  func.func @transform_7(%arg0: i32) -> (i32, i32) {
    %c0_i32 = arith.constant 0 : i32
    %c0_i32_0 = arith.constant 0 : i32
    %c0_i32_1 = arith.constant 0 : i32
    return %c0_i32, %c0_i32_0 : i32, i32
  }
  func.func @transform_8(%arg0: i32) -> (i32, i32) {
    %c0_i32 = arith.constant 0 : i32
    %c0_i32_0 = arith.constant 0 : i32
    %c0_i32_1 = arith.constant 0 : i32
    return %c0_i32, %c0_i32_0 : i32, i32
  }
  func.func @transform_9(%arg0: i32) -> (i32, i32) {
    %c0_i32 = arith.constant 0 : i32
    %c0_i32_0 = arith.constant 0 : i32
    %c0_i32_1 = arith.constant 0 : i32
    return %c0_i32, %c0_i32_0 : i32, i32
  }
  func.func @transform_10(%arg0: i32) -> (i32, i32) {
    %c0_i32 = arith.constant 0 : i32
    %c0_i32_0 = arith.constant 0 : i32
    %c0_i32_1 = arith.constant 0 : i32
    return %c0_i32, %c0_i32_0 : i32, i32
  }
  func.func @transform_11(%arg0: i32) -> (i32, i32) {
    %c0_i32 = arith.constant 0 : i32
    %c0_i32_0 = arith.constant 0 : i32
    %c0_i32_1 = arith.constant 0 : i32
    return %c0_i32, %c0_i32_0 : i32, i32
  }
  func.func @transform_12(%arg0: i32) -> (i32, i32) {
    %c0_i32 = arith.constant 0 : i32
    %c0_i32_0 = arith.constant 0 : i32
    %c0_i32_1 = arith.constant 0 : i32
    return %c0_i32, %c0_i32_0 : i32, i32
  }
  func.func @transform_13(%arg0: i32) -> (i32, i32) {
    %c0_i32 = arith.constant 0 : i32
    %c0_i32_0 = arith.constant 0 : i32
    %c0_i32_1 = arith.constant 0 : i32
    return %c0_i32, %c0_i32_0 : i32, i32
  }
  func.func @transform_14(%arg0: i32) -> (i32, i32, i32) {
    %c0_i32 = arith.constant 0 : i32
    %c0_i32_0 = arith.constant 0 : i32
    %c0_i32_1 = arith.constant 0 : i32
    return %arg0, %c0_i32, %c0_i32_0 : i32, i32, i32
  }
}

</mosaic_0001>

<llo_original>
// kernel: transformer_forward.2
$region0: #{transformer_forward.2}
  #allocation0 [shape = 'u32[]', space=smem, size = 0x4, offset = 0x4, fixed_abs, tag = 'smem constant byte address 0x4 - core index']
  #allocation1 [shape = 'u32[144,128]{1,0:T(1,128)}', space=vmem, size = 0x12000, scoped, tag = 'internal scratch']
  %s0 = inlined_call_operand.vmem [shape: f32[16,8,32], index: 0, kind: input, shape index: {}, may-alias: {0,14}]
  %s1 = inlined_call_operand.vmem [shape: f32[8,128], index: 1, kind: input, shape index: {}]
  %s2 = inlined_call_operand.vmem [shape: bf16[32,96], index: 2, kind: input, shape index: {}]
  %s3 = inlined_call_operand.vmem [shape: f32[1,96], index: 3, kind: input, shape index: {}]
  %s4 = inlined_call_operand.vmem [shape: bf16[32,32], index: 4, kind: input, shape index: {}]
  %s5 = inlined_call_operand.vmem [shape: f32[1,32], index: 5, kind: input, shape index: {}]
  %s6 = inlined_call_operand.vmem [shape: f32[1,32], index: 6, kind: input, shape index: {}]
  %s7 = inlined_call_operand.vmem [shape: f32[1,32], index: 7, kind: input, shape index: {}]
  %s8 = inlined_call_operand.vmem [shape: f32[1,32], index: 8, kind: input, shape index: {}]
  %s9 = inlined_call_operand.vmem [shape: f32[1,32], index: 9, kind: input, shape index: {}]
  %s10 = inlined_call_operand.vmem [shape: bf16[32,128], index: 10, kind: input, shape index: {}]
  %s11 = inlined_call_operand.vmem [shape: f32[1,128], index: 11, kind: input, shape index: {}]
  %s12 = inlined_call_operand.vmem [shape: bf16[128,32], index: 12, kind: input, shape index: {}]
  %s13 = inlined_call_operand.vmem [shape: f32[1,32], index: 13, kind: input, shape index: {}]
  %s14 = inlined_call_operand.vmem [shape: f32[16,8,32], index: 14, kind: output, shape index: {}, may-alias: {0,14}]
  %s15 = sld [smem:[#allocation0]]
  $region89: #{transformer_forward.2} parent=0
    _
  %s17 = ssub.s32 1, %s15
  %s18 = scalar_select 0, %s17, %s15
  loop: start=0, step=1, limit=6
  $region2: #{transformer_forward.2} parent=0 // loop_pre_header
    _
  $region3: #{transformer_forward.2} parent=0 // loop_header
    %s20 = sphi 0, %s24
    %p21 = scmp.ge.s32.totalorder %s20, 6
    %s30 = sphi 0, %s32
    %s33 = sphi 0, %s30
    %s34 = sphi 0, %s33
    %s50 = sphi 0, %s34
    %s54 = sphi 0, %s54
    %s56 = sphi 0, %s54
    %s57 = sphi 0, %s56
    %s71 = sphi 0, %s57
    %s75 = sphi 0, %s75
    %s77 = sphi 0, %s75
    %s78 = sphi 0, %s77
    %s92 = sphi 0, %s78
    %s96 = sphi 0, %s96
    %s98 = sphi 0, %s96
    %s99 = sphi 0, %s98
    %s113 = sphi 0, %s99
    %s117 = sphi 0, %s117
    %s119 = sphi 0, %s117
    %s120 = sphi 0, %s119
    %s134 = sphi 0, %s120
    %s138 = sphi 0, %s138
    %s140 = sphi 0, %s138
    %s141 = sphi 0, %s140
    %s155 = sphi 0, %s141
    %s159 = sphi 0, %s159
    %s161 = sphi 0, %s159
    %s162 = sphi 0, %s161
    %s176 = sphi 0, %s162
    %s180 = sphi 0, %s180
    %s182 = sphi 0, %s180
    %s183 = sphi 0, %s182
    %s197 = sphi 0, %s183
    %s201 = sphi 0, %s201
    %s203 = sphi 0, %s201
    %s204 = sphi 0, %s203
    %s218 = sphi 0, %s204
    %s222 = sphi 0, %s222
    %s224 = sphi 0, %s222
    %s225 = sphi 0, %s224
    %s239 = sphi 0, %s225
    %s243 = sphi 0, %s243
    %s245 = sphi 0, %s243
    %s246 = sphi 0, %s245
    %s260 = sphi 0, %s246
    %s264 = sphi 0, %s264
    %s266 = sphi 0, %s264
    %s267 = sphi 0, %s266
    %s281 = sphi 0, %s267
    %s285 = sphi 0, %s285
    %s287 = sphi 0, %s285
    %s288 = sphi 0, %s287
    %s302 = sphi 0, %s288
    %s306 = sphi 0, %s306
    %s308 = sphi 0, %s306
    %s309 = sphi 0, %s308
    %s323 = sphi 0, %s309
    %s329 = sphi 0, %s331
    %s332 = sphi 0, %s329
    %s333 = sphi 0, %s332
    %s349 = sphi 0, %s333
  $region4: #{transformer_forward.2} parent=0 // loop_header_branch
    %23 = sbr.rel (%p21) target = $region8
  $region5: #{transformer_forward.2} parent=0 // loop_body
    %s25 = ssub.s32 %s20, 1
    %s26 = ssub.s32 %s20, 2
    %s27 = sadd.s32 %s20, 1
    %s28 = ssub.s32 %s20, %s27
    %p29 = scmp.eq.s32.totalorder %s28, 0
    %s31 = sadd.s32 %s30, 1
    %s32 = scalar_select %p29, %s30, %s31
    %p35 = pneg %p29
    %p36 = scmp.eq.s32.totalorder %s20, 3
    %p37 = por %p35, %p36
    %p38 = scmp.ne.s32.totalorder %s30, %s33
    %p39 = scmp.eq.s32.totalorder %s20, 0
    %p40 = por %p38, %p39
    %p41 = scmp.ne.s32.totalorder %s30, %s33
    %p42 = scmp.eq.s32.totalorder %s25, 3
    %p43 = por %p41, %p42
    %p44 = scmp.ne.s32.totalorder %s33, %s34
    %p45 = scmp.eq.s32.totalorder %s25, 0
    %p46 = por %p44, %p45
    %p47 = scmp.ne.s32.totalorder %s33, %s34
    %p48 = scmp.eq.s32.totalorder %s26, 3
    %p49 = por %p47, %p48
    %p51 = scmp.ne.s32.totalorder %s34, %s50
    %p52 = scmp.eq.s32.totalorder %s26, 0
    %p53 = por %p51, %p52
    %s55 = sadd.s32 %s54, 1
    %p58 = scmp.eq.s32.totalorder %s20, 3
    %p59 = scmp.ne.s32.totalorder %s54, %s56
    %p60 = scmp.eq.s32.totalorder %s20, 0
    %p61 = por %p59, %p60
    %p62 = scmp.ne.s32.totalorder %s54, %s56
    %p63 = scmp.eq.s32.totalorder %s25, 3
    %p64 = por %p62, %p63
    %p65 = scmp.ne.s32.totalorder %s56, %s57
    %p66 = scmp.eq.s32.totalorder %s25, 0
    %p67 = por %p65, %p66
    %p68 = scmp.ne.s32.totalorder %s56, %s57
    %p69 = scmp.eq.s32.totalorder %s26, 3
    %p70 = por %p68, %p69
    %p72 = scmp.ne.s32.totalorder %s57, %s71
    %p73 = scmp.eq.s32.totalorder %s26, 0
    %p74 = por %p72, %p73
    %s76 = sadd.s32 %s75, 1
    %p79 = scmp.eq.s32.totalorder %s20, 3
    %p80 = scmp.ne.s32.totalorder %s75, %s77
    %p81 = scmp.eq.s32.totalorder %s20, 0
    %p82 = por %p80, %p81
    %p83 = scmp.ne.s32.totalorder %s75, %s77
    %p84 = scmp.eq.s32.totalorder %s25, 3
    %p85 = por %p83, %p84
    %p86 = scmp.ne.s32.totalorder %s77, %s78
    %p87 = scmp.eq.s32.totalorder %s25, 0
    %p88 = por %p86, %p87
    %p89 = scmp.ne.s32.totalorder %s77, %s78
    %p90 = scmp.eq.s32.totalorder %s26, 3
    %p91 = por %p89, %p90
    %p93 = scmp.ne.s32.totalorder %s78, %s92
    %p94 = scmp.eq.s32.totalorder %s26, 0
    %p95 = por %p93, %p94
    %s97 = sadd.s32 %s96, 1
    %p100 = scmp.eq.s32.totalorder %s20, 3
    %p101 = scmp.ne.s32.totalorder %s96, %s98
    %p102 = scmp.eq.s32.totalorder %s20, 0
    %p103 = por %p101, %p102
    %p104 = scmp.ne.s32.totalorder %s96, %s98
    %p105 = scmp.eq.s32.totalorder %s25, 3
    %p106 = por %p104, %p105
    %p107 = scmp.ne.s32.totalorder %s98, %s99
    %p108 = scmp.eq.s32.totalorder %s25, 0
    %p109 = por %p107, %p108
    %p110 = scmp.ne.s32.totalorder %s98, %s99
    %p111 = scmp.eq.s32.totalorder %s26, 3
    %p112 = por %p110, %p111
    %p114 = scmp.ne.s32.totalorder %s99, %s113
    %p115 = scmp.eq.s32.totalorder %s26, 0
    %p116 = por %p114, %p115
    %s118 = sadd.s32 %s117, 1
    %p121 = scmp.eq.s32.totalorder %s20, 3
    %p122 = scmp.ne.s32.totalorder %s117, %s119
    %p123 = scmp.eq.s32.totalorder %s20, 0
    %p124 = por %p122, %p123
    %p125 = scmp.ne.s32.totalorder %s117, %s119
    %p126 = scmp.eq.s32.totalorder %s25, 3
    %p127 = por %p125, %p126
    %p128 = scmp.ne.s32.totalorder %s119, %s120
    %p129 = scmp.eq.s32.totalorder %s25, 0
    %p130 = por %p128, %p129
    %p131 = scmp.ne.s32.totalorder %s119, %s120
    %p132 = scmp.eq.s32.totalorder %s26, 3
    %p133 = por %p131, %p132
    %p135 = scmp.ne.s32.totalorder %s120, %s134
    %p136 = scmp.eq.s32.totalorder %s26, 0
    %p137 = por %p135, %p136
    %s139 = sadd.s32 %s138, 1
    %p142 = scmp.eq.s32.totalorder %s20, 3
    %p143 = scmp.ne.s32.totalorder %s138, %s140
    %p144 = scmp.eq.s32.totalorder %s20, 0
    %p145 = por %p143, %p144
    %p146 = scmp.ne.s32.totalorder %s138, %s140
    %p147 = scmp.eq.s32.totalorder %s25, 3
    %p148 = por %p146, %p147
    %p149 = scmp.ne.s32.totalorder %s140, %s141
    %p150 = scmp.eq.s32.totalorder %s25, 0
    %p151 = por %p149, %p150
    %p152 = scmp.ne.s32.totalorder %s140, %s141
    %p153 = scmp.eq.s32.totalorder %s26, 3
    %p154 = por %p152, %p153
    %p156 = scmp.ne.s32.totalorder %s141, %s155
    %p157 = scmp.eq.s32.totalorder %s26, 0
    %p158 = por %p156, %p157
    %s160 = sadd.s32 %s159, 1
    %p163 = scmp.eq.s32.totalorder %s20, 3
    %p164 = scmp.ne.s32.totalorder %s159, %s161
    %p165 = scmp.eq.s32.totalorder %s20, 0
    %p166 = por %p164, %p165
    %p167 = scmp.ne.s32.totalorder %s159, %s161
    %p168 = scmp.eq.s32.totalorder %s25, 3
    %p169 = por %p167, %p168
    %p170 = scmp.ne.s32.totalorder %s161, %s162
    %p171 = scmp.eq.s32.totalorder %s25, 0
    %p172 = por %p170, %p171
    %p173 = scmp.ne.s32.totalorder %s161, %s162
    %p174 = scmp.eq.s32.totalorder %s26, 3
    %p175 = por %p173, %p174
    %p177 = scmp.ne.s32.totalorder %s162, %s176
    %p178 = scmp.eq.s32.totalorder %s26, 0
    %p179 = por %p177, %p178
    %s181 = sadd.s32 %s180, 1
    %p184 = scmp.eq.s32.totalorder %s20, 3
    %p185 = scmp.ne.s32.totalorder %s180, %s182
    %p186 = scmp.eq.s32.totalorder %s20, 0
    %p187 = por %p185, %p186
    %p188 = scmp.ne.s32.totalorder %s180, %s182
    %p189 = scmp.eq.s32.totalorder %s25, 3
    %p190 = por %p188, %p189
    %p191 = scmp.ne.s32.totalorder %s182, %s183
    %p192 = scmp.eq.s32.totalorder %s25, 0
    %p193 = por %p191, %p192
    %p194 = scmp.ne.s32.totalorder %s182, %s183
    %p195 = scmp.eq.s32.totalorder %s26, 3
    %p196 = por %p194, %p195
    %p198 = scmp.ne.s32.totalorder %s183, %s197
    %p199 = scmp.eq.s32.totalorder %s26, 0
    %p200 = por %p198, %p199
    %s202 = sadd.s32 %s201, 1
    %p205 = scmp.eq.s32.totalorder %s20, 3
    %p206 = scmp.ne.s32.totalorder %s201, %s203
    %p207 = scmp.eq.s32.totalorder %s20, 0
    %p208 = por %p206, %p207
    %p209 = scmp.ne.s32.totalorder %s201, %s203
    %p210 = scmp.eq.s32.totalorder %s25, 3
    %p211 = por %p209, %p210
    %p212 = scmp.ne.s32.totalorder %s203, %s204
    %p213 = scmp.eq.s32.totalorder %s25, 0
    %p214 = por %p212, %p213
    %p215 = scmp.ne.s32.totalorder %s203, %s204
    %p216 = scmp.eq.s32.totalorder %s26, 3
    %p217 = por %p215, %p216
    %p219 = scmp.ne.s32.totalorder %s204, %s218
    %p220 = scmp.eq.s32.totalorder %s26, 0
    %p221 = por %p219, %p220
    %s223 = sadd.s32 %s222, 1
    %p226 = scmp.eq.s32.totalorder %s20, 3
    %p227 = scmp.ne.s32.totalorder %s222, %s224
    %p228 = scmp.eq.s32.totalorder %s20, 0
    %p229 = por %p227, %p228
    %p230 = scmp.ne.s32.totalorder %s222, %s224
    %p231 = scmp.eq.s32.totalorder %s25, 3
    %p232 = por %p230, %p231
    %p233 = scmp.ne.s32.totalorder %s224, %s225
    %p234 = scmp.eq.s32.totalorder %s25, 0
    %p235 = por %p233, %p234
    %p236 = scmp.ne.s32.totalorder %s224, %s225
    %p237 = scmp.eq.s32.totalorder %s26, 3
    %p238 = por %p236, %p237
    %p240 = scmp.ne.s32.totalorder %s225, %s239
    %p241 = scmp.eq.s32.totalorder %s26, 0
    %p242 = por %p240, %p241
    %s244 = sadd.s32 %s243, 1
    %p247 = scmp.eq.s32.totalorder %s20, 3
    %p248 = scmp.ne.s32.totalorder %s243, %s245
    %p249 = scmp.eq.s32.totalorder %s20, 0
    %p250 = por %p248, %p249
    %p251 = scmp.ne.s32.totalorder %s243, %s245
    %p252 = scmp.eq.s32.totalorder %s25, 3
    %p253 = por %p251, %p252
    %p254 = scmp.ne.s32.totalorder %s245, %s246
    %p255 = scmp.eq.s32.totalorder %s25, 0
    %p256 = por %p254, %p255
    %p257 = scmp.ne.s32.totalorder %s245, %s246
    %p258 = scmp.eq.s32.totalorder %s26, 3
    %p259 = por %p257, %p258
    %p261 = scmp.ne.s32.totalorder %s246, %s260
    %p262 = scmp.eq.s32.totalorder %s26, 0
    %p263 = por %p261, %p262
    %s265 = sadd.s32 %s264, 1
    %p268 = scmp.eq.s32.totalorder %s20, 3
    %p269 = scmp.ne.s32.totalorder %s264, %s266
    %p270 = scmp.eq.s32.totalorder %s20, 0
    %p271 = por %p269, %p270
    %p272 = scmp.ne.s32.totalorder %s264, %s266
    %p273 = scmp.eq.s32.totalorder %s25, 3
    %p274 = por %p272, %p273
    %p275 = scmp.ne.s32.totalorder %s266, %s267
    %p276 = scmp.eq.s32.totalorder %s25, 0
    %p277 = por %p275, %p276
    %p278 = scmp.ne.s32.totalorder %s266, %s267
    %p279 = scmp.eq.s32.totalorder %s26, 3
    %p280 = por %p278, %p279
    %p282 = scmp.ne.s32.totalorder %s267, %s281
    %p283 = scmp.eq.s32.totalorder %s26, 0
    %p284 = por %p282, %p283
    %s286 = sadd.s32 %s285, 1
    %p289 = scmp.eq.s32.totalorder %s20, 3
    %p290 = scmp.ne.s32.totalorder %s285, %s287
    %p291 = scmp.eq.s32.totalorder %s20, 0
    %p292 = por %p290, %p291
    %p293 = scmp.ne.s32.totalorder %s285, %s287
    %p294 = scmp.eq.s32.totalorder %s25, 3
    %p295 = por %p293, %p294
    %p296 = scmp.ne.s32.totalorder %s287, %s288
    %p297 = scmp.eq.s32.totalorder %s25, 0
    %p298 = por %p296, %p297
    %p299 = scmp.ne.s32.totalorder %s287, %s288
    %p300 = scmp.eq.s32.totalorder %s26, 3
    %p301 = por %p299, %p300
    %p303 = scmp.ne.s32.totalorder %s288, %s302
    %p304 = scmp.eq.s32.totalorder %s26, 0
    %p305 = por %p303, %p304
    %s307 = sadd.s32 %s306, 1
    %p310 = scmp.eq.s32.totalorder %s20, 3
    %p311 = scmp.ne.s32.totalorder %s306, %s308
    %p312 = scmp.eq.s32.totalorder %s20, 0
    %p313 = por %p311, %p312
    %p314 = scmp.ne.s32.totalorder %s306, %s308
    %p315 = scmp.eq.s32.totalorder %s25, 3
    %p316 = por %p314, %p315
    %p317 = scmp.ne.s32.totalorder %s308, %s309
    %p318 = scmp.eq.s32.totalorder %s25, 0
    %p319 = por %p317, %p318
    %p320 = scmp.ne.s32.totalorder %s308, %s309
    %p321 = scmp.eq.s32.totalorder %s26, 3
    %p322 = por %p320, %p321
    %p324 = scmp.ne.s32.totalorder %s309, %s323
    %p325 = scmp.eq.s32.totalorder %s26, 0
    %p326 = por %p324, %p325
    %s327 = ssub.s32 %s20, %s27
    %p328 = scmp.eq.s32.totalorder %s327, 0
    %s330 = sadd.s32 %s329, 1
    %s331 = scalar_select %p328, %s329, %s330
    %p334 = pneg %p328
    %p335 = scmp.eq.s32.totalorder %s20, 3
    %p336 = por %p334, %p335
    %p337 = scmp.ne.s32.totalorder %s329, %s332
    %p338 = scmp.eq.s32.totalorder %s20, 0
    %p339 = por %p337, %p338
    %p340 = scmp.ne.s32.totalorder %s329, %s332
    %p341 = scmp.eq.s32.totalorder %s25, 3
    %p342 = por %p340, %p341
    %p343 = scmp.ne.s32.totalorder %s332, %s333
    %p344 = scmp.eq.s32.totalorder %s25, 0
    %p345 = por %p343, %p344
    %p346 = scmp.ne.s32.totalorder %s332, %s333
    %p347 = scmp.eq.s32.totalorder %s26, 3
    %p348 = por %p346, %p347
    %p350 = scmp.ne.s32.totalorder %s333, %s349
    %p351 = scmp.eq.s32.totalorder %s26, 0
    %p352 = por %p350, %p351
    %p353 = scmp.le.s32.totalorder 1, %s20
    %p354 = scmp.lt.s32.totalorder %s20, 5
    %p355 = pnand %p353, %p354
    %p356 = pneg %p355
    // Predicated region
    $region9: #{transformer_forward.2} parent=5 // pred_check
      _
    $region10: #{transformer_forward.2} parent=5 // pred_check_branch
      %358 = sbr.rel (%p355) target = $region12
    $region11: #{transformer_forward.2} parent=5 // pred_region
      %s359 = ssub.s32 %s20, 1
      // Predicated region
      $region13: #{transformer_forward.2} parent=11 // pred_check
        %p360 = pneg %p67
      $region14: #{transformer_forward.2} parent=11 // pred_check_branch
        %362 = sbr.rel (%p360) target = $region16
      $region15: #{transformer_forward.2} parent=11 // pred_region
        _
      $region16: #{transformer_forward.2} parent=11 // pred_fallthru
        _
      // Predicated region
      $region17: #{transformer_forward.2} parent=11 // pred_check
        %p363 = pneg %p88
      $region18: #{transformer_forward.2} parent=11 // pred_check_branch
        %365 = sbr.rel (%p363) target = $region20
      $region19: #{transformer_forward.2} parent=11 // pred_region
        _
      $region20: #{transformer_forward.2} parent=11 // pred_fallthru
        _
      // Predicated region
      $region21: #{transformer_forward.2} parent=11 // pred_check
        %p366 = pneg %p109
      $region22: #{transformer_forward.2} parent=11 // pred_check_branch
        %368 = sbr.rel (%p366) target = $region24
      $region23: #{transformer_forward.2} parent=11 // pred_region
        _
      $region24: #{transformer_forward.2} parent=11 // pred_fallthru
        _
      // Predicated region
      $region25: #{transformer_forward.2} parent=11 // pred_check
        %p369 = pneg %p130
      $region26: #{transformer_forward.2} parent=11 // pred_check_branch
        %371 = sbr.rel (%p369) target = $region28
      $region27: #{transformer_forward.2} parent=11 // pred_region
        _
      $region28: #{transformer_forward.2} parent=11 // pred_fallthru
        _
      // Predicated region
      $region29: #{transformer_forward.2} parent=11 // pred_check
        %p372 = pneg %p151
      $region30: #{transformer_forward.2} parent=11 // pred_check_branch
        %374 = sbr.rel (%p372) target = $region32
      $region31: #{transformer_forward.2} parent=11 // pred_region
        _
      $region32: #{transformer_forward.2} parent=11 // pred_fallthru
        _
      // Predicated region
      $region33: #{transformer_forward.2} parent=11 // pred_check
        %p375 = pneg %p172
      $region34: #{transformer_forward.2} parent=11 // pred_check_branch
        %377 = sbr.rel (%p375) target = $region36
      $region35: #{transformer_forward.2} parent=11 // pred_region
        _
      $region36: #{transformer_forward.2} parent=11 // pred_fallthru
        _
      // Predicated region
      $region37: #{transformer_forward.2} parent=11 // pred_check
        %p378 = pneg %p193
      $region38: #{transformer_forward.2} parent=11 // pred_check_branch
        %380 = sbr.rel (%p378) target = $region40
      $region39: #{transformer_forward.2} parent=11 // pred_region
        _
      $region40: #{transformer_forward.2} parent=11 // pred_fallthru
        _
      // Predicated region
      $region41: #{transformer_forward.2} parent=11 // pred_check
        %p381 = pneg %p214
      $region42: #{transformer_forward.2} parent=11 // pred_check_branch
        %383 = sbr.rel (%p381) target = $region44
      $region43: #{transformer_forward.2} parent=11 // pred_region
        _
      $region44: #{transformer_forward.2} parent=11 // pred_fallthru
        _
      // Predicated region
      $region45: #{transformer_forward.2} parent=11 // pred_check
        %p384 = pneg %p235
      $region46: #{transformer_forward.2} parent=11 // pred_check_branch
        %386 = sbr.rel (%p384) target = $region48
      $region47: #{transformer_forward.2} parent=11 // pred_region
        _
      $region48: #{transformer_forward.2} parent=11 // pred_fallthru
        _
      // Predicated region
      $region49: #{transformer_forward.2} parent=11 // pred_check
        %p387 = pneg %p256
      $region50: #{transformer_forward.2} parent=11 // pred_check_branch
        %389 = sbr.rel (%p387) target = $region52
      $region51: #{transformer_forward.2} parent=11 // pred_region
        _
      $region52: #{transformer_forward.2} parent=11 // pred_fallthru
        _
      // Predicated region
      $region53: #{transformer_forward.2} parent=11 // pred_check
        %p390 = pneg %p277
      $region54: #{transformer_forward.2} parent=11 // pred_check_branch
        %392 = sbr.rel (%p390) target = $region56
      $region55: #{transformer_forward.2} parent=11 // pred_region
        _
      $region56: #{transformer_forward.2} parent=11 // pred_fallthru
        _
      // Predicated region
      $region57: #{transformer_forward.2} parent=11 // pred_check
        %p393 = pneg %p298
      $region58: #{transformer_forward.2} parent=11 // pred_check_branch
        %395 = sbr.rel (%p393) target = $region60
      $region59: #{transformer_forward.2} parent=11 // pred_region
        _
      $region60: #{transformer_forward.2} parent=11 // pred_fallthru
        _
      // Predicated region
      $region61: #{transformer_forward.2} parent=11 // pred_check
        %p396 = pneg %p319
      $region62: #{transformer_forward.2} parent=11 // pred_check_branch
        %398 = sbr.rel (%p396) target = $region64
      $region63: #{transformer_forward.2} parent=11 // pred_region
        _
      $region64: #{transformer_forward.2} parent=11 // pred_fallthru
        _
    $region12: #{transformer_forward.2} parent=5 // pred_fallthru
      _
    %p399 = scmp.lt.s32.totalorder %s20, 4
    // Predicated region
    $region65: #{transformer_forward.2} parent=5 // pred_check
      %p400 = pneg %p399
    $region66: #{transformer_forward.2} parent=5 // pred_check_branch
      %402 = sbr.rel (%p400) target = $region68
    $region67: #{transformer_forward.2} parent=5 // pred_region
      // Predicated region
      $region69: #{transformer_forward.2} parent=67 // pred_check
        %p403 = pneg %p40
      $region70: #{transformer_forward.2} parent=67 // pred_check_branch
        %405 = sbr.rel (%p403) target = $region72
      $region71: #{transformer_forward.2} parent=67 // pred_region
        %s406 = smul.u32 4, %s20
        %p407 = scmp.lt.s32.totalorder %s406, 15
        %s408 = scalar_select %p407, %s406, 15
        %s409 = smul.addr %s408, 8
        %s410 = scalar_lea.vmem %s0, %s409
        %s411 = smul.u32 4, %s20
      $region72: #{transformer_forward.2} parent=67 // pred_fallthru
        _
    $region68: #{transformer_forward.2} parent=5 // pred_fallthru
      _
    %p412 = scmp.le.s32.totalorder 1, %s20
    %p413 = scmp.lt.s32.totalorder %s20, 5
    %p414 = pnand %p412, %p413
    %p415 = pneg %p414
    // Predicated region
    $region73: #{transformer_forward.2} parent=5 // pred_check
      _
    $region74: #{transformer_forward.2} parent=5 // pred_check_branch
      %417 = sbr.rel (%p414) target = $region76
    $region75: #{transformer_forward.2} parent=5 // pred_region
      %s418 = ssub.s32 %s20, 1
      %s419 = smul.u32 4, %s25
      %p420 = scmp.lt.s32.totalorder %s419, 15
      %s421 = scalar_select %p420, %s419, 15
      %s422 = smul.addr %s421, 8
      %s423 = scalar_lea.vmem %s0, %s422
      %p424 = pneg %p46
      %p425 = pneg %p43
      %p426 = pneg %p67
      %p427 = pneg %p64
      %p428 = pneg %p88
      %p429 = pneg %p85
      %p430 = pneg %p109
      %p431 = pneg %p106
      %p432 = pneg %p130
      %p433 = pneg %p127
      %p434 = pneg %p151
      %p435 = pneg %p148
      %p436 = pneg %p172
      %p437 = pneg %p169
      %p438 = pneg %p193
      %p439 = pneg %p190
      %p440 = pneg %p214
      %p441 = pneg %p211
      %p442 = pneg %p235
      %p443 = pneg %p232
      %p444 = pneg %p256
      %p445 = pneg %p253
      %p446 = pneg %p277
      %p447 = pneg %p274
      %p448 = pneg %p298
      %p449 = pneg %p295
      %p450 = pneg %p319
      %p451 = pneg %p316
      %p452 = pneg %p345
      %p453 = pneg %p342
      %s454 = smul.u32 4, %s25
      %p455 = scmp.lt.s32.totalorder %s454, 15
      %s456 = scalar_select %p455, %s454, 15
      %s457 = smul.addr %s456, 8
      %s458 = scalar_lea.vmem %s14, %s457
      %s459 = smul.u32 4, %s25
      %p460 = scmp.lt.s32.totalorder %s459, 15
      %s461 = scalar_select %p460, %s459, 15
      %s462 = smul.addr %s461, 8
      %s463 = scalar_lea.vmem %s0, %s462
      %s464 = smul.u32 4, %s25
      %s465 = smul.u32 4, %s25
      %p466 = scmp.lt.s32.totalorder %s465, 15
      %s467 = scalar_select %p466, %s465, 15
      %s468 = smul.addr %s467, 8
      %s469 = scalar_lea.vmem %s14, %s468
      %s470 = smul.u32 4, %s25
      %v472 = vld [vmem:[%s463] sm:$0xff]
      %v473 = vld [vmem:[%s463 + $0x8] sm:$0xff]
      %v474 = vld [vmem:[%s463 + $0x10] sm:$0xff]
      %v475 = vld [vmem:[%s463 + $0x18] sm:$0xff]
      %v476 = vld [vmem:[%s6] sm:$0x1]
      %v477 = vld [vmem:[%s7] sm:$0x1]
      %vm478 = vcmask 261120
      %v479 = vsel %vm478, %v472, 0.0
      %480 = vadd.xlane.f32.xlu0 %v479
      %v481 = vpop.xlane.xlu0 %480
      %v482 = vsel %vm478, %v473, 0.0
      %483 = vadd.xlane.f32.xlu0 %v482
      %v484 = vpop.xlane.xlu0 %483
      %v485 = vsel %vm478, %v474, 0.0
      %486 = vadd.xlane.f32.xlu0 %v485
      %v487 = vpop.xlane.xlu0 %486
      %v488 = vsel %vm478, %v475, 0.0
      %489 = vadd.xlane.f32.xlu0 %v488
      %v490 = vpop.xlane.xlu0 %489
      %v491 = vrcp.pop 32.0
      %v492 = vmul.f32 %v481, %v491
      %v493 = vmul.f32 %v484, %v491
      %v494 = vmul.f32 %v487, %v491
      %v495 = vmul.f32 %v490, %v491
      %v496 = vsub.f32 %v472, %v492
      %v497 = vsub.f32 %v473, %v493
      %v498 = vsub.f32 %v474, %v494
      %v499 = vsub.f32 %v475, %v495
      %v500 = vmul.f32 %v496, %v496
      %v501 = vmul.f32 %v497, %v497
      %v502 = vmul.f32 %v498, %v498
      %v503 = vmul.f32 %v499, %v499
      %v504 = vsel %vm478, %v500, 0.0
      %505 = vadd.xlane.f32.xlu0 %v504
      %v506 = vpop.xlane.xlu0 %505
      %v507 = vsel %vm478, %v501, 0.0
      %508 = vadd.xlane.f32.xlu0 %v507
      %v509 = vpop.xlane.xlu0 %508
      %v510 = vsel %vm478, %v502, 0.0
      %511 = vadd.xlane.f32.xlu0 %v510
      %v512 = vpop.xlane.xlu0 %511
      %v513 = vsel %vm478, %v503, 0.0
      %514 = vadd.xlane.f32.xlu0 %v513
      %v515 = vpop.xlane.xlu0 %514
      %v516 = vmul.f32 %v506, %v491
      %v517 = vmul.f32 %v509, %v491
      %v518 = vmul.f32 %v512, %v491
      %v519 = vmul.f32 %v515, %v491
      %v520 = vadd.f32 %v516, 1e-05
      %v521 = vadd.f32 %v517, 1e-05
      %v522 = vadd.f32 %v518, 1e-05
      %v523 = vadd.f32 %v519, 1e-05
      %v524 = vrsqrt.pop %v520
      %v525 = vrsqrt.pop %v521
      %v526 = vrsqrt.pop %v522
      %v527 = vrsqrt.pop %v523
      %v528 = vmul.f32 %v496, %v524
      %v529 = vmul.f32 %v497, %v525
      %v530 = vmul.f32 %v498, %v526
      %v531 = vmul.f32 %v499, %v527
      %v533 = vlaneseq
      %v534 = vshrl.u32 %v533, 7
      %v535 = vsub.s32 0, %v534
      %v536 = vrot.slane %v476, %v535
      %v538 = vmul.f32 %v528, %v536
      %v539 = vmul.f32 %v529, %v536
      %v540 = vmul.f32 %v530, %v536
      %v541 = vmul.f32 %v531, %v536
      %v543 = vlaneseq
      %v544 = vshrl.u32 %v543, 7
      %v545 = vsub.s32 0, %v544
      %v546 = vrot.slane %v477, %v545
      %v548 = vadd.f32 %v538, %v546
      %v549 = vadd.f32 %v539, %v546
      %v550 = vadd.f32 %v540, %v546
      %v551 = vadd.f32 %v541, %v546
      %v552 = vpack.c.bf16 %v549, %v548
      %v553 = vpack.c.bf16 %v551, %v550
      %v554 = vld [vmem:[%s2] sm:$0xf]
      %v555 = vld [vmem:[%s2 + $0x4] sm:$0xf]
      %v556 = vld [vmem:[%s2 + $0x8] sm:$0xf]
      %v557 = vld [vmem:[%s2 + $0xc] sm:$0xf]
      %v558 = vld [vmem:[%s3] sm:$0x1]
      %v560 = vlaneseq
      %v561 = vshrl.u32 %v560, 7
      %v562 = vsub.s32 0, %v561
      %v563 = vrot.slane %v558, %v562
      %v569 = vunpack.c.l.b16 %v554
      %v570 = vunpack.c.l.b16 %v555
      %v571 = vunpack.c.l.b16 %v556
      %v572 = vunpack.c.l.b16 %v557
      %v573 = vpack.c.b16 %v570, %v569
      %v574 = vpack.c.b16 %v572, %v571
      %v578 = vsel %vm478, %v552, 0
      %v581 = vsel %vm478, %v553, 0
      %583 = vmatprep.subr.bf16.mxu0 0
      %584 = vmatpush1.bf16.msra.mxu0 %v573
      %585 = vmatprep.subr.bf16.mxu0 0
      %586 = vmatpush1.bf16.msra.mxu0 %v574
      %587 = vmatprep.subr.bf16.mxu0 0
      %588 = vmatpush1.bf16.msra.mxu0 0
      %589 = vmatprep.subr.bf16.mxu0 0
      %590 = vmatpush1.bf16.msra.mxu0 0
      %591 = vmatprep.subr.bf16.mxu0 0
      %592 = vmatpush1.bf16.msra.mxu0 0
      %593 = vmatprep.subr.bf16.mxu0 0
      %594 = vmatpush1.bf16.msra.mxu0 0
      %595 = vmatprep.subr.bf16.mxu0 0
      %596 = vmatpush1.bf16.msra.mxu0 0
      %597 = vmatprep.subr.bf16.mxu0 0
      %598 = vmatpush1.bf16.msra.mxu0 0
      %599 = vmatprep.subr.bf16.mxu0 0
      %600 = vmatpush1.bf16.msra.mxu0 0
      %601 = vmatprep.subr.bf16.mxu0 0
      %602 = vmatpush1.bf16.msra.mxu0 0
      %603 = vmatprep.subr.bf16.mxu0 0
      %604 = vmatpush1.bf16.msra.mxu0 0
      %605 = vmatprep.subr.bf16.mxu0 0
      %606 = vmatpush1.bf16.msra.mxu0 0
      %607 = vmatprep.subr.bf16.mxu0 0
      %608 = vmatpush1.bf16.msra.mxu0 0
      %609 = vmatprep.subr.bf16.mxu0 0
      %610 = vmatpush1.bf16.msra.mxu0 0
      %611 = vmatprep.subr.bf16.mxu0 0
      %612 = vmatpush1.bf16.msra.mxu0 0
      %613 = vmatprep.subr.bf16.mxu0 0
      %614 = vmatpush1.bf16.msra.mxu0 0
      %615 = vmatprep.mubr.bf16.mxu0 0
      %616 = vmatmul.mubr.bf16.gmra.mrb[0].mxu0 %v578
      %v617 = vpop.f32.mrb[0].mxu0
      %v618 = vadd.f32 %v563, %v617
      %v619 = vpop.f32.mrb[0].mxu0
      %v620 = vpop.f32.mrb[0].mxu0
      %v621 = vadd.f32 %v563, %v620
      %v622 = vpop.f32.mrb[0].mxu0
      %623 = vmatprep.mubr.bf16.mxu0 0
      %624 = vmatmul.mubr.bf16.gmra.mrb[0].mxu0 %v581
      %v625 = vpop.f32.mrb[0].mxu0
      %v626 = vadd.f32 %v563, %v625
      %v627 = vpop.f32.mrb[0].mxu0
      %v628 = vpop.f32.mrb[0].mxu0
      %v629 = vadd.f32 %v563, %v628
      %v630 = vpop.f32.mrb[0].mxu0
      %631 = vdwg.mxu0
      %v632 = vpack.c.bf16 %v621, %v618
      %v633 = vpack.c.bf16 %v629, %v626
      %636 = vrot.lane.b32.xlu0 %v632, 120
      %v637 = vpop.permute.xlu0 %636
      %638 = vrot.lane.b32.xlu0 %v633, 120
      %v639 = vpop.permute.xlu0 %638
      %640 = vrot.lane.b32.xlu0 %v632, 112
      %v641 = vpop.permute.xlu0 %640
      %642 = vrot.lane.b32.xlu0 %v633, 112
      %v643 = vpop.permute.xlu0 %642
      %644 = vrot.lane.b32.xlu0 %v632, 104
      %v645 = vpop.permute.xlu0 %644
      %646 = vrot.lane.b32.xlu0 %v633, 104
      %v647 = vpop.permute.xlu0 %646
      %648 = vrot.lane.b32.xlu0 %v632, 96
      %v649 = vpop.permute.xlu0 %648
      %650 = vrot.lane.b32.xlu0 %v633, 96
      %v651 = vpop.permute.xlu0 %650
      %652 = vrot.lane.b32.xlu0 %v632, 88
      %v653 = vpop.permute.xlu0 %652
      %654 = vrot.lane.b32.xlu0 %v633, 88
      %v655 = vpop.permute.xlu0 %654
      %656 = vrot.lane.b32.xlu0 %v632, 80
      %v657 = vpop.permute.xlu0 %656
      %658 = vrot.lane.b32.xlu0 %v633, 80
      %v659 = vpop.permute.xlu0 %658
      %660 = vrot.lane.b32.xlu0 %v632, 72
      %v661 = vpop.permute.xlu0 %660
      %662 = vrot.lane.b32.xlu0 %v633, 72
      %v663 = vpop.permute.xlu0 %662
      %664 = vrot.lane.b32.xlu0 %v632, 64
      %v665 = vpop.permute.xlu0 %664
      %666 = vrot.lane.b32.xlu0 %v633, 64
      %v667 = vpop.permute.xlu0 %666
      %668 = vrot.lane.b32.xlu0 %v632, 56
      %v669 = vpop.permute.xlu0 %668
      %670 = vrot.lane.b32.xlu0 %v633, 56
      %v671 = vpop.permute.xlu0 %670
      %672 = vrot.lane.b32.xlu0 %v632, 48
      %v673 = vpop.permute.xlu0 %672
      %674 = vrot.lane.b32.xlu0 %v633, 48
      %v675 = vpop.permute.xlu0 %674
      %676 = vrot.lane.b32.xlu0 %v632, 40
      %v677 = vpop.permute.xlu0 %676
      %678 = vrot.lane.b32.xlu0 %v633, 40
      %v679 = vpop.permute.xlu0 %678
      %v682 = vpack.i.b16 %v637, %v632
      %v684 = vshrl.u32 %v632, 16
      %v685 = vshrl.u32 %v637, 16
      %v686 = vpack.i.b16 %v685, %v684
      %v690 = vpack.i.b16 %v645, %v641
      %v692 = vshrl.u32 %v641, 16
      %v693 = vshrl.u32 %v645, 16
      %v694 = vpack.i.b16 %v693, %v692
      %v698 = vpack.i.b16 %v653, %v649
      %v700 = vshrl.u32 %v649, 16
      %v701 = vshrl.u32 %v653, 16
      %v702 = vpack.i.b16 %v701, %v700
      %v706 = vpack.i.b16 %v661, %v657
      %v708 = vshrl.u32 %v657, 16
      %v709 = vshrl.u32 %v661, 16
      %v710 = vpack.i.b16 %v709, %v708
      %v714 = vpack.i.b16 %v669, %v665
      %v716 = vshrl.u32 %v665, 16
      %v717 = vshrl.u32 %v669, 16
      %v718 = vpack.i.b16 %v717, %v716
      %v722 = vpack.i.b16 %v677, %v673
      %v724 = vshrl.u32 %v673, 16
      %v725 = vshrl.u32 %v677, 16
      %v726 = vpack.i.b16 %v725, %v724
      %v729 = vpack.i.b16 0, 0
      %v731 = vshrl.u32 0, 16
      %v732 = vpack.i.b16 %v731, %v731
      %v736 = vpack.i.b16 %v639, %v633
      %v738 = vshrl.u32 %v633, 16
      %v739 = vshrl.u32 %v639, 16
      %v740 = vpack.i.b16 %v739, %v738
      %v744 = vpack.i.b16 %v647, %v643
      %v746 = vshrl.u32 %v643, 16
      %v747 = vshrl.u32 %v647, 16
      %v748 = vpack.i.b16 %v747, %v746
      %v752 = vpack.i.b16 %v655, %v651
      %v754 = vshrl.u32 %v651, 16
      %v755 = vshrl.u32 %v655, 16
      %v756 = vpack.i.b16 %v755, %v754
      %v760 = vpack.i.b16 %v663, %v659
      %v762 = vshrl.u32 %v659, 16
      %v763 = vshrl.u32 %v663, 16
      %v764 = vpack.i.b16 %v763, %v762
      %v768 = vpack.i.b16 %v671, %v667
      %v770 = vshrl.u32 %v667, 16
      %v771 = vshrl.u32 %v671, 16
      %v772 = vpack.i.b16 %v771, %v770
      %v776 = vpack.i.b16 %v679, %v675
      %v778 = vshrl.u32 %v675, 16
      %v779 = vshrl.u32 %v679, 16
      %v780 = vpack.i.b16 %v779, %v778
      %v782 = vcombine.low %v682, %v698
      %v783 = vcombine.high %v682, %v698
      %v785 = vunpack.c.l.s4 1983009808
      %v786 = vunpack.c.0.s8 %v785
      %v787 = vlaneseq
      %v788 = vshrl.u32 %v787, 7
      %v789 = vsub.s32 %v786, %v788
      %v790 = vrot.slane %v782, %v789
      %v792 = vunpack.c.l.s4 1983009808
      %v793 = vunpack.c.0.s8 %v792
      %v794 = vlaneseq
      %v795 = vshrl.u32 %v794, 7
      %v796 = vsub.s32 %v793, %v795
      %v797 = vrot.slane %v783, %v796
      %v798 = vcombine.low %v690, %v706
      %v799 = vcombine.high %v690, %v706
      %v801 = vunpack.c.l.s4 1983009808
      %v802 = vunpack.c.0.s8 %v801
      %v803 = vlaneseq
      %v804 = vshrl.u32 %v803, 7
      %v805 = vsub.s32 %v802, %v804
      %v806 = vrot.slane %v798, %v805
      %v808 = vunpack.c.l.s4 1983009808
      %v809 = vunpack.c.0.s8 %v808
      %v810 = vlaneseq
      %v811 = vshrl.u32 %v810, 7
      %v812 = vsub.s32 %v809, %v811
      %v813 = vrot.slane %v799, %v812
      %v814 = vcombine.high %v714, %v729
      %v816 = vunpack.c.l.s4 1983009808
      %v817 = vunpack.c.0.s8 %v816
      %v818 = vlaneseq
      %v819 = vshrl.u32 %v818, 7
      %v820 = vsub.s32 %v817, %v819
      %v821 = vrot.slane %v714, %v820
      %v823 = vunpack.c.l.s4 1983009808
      %v824 = vunpack.c.0.s8 %v823
      %v825 = vlaneseq
      %v826 = vshrl.u32 %v825, 7
      %v827 = vsub.s32 %v824, %v826
      %v828 = vrot.slane %v814, %v827
      %v829 = vcombine.high %v722, %v729
      %v831 = vunpack.c.l.s4 1983009808
      %v832 = vunpack.c.0.s8 %v831
      %v833 = vlaneseq
      %v834 = vshrl.u32 %v833, 7
      %v835 = vsub.s32 %v832, %v834
      %v836 = vrot.slane %v722, %v835
      %v838 = vunpack.c.l.s4 1983009808
      %v839 = vunpack.c.0.s8 %v838
      %v840 = vlaneseq
      %v841 = vshrl.u32 %v840, 7
      %v842 = vsub.s32 %v839, %v841
      %v843 = vrot.slane %v829, %v842
      %v844 = vcombine.low %v790, %v806
      %v845 = vcombine.high %v790, %v806
      %v847 = vunpack.c.l.s4 1934713408
      %v848 = vunpack.c.0.s8 %v847
      %v849 = vlaneseq
      %v850 = vshrl.u32 %v849, 7
      %v851 = vsub.s32 %v848, %v850
      %v852 = vrot.slane %v844, %v851
      %v854 = vunpack.c.l.s4 1934713408
      %v855 = vunpack.c.0.s8 %v854
      %v856 = vlaneseq
      %v857 = vshrl.u32 %v856, 7
      %v858 = vsub.s32 %v855, %v857
      %v859 = vrot.slane %v845, %v858
      %v860 = vcombine.low %v797, %v813
      %v861 = vcombine.high %v797, %v813
      %v863 = vunpack.c.l.s4 1934713408
      %v864 = vunpack.c.0.s8 %v863
      %v865 = vlaneseq
      %v866 = vshrl.u32 %v865, 7
      %v867 = vsub.s32 %v864, %v866
      %v868 = vrot.slane %v860, %v867
      %v870 = vunpack.c.l.s4 1934713408
      %v871 = vunpack.c.0.s8 %v870
      %v872 = vlaneseq
      %v873 = vshrl.u32 %v872, 7
      %v874 = vsub.s32 %v871, %v873
      %v875 = vrot.slane %v861, %v874
      %v876 = vcombine.low %v821, %v836
      %v877 = vcombine.high %v821, %v836
      %v879 = vunpack.c.l.s4 1934713408
      %v880 = vunpack.c.0.s8 %v879
      %v881 = vlaneseq
      %v882 = vshrl.u32 %v881, 7
      %v883 = vsub.s32 %v880, %v882
      %v884 = vrot.slane %v876, %v883
      %v886 = vunpack.c.l.s4 1934713408
      %v887 = vunpack.c.0.s8 %v886
      %v888 = vlaneseq
      %v889 = vshrl.u32 %v888, 7
      %v890 = vsub.s32 %v887, %v889
      %v891 = vrot.slane %v877, %v890
      %v892 = vcombine.low %v828, %v843
      %v893 = vcombine.high %v828, %v843
      %v895 = vunpack.c.l.s4 1934713408
      %v896 = vunpack.c.0.s8 %v895
      %v897 = vlaneseq
      %v898 = vshrl.u32 %v897, 7
      %v899 = vsub.s32 %v896, %v898
      %v900 = vrot.slane %v892, %v899
      %v902 = vunpack.c.l.s4 1934713408
      %v903 = vunpack.c.0.s8 %v902
      %v904 = vlaneseq
      %v905 = vshrl.u32 %v904, 7
      %v906 = vsub.s32 %v903, %v905
      %v907 = vrot.slane %v893, %v906
      %v908 = vcombine.low %v852, %v884
      %v909 = vcombine.high %v852, %v884
      %v910 = vcombine.low %v859, %v891
      %v911 = vcombine.high %v859, %v891
      %v912 = vcombine.low %v868, %v900
      %v913 = vcombine.high %v868, %v900
      %v914 = vcombine.low %v875, %v907
      %v915 = vcombine.high %v875, %v907
      %v916 = vcombine.low %v686, %v702
      %v917 = vcombine.high %v686, %v702
      %v919 = vunpack.c.l.s4 1983009808
      %v920 = vunpack.c.0.s8 %v919
      %v921 = vlaneseq
      %v922 = vshrl.u32 %v921, 7
      %v923 = vsub.s32 %v920, %v922
      %v924 = vrot.slane %v916, %v923
      %v926 = vunpack.c.l.s4 1983009808
      %v927 = vunpack.c.0.s8 %v926
      %v928 = vlaneseq
      %v929 = vshrl.u32 %v928, 7
      %v930 = vsub.s32 %v927, %v929
      %v931 = vrot.slane %v917, %v930
      %v932 = vcombine.low %v694, %v710
      %v933 = vcombine.high %v694, %v710
      %v935 = vunpack.c.l.s4 1983009808
      %v936 = vunpack.c.0.s8 %v935
      %v937 = vlaneseq
      %v938 = vshrl.u32 %v937, 7
      %v939 = vsub.s32 %v936, %v938
      %v940 = vrot.slane %v932, %v939
      %v942 = vunpack.c.l.s4 1983009808
      %v943 = vunpack.c.0.s8 %v942
      %v944 = vlaneseq
      %v945 = vshrl.u32 %v944, 7
      %v946 = vsub.s32 %v943, %v945
      %v947 = vrot.slane %v933, %v946
      %v948 = vcombine.high %v718, %v732
      %v950 = vunpack.c.l.s4 1983009808
      %v951 = vunpack.c.0.s8 %v950
      %v952 = vlaneseq
      %v953 = vshrl.u32 %v952, 7
      %v954 = vsub.s32 %v951, %v953
      %v955 = vrot.slane %v718, %v954
      %v957 = vunpack.c.l.s4 1983009808
      %v958 = vunpack.c.0.s8 %v957
      %v959 = vlaneseq
      %v960 = vshrl.u32 %v959, 7
      %v961 = vsub.s32 %v958, %v960
      %v962 = vrot.slane %v948, %v961
      %v963 = vcombine.high %v726, %v732
      %v965 = vunpack.c.l.s4 1983009808
      %v966 = vunpack.c.0.s8 %v965
      %v967 = vlaneseq
      %v968 = vshrl.u32 %v967, 7
      %v969 = vsub.s32 %v966, %v968
      %v970 = vrot.slane %v726, %v969
      %v972 = vunpack.c.l.s4 1983009808
      %v973 = vunpack.c.0.s8 %v972
      %v974 = vlaneseq
      %v975 = vshrl.u32 %v974, 7
      %v976 = vsub.s32 %v973, %v975
      %v977 = vrot.slane %v963, %v976
      %v978 = vcombine.low %v924, %v940
      %v979 = vcombine.high %v924, %v940
      %v981 = vunpack.c.l.s4 1934713408
      %v982 = vunpack.c.0.s8 %v981
      %v983 = vlaneseq
      %v984 = vshrl.u32 %v983, 7
      %v985 = vsub.s32 %v982, %v984
      %v986 = vrot.slane %v978, %v985
      %v988 = vunpack.c.l.s4 1934713408
      %v989 = vunpack.c.0.s8 %v988
      %v990 = vlaneseq
      %v991 = vshrl.u32 %v990, 7
      %v992 = vsub.s32 %v989, %v991
      %v993 = vrot.slane %v979, %v992
      %v994 = vcombine.low %v931, %v947
      %v995 = vcombine.high %v931, %v947
      %v997 = vunpack.c.l.s4 1934713408
      %v998 = vunpack.c.0.s8 %v997
      %v999 = vlaneseq
      %v1000 = vshrl.u32 %v999, 7
      %v1001 = vsub.s32 %v998, %v1000
      %v1002 = vrot.slane %v994, %v1001
      %v1004 = vunpack.c.l.s4 1934713408
      %v1005 = vunpack.c.0.s8 %v1004
      %v1006 = vlaneseq
      %v1007 = vshrl.u32 %v1006, 7
      %v1008 = vsub.s32 %v1005, %v1007
      %v1009 = vrot.slane %v995, %v1008
      %v1010 = vcombine.low %v955, %v970
      %v1011 = vcombine.high %v955, %v970
      %v1013 = vunpack.c.l.s4 1934713408
      %v1014 = vunpack.c.0.s8 %v1013
      %v1015 = vlaneseq
      %v1016 = vshrl.u32 %v1015, 7
      %v1017 = vsub.s32 %v1014, %v1016
      %v1018 = vrot.slane %v1010, %v1017
      %v1020 = vunpack.c.l.s4 1934713408
      %v1021 = vunpack.c.0.s8 %v1020
      %v1022 = vlaneseq
      %v1023 = vshrl.u32 %v1022, 7
      %v1024 = vsub.s32 %v1021, %v1023
      %v1025 = vrot.slane %v1011, %v1024
      %v1026 = vcombine.low %v962, %v977
      %v1027 = vcombine.high %v962, %v977
      %v1029 = vunpack.c.l.s4 1934713408
      %v1030 = vunpack.c.0.s8 %v1029
      %v1031 = vlaneseq
      %v1032 = vshrl.u32 %v1031, 7
      %v1033 = vsub.s32 %v1030, %v1032
      %v1034 = vrot.slane %v1026, %v1033
      %v1036 = vunpack.c.l.s4 1934713408
      %v1037 = vunpack.c.0.s8 %v1036
      %v1038 = vlaneseq
      %v1039 = vshrl.u32 %v1038, 7
      %v1040 = vsub.s32 %v1037, %v1039
      %v1041 = vrot.slane %v1027, %v1040
      %v1042 = vcombine.low %v986, %v1018
      %v1043 = vcombine.high %v986, %v1018
      %v1044 = vcombine.low %v993, %v1025
      %v1045 = vcombine.high %v993, %v1025
      %v1046 = vcombine.low %v1002, %v1034
      %v1047 = vcombine.high %v1002, %v1034
      %v1048 = vcombine.low %v1009, %v1041
      %v1049 = vcombine.high %v1009, %v1041
      %v1050 = vcombine.low %v736, %v752
      %v1051 = vcombine.high %v736, %v752
      %v1053 = vunpack.c.l.s4 1983009808
      %v1054 = vunpack.c.0.s8 %v1053
      %v1055 = vlaneseq
      %v1056 = vshrl.u32 %v1055, 7
      %v1057 = vsub.s32 %v1054, %v1056
      %v1058 = vrot.slane %v1050, %v1057
      %v1060 = vunpack.c.l.s4 1983009808
      %v1061 = vunpack.c.0.s8 %v1060
      %v1062 = vlaneseq
      %v1063 = vshrl.u32 %v1062, 7
      %v1064 = vsub.s32 %v1061, %v1063
      %v1065 = vrot.slane %v1051, %v1064
      %v1066 = vcombine.low %v744, %v760
      %v1067 = vcombine.high %v744, %v760
      %v1069 = vunpack.c.l.s4 1983009808
      %v1070 = vunpack.c.0.s8 %v1069
      %v1071 = vlaneseq
      %v1072 = vshrl.u32 %v1071, 7
      %v1073 = vsub.s32 %v1070, %v1072
      %v1074 = vrot.slane %v1066, %v1073
      %v1076 = vunpack.c.l.s4 1983009808
      %v1077 = vunpack.c.0.s8 %v1076
      %v1078 = vlaneseq
      %v1079 = vshrl.u32 %v1078, 7
      %v1080 = vsub.s32 %v1077, %v1079
      %v1081 = vrot.slane %v1067, %v1080
      %v1082 = vcombine.high %v768, %v729
      %v1084 = vunpack.c.l.s4 1983009808
      %v1085 = vunpack.c.0.s8 %v1084
      %v1086 = vlaneseq
      %v1087 = vshrl.u32 %v1086, 7
      %v1088 = vsub.s32 %v1085, %v1087
      %v1089 = vrot.slane %v768, %v1088
      %v1091 = vunpack.c.l.s4 1983009808
      %v1092 = vunpack.c.0.s8 %v1091
      %v1093 = vlaneseq
      %v1094 = vshrl.u32 %v1093, 7
      %v1095 = vsub.s32 %v1092, %v1094
      %v1096 = vrot.slane %v1082, %v1095
      %v1097 = vcombine.high %v776, %v729
      %v1099 = vunpack.c.l.s4 1983009808
      %v1100 = vunpack.c.0.s8 %v1099
      %v1101 = vlaneseq
      %v1102 = vshrl.u32 %v1101, 7
      %v1103 = vsub.s32 %v1100, %v1102
      %v1104 = vrot.slane %v776, %v1103
      %v1106 = vunpack.c.l.s4 1983009808
      %v1107 = vunpack.c.0.s8 %v1106
      %v1108 = vlaneseq
      %v1109 = vshrl.u32 %v1108, 7
      %v1110 = vsub.s32 %v1107, %v1109
      %v1111 = vrot.slane %v1097, %v1110
      %v1112 = vcombine.low %v1058, %v1074
      %v1113 = vcombine.high %v1058, %v1074
      %v1115 = vunpack.c.l.s4 1934713408
      %v1116 = vunpack.c.0.s8 %v1115
      %v1117 = vlaneseq
      %v1118 = vshrl.u32 %v1117, 7
      %v1119 = vsub.s32 %v1116, %v1118
      %v1120 = vrot.slane %v1112, %v1119
      %v1122 = vunpack.c.l.s4 1934713408
      %v1123 = vunpack.c.0.s8 %v1122
      %v1124 = vlaneseq
      %v1125 = vshrl.u32 %v1124, 7
      %v1126 = vsub.s32 %v1123, %v1125
      %v1127 = vrot.slane %v1113, %v1126
      %v1128 = vcombine.low %v1065, %v1081
      %v1129 = vcombine.high %v1065, %v1081
      %v1131 = vunpack.c.l.s4 1934713408
      %v1132 = vunpack.c.0.s8 %v1131
      %v1133 = vlaneseq
      %v1134 = vshrl.u32 %v1133, 7
      %v1135 = vsub.s32 %v1132, %v1134
      %v1136 = vrot.slane %v1128, %v1135
      %v1138 = vunpack.c.l.s4 1934713408
      %v1139 = vunpack.c.0.s8 %v1138
      %v1140 = vlaneseq
      %v1141 = vshrl.u32 %v1140, 7
      %v1142 = vsub.s32 %v1139, %v1141
      %v1143 = vrot.slane %v1129, %v1142
      %v1144 = vcombine.low %v1089, %v1104
      %v1145 = vcombine.high %v1089, %v1104
      %v1147 = vunpack.c.l.s4 1934713408
      %v1148 = vunpack.c.0.s8 %v1147
      %v1149 = vlaneseq
      %v1150 = vshrl.u32 %v1149, 7
      %v1151 = vsub.s32 %v1148, %v1150
      %v1152 = vrot.slane %v1144, %v1151
      %v1154 = vunpack.c.l.s4 1934713408
      %v1155 = vunpack.c.0.s8 %v1154
      %v1156 = vlaneseq
      %v1157 = vshrl.u32 %v1156, 7
      %v1158 = vsub.s32 %v1155, %v1157
      %v1159 = vrot.slane %v1145, %v1158
      %v1160 = vcombine.low %v1096, %v1111
      %v1161 = vcombine.high %v1096, %v1111
      %v1163 = vunpack.c.l.s4 1934713408
      %v1164 = vunpack.c.0.s8 %v1163
      %v1165 = vlaneseq
      %v1166 = vshrl.u32 %v1165, 7
      %v1167 = vsub.s32 %v1164, %v1166
      %v1168 = vrot.slane %v1160, %v1167
      %v1170 = vunpack.c.l.s4 1934713408
      %v1171 = vunpack.c.0.s8 %v1170
      %v1172 = vlaneseq
      %v1173 = vshrl.u32 %v1172, 7
      %v1174 = vsub.s32 %v1171, %v1173
      %v1175 = vrot.slane %v1161, %v1174
      %v1176 = vcombine.low %v1120, %v1152
      %v1177 = vcombine.high %v1120, %v1152
      %v1178 = vcombine.low %v1127, %v1159
      %v1179 = vcombine.high %v1127, %v1159
      %v1180 = vcombine.low %v1136, %v1168
      %v1181 = vcombine.high %v1136, %v1168
      %v1182 = vcombine.low %v1143, %v1175
      %v1183 = vcombine.high %v1143, %v1175
      %v1184 = vcombine.low %v740, %v756
      %v1185 = vcombine.high %v740, %v756
      %v1187 = vunpack.c.l.s4 1983009808
      %v1188 = vunpack.c.0.s8 %v1187
      %v1189 = vlaneseq
      %v1190 = vshrl.u32 %v1189, 7
      %v1191 = vsub.s32 %v1188, %v1190
      %v1192 = vrot.slane %v1184, %v1191
      %v1194 = vunpack.c.l.s4 1983009808
      %v1195 = vunpack.c.0.s8 %v1194
      %v1196 = vlaneseq
      %v1197 = vshrl.u32 %v1196, 7
      %v1198 = vsub.s32 %v1195, %v1197
      %v1199 = vrot.slane %v1185, %v1198
      %v1200 = vcombine.low %v748, %v764
      %v1201 = vcombine.high %v748, %v764
      %v1203 = vunpack.c.l.s4 1983009808
      %v1204 = vunpack.c.0.s8 %v1203
      %v1205 = vlaneseq
      %v1206 = vshrl.u32 %v1205, 7
      %v1207 = vsub.s32 %v1204, %v1206
      %v1208 = vrot.slane %v1200, %v1207
      %v1210 = vunpack.c.l.s4 1983009808
      %v1211 = vunpack.c.0.s8 %v1210
      %v1212 = vlaneseq
      %v1213 = vshrl.u32 %v1212, 7
      %v1214 = vsub.s32 %v1211, %v1213
      %v1215 = vrot.slane %v1201, %v1214
      %v1216 = vcombine.high %v772, %v732
      %v1218 = vunpack.c.l.s4 1983009808
      %v1219 = vunpack.c.0.s8 %v1218
      %v1220 = vlaneseq
      %v1221 = vshrl.u32 %v1220, 7
      %v1222 = vsub.s32 %v1219, %v1221
      %v1223 = vrot.slane %v772, %v1222
      %v1225 = vunpack.c.l.s4 1983009808
      %v1226 = vunpack.c.0.s8 %v1225
      %v1227 = vlaneseq
      %v1228 = vshrl.u32 %v1227, 7
      %v1229 = vsub.s32 %v1226, %v1228
      %v1230 = vrot.slane %v1216, %v1229
      %v1231 = vcombine.high %v780, %v732
      %v1233 = vunpack.c.l.s4 1983009808
      %v1234 = vunpack.c.0.s8 %v1233
      %v1235 = vlaneseq
      %v1236 = vshrl.u32 %v1235, 7
      %v1237 = vsub.s32 %v1234, %v1236
      %v1238 = vrot.slane %v780, %v1237
      %v1240 = vunpack.c.l.s4 1983009808
      %v1241 = vunpack.c.0.s8 %v1240
      %v1242 = vlaneseq
      %v1243 = vshrl.u32 %v1242, 7
      %v1244 = vsub.s32 %v1241, %v1243
      %v1245 = vrot.slane %v1231, %v1244
      %v1246 = vcombine.low %v1192, %v1208
      %v1247 = vcombine.high %v1192, %v1208
      %v1249 = vunpack.c.l.s4 1934713408
      %v1250 = vunpack.c.0.s8 %v1249
      %v1251 = vlaneseq
      %v1252 = vshrl.u32 %v1251, 7
      %v1253 = vsub.s32 %v1250, %v1252
      %v1254 = vrot.slane %v1246, %v1253
      %v1256 = vunpack.c.l.s4 1934713408
      %v1257 = vunpack.c.0.s8 %v1256
      %v1258 = vlaneseq
      %v1259 = vshrl.u32 %v1258, 7
      %v1260 = vsub.s32 %v1257, %v1259
      %v1261 = vrot.slane %v1247, %v1260
      %v1262 = vcombine.low %v1199, %v1215
      %v1263 = vcombine.high %v1199, %v1215
      %v1265 = vunpack.c.l.s4 1934713408
      %v1266 = vunpack.c.0.s8 %v1265
      %v1267 = vlaneseq
      %v1268 = vshrl.u32 %v1267, 7
      %v1269 = vsub.s32 %v1266, %v1268
      %v1270 = vrot.slane %v1262, %v1269
      %v1272 = vunpack.c.l.s4 1934713408
      %v1273 = vunpack.c.0.s8 %v1272
      %v1274 = vlaneseq
      %v1275 = vshrl.u32 %v1274, 7
      %v1276 = vsub.s32 %v1273, %v1275
      %v1277 = vrot.slane %v1263, %v1276
      %v1278 = vcombine.low %v1223, %v1238
      %v1279 = vcombine.high %v1223, %v1238
      %v1281 = vunpack.c.l.s4 1934713408
      %v1282 = vunpack.c.0.s8 %v1281
      %v1283 = vlaneseq
      %v1284 = vshrl.u32 %v1283, 7
      %v1285 = vsub.s32 %v1282, %v1284
      %v1286 = vrot.slane %v1278, %v1285
      %v1288 = vunpack.c.l.s4 1934713408
      %v1289 = vunpack.c.0.s8 %v1288
      %v1290 = vlaneseq
      %v1291 = vshrl.u32 %v1290, 7
      %v1292 = vsub.s32 %v1289, %v1291
      %v1293 = vrot.slane %v1279, %v1292
      %v1294 = vcombine.low %v1230, %v1245
      %v1295 = vcombine.high %v1230, %v1245
      %v1297 = vunpack.c.l.s4 1934713408
      %v1298 = vunpack.c.0.s8 %v1297
      %v1299 = vlaneseq
      %v1300 = vshrl.u32 %v1299, 7
      %v1301 = vsub.s32 %v1298, %v1300
      %v1302 = vrot.slane %v1294, %v1301
      %v1304 = vunpack.c.l.s4 1934713408
      %v1305 = vunpack.c.0.s8 %v1304
      %v1306 = vlaneseq
      %v1307 = vshrl.u32 %v1306, 7
      %v1308 = vsub.s32 %v1305, %v1307
      %v1309 = vrot.slane %v1295, %v1308
      %v1310 = vcombine.low %v1254, %v1286
      %v1311 = vcombine.high %v1254, %v1286
      %v1312 = vcombine.low %v1261, %v1293
      %v1313 = vcombine.high %v1261, %v1293
      %v1314 = vcombine.low %v1270, %v1302
      %v1315 = vcombine.high %v1270, %v1302
      %v1316 = vcombine.low %v1277, %v1309
      %v1317 = vcombine.high %v1277, %v1309
      %v1318 = vcombine.low %v908, %v910
      %v1319 = vcombine.high %v908, %v910
      %v1321 = vunpack.c.l.s4 1983009808
      %v1322 = vunpack.c.0.s8 %v1321
      %v1323 = vlaneseq
      %v1324 = vshrl.u32 %v1323, 7
      %v1325 = vsub.s32 %v1322, %v1324
      %v1326 = vrot.slane %v1318, %v1325
      %v1328 = vunpack.c.l.s4 1983009808
      %v1329 = vunpack.c.0.s8 %v1328
      %v1330 = vlaneseq
      %v1331 = vshrl.u32 %v1330, 7
      %v1332 = vsub.s32 %v1329, %v1331
      %v1333 = vrot.slane %v1319, %v1332
      %v1334 = vcombine.low %v909, %v911
      %v1335 = vcombine.high %v909, %v911
      %v1337 = vunpack.c.l.s4 1983009808
      %v1338 = vunpack.c.0.s8 %v1337
      %v1339 = vlaneseq
      %v1340 = vshrl.u32 %v1339, 7
      %v1341 = vsub.s32 %v1338, %v1340
      %v1342 = vrot.slane %v1334, %v1341
      %v1344 = vunpack.c.l.s4 1983009808
      %v1345 = vunpack.c.0.s8 %v1344
      %v1346 = vlaneseq
      %v1347 = vshrl.u32 %v1346, 7
      %v1348 = vsub.s32 %v1345, %v1347
      %v1349 = vrot.slane %v1335, %v1348
      %v1350 = vcombine.low %v912, %v914
      %v1351 = vcombine.high %v912, %v914
      %v1353 = vunpack.c.l.s4 1983009808
      %v1354 = vunpack.c.0.s8 %v1353
      %v1355 = vlaneseq
      %v1356 = vshrl.u32 %v1355, 7
      %v1357 = vsub.s32 %v1354, %v1356
      %v1358 = vrot.slane %v1350, %v1357
      %v1360 = vunpack.c.l.s4 1983009808
      %v1361 = vunpack.c.0.s8 %v1360
      %v1362 = vlaneseq
      %v1363 = vshrl.u32 %v1362, 7
      %v1364 = vsub.s32 %v1361, %v1363
      %v1365 = vrot.slane %v1351, %v1364
      %v1366 = vcombine.low %v913, %v915
      %v1367 = vcombine.high %v913, %v915
      %v1369 = vunpack.c.l.s4 1983009808
      %v1370 = vunpack.c.0.s8 %v1369
      %v1371 = vlaneseq
      %v1372 = vshrl.u32 %v1371, 7
      %v1373 = vsub.s32 %v1370, %v1372
      %v1374 = vrot.slane %v1366, %v1373
      %v1376 = vunpack.c.l.s4 1983009808
      %v1377 = vunpack.c.0.s8 %v1376
      %v1378 = vlaneseq
      %v1379 = vshrl.u32 %v1378, 7
      %v1380 = vsub.s32 %v1377, %v1379
      %v1381 = vrot.slane %v1367, %v1380
      %v1382 = vcombine.low %v1326, %v1342
      %v1383 = vcombine.high %v1326, %v1342
      %v1385 = vunpack.c.l.s4 1934713408
      %v1386 = vunpack.c.0.s8 %v1385
      %v1387 = vlaneseq
      %v1388 = vshrl.u32 %v1387, 7
      %v1389 = vsub.s32 %v1386, %v1388
      %v1390 = vrot.slane %v1382, %v1389
      %v1392 = vunpack.c.l.s4 1934713408
      %v1393 = vunpack.c.0.s8 %v1392
      %v1394 = vlaneseq
      %v1395 = vshrl.u32 %v1394, 7
      %v1396 = vsub.s32 %v1393, %v1395
      %v1397 = vrot.slane %v1383, %v1396
      %v1398 = vcombine.low %v1333, %v1349
      %v1400 = vunpack.c.l.s4 1934713408
      %v1401 = vunpack.c.0.s8 %v1400
      %v1402 = vlaneseq
      %v1403 = vshrl.u32 %v1402, 7
      %v1404 = vsub.s32 %v1401, %v1403
      %v1405 = vrot.slane %v1398, %v1404
      %v1406 = vcombine.low %v1358, %v1374
      %v1407 = vcombine.high %v1358, %v1374
      %v1409 = vunpack.c.l.s4 1934713408
      %v1410 = vunpack.c.0.s8 %v1409
      %v1411 = vlaneseq
      %v1412 = vshrl.u32 %v1411, 7
      %v1413 = vsub.s32 %v1410, %v1412
      %v1414 = vrot.slane %v1406, %v1413
      %v1416 = vunpack.c.l.s4 1934713408
      %v1417 = vunpack.c.0.s8 %v1416
      %v1418 = vlaneseq
      %v1419 = vshrl.u32 %v1418, 7
      %v1420 = vsub.s32 %v1417, %v1419
      %v1421 = vrot.slane %v1407, %v1420
      %v1422 = vcombine.low %v1365, %v1381
      %v1424 = vunpack.c.l.s4 1934713408
      %v1425 = vunpack.c.0.s8 %v1424
      %v1426 = vlaneseq
      %v1427 = vshrl.u32 %v1426, 7
      %v1428 = vsub.s32 %v1425, %v1427
      %v1429 = vrot.slane %v1422, %v1428
      %v1430 = vcombine.low %v1390, %v1414
      %v1431 = vcombine.high %v1390, %v1414
      %v1432 = vcombine.low %v1397, %v1421
      %v1433 = vcombine.high %v1397, %v1421
      %v1434 = vcombine.low %v1405, %v1429
      %v1435 = vcombine.high %v1405, %v1429
      %v1436 = vcombine.low %v1042, %v1044
      %v1437 = vcombine.high %v1042, %v1044
      %v1439 = vunpack.c.l.s4 1983009808
      %v1440 = vunpack.c.0.s8 %v1439
      %v1441 = vlaneseq
      %v1442 = vshrl.u32 %v1441, 7
      %v1443 = vsub.s32 %v1440, %v1442
      %v1444 = vrot.slane %v1436, %v1443
      %v1446 = vunpack.c.l.s4 1983009808
      %v1447 = vunpack.c.0.s8 %v1446
      %v1448 = vlaneseq
      %v1449 = vshrl.u32 %v1448, 7
      %v1450 = vsub.s32 %v1447, %v1449
      %v1451 = vrot.slane %v1437, %v1450
      %v1452 = vcombine.low %v1043, %v1045
      %v1453 = vcombine.high %v1043, %v1045
      %v1455 = vunpack.c.l.s4 1983009808
      %v1456 = vunpack.c.0.s8 %v1455
      %v1457 = vlaneseq
      %v1458 = vshrl.u32 %v1457, 7
      %v1459 = vsub.s32 %v1456, %v1458
      %v1460 = vrot.slane %v1452, %v1459
      %v1462 = vunpack.c.l.s4 1983009808
      %v1463 = vunpack.c.0.s8 %v1462
      %v1464 = vlaneseq
      %v1465 = vshrl.u32 %v1464, 7
      %v1466 = vsub.s32 %v1463, %v1465
      %v1467 = vrot.slane %v1453, %v1466
      %v1468 = vcombine.low %v1046, %v1048
      %v1469 = vcombine.high %v1046, %v1048
      %v1471 = vunpack.c.l.s4 1983009808
      %v1472 = vunpack.c.0.s8 %v1471
      %v1473 = vlaneseq
      %v1474 = vshrl.u32 %v1473, 7
      %v1475 = vsub.s32 %v1472, %v1474
      %v1476 = vrot.slane %v1468, %v1475
      %v1478 = vunpack.c.l.s4 1983009808
      %v1479 = vunpack.c.0.s8 %v1478
      %v1480 = vlaneseq
      %v1481 = vshrl.u32 %v1480, 7
      %v1482 = vsub.s32 %v1479, %v1481
      %v1483 = vrot.slane %v1469, %v1482
      %v1484 = vcombine.low %v1047, %v1049
      %v1485 = vcombine.high %v1047, %v1049
      %v1487 = vunpack.c.l.s4 1983009808
      %v1488 = vunpack.c.0.s8 %v1487
      %v1489 = vlaneseq
      %v1490 = vshrl.u32 %v1489, 7
      %v1491 = vsub.s32 %v1488, %v1490
      %v1492 = vrot.slane %v1484, %v1491
      %v1494 = vunpack.c.l.s4 1983009808
      %v1495 = vunpack.c.0.s8 %v1494
      %v1496 = vlaneseq
      %v1497 = vshrl.u32 %v1496, 7
      %v1498 = vsub.s32 %v1495, %v1497
      %v1499 = vrot.slane %v1485, %v1498
      %v1500 = vcombine.low %v1444, %v1460
      %v1501 = vcombine.high %v1444, %v1460
      %v1503 = vunpack.c.l.s4 1934713408
      %v1504 = vunpack.c.0.s8 %v1503
      %v1505 = vlaneseq
      %v1506 = vshrl.u32 %v1505, 7
      %v1507 = vsub.s32 %v1504, %v1506
      %v1508 = vrot.slane %v1500, %v1507
      %v1510 = vunpack.c.l.s4 1934713408
      %v1511 = vunpack.c.0.s8 %v1510
      %v1512 = vlaneseq
      %v1513 = vshrl.u32 %v1512, 7
      %v1514 = vsub.s32 %v1511, %v1513
      %v1515 = vrot.slane %v1501, %v1514
      %v1516 = vcombine.low %v1451, %v1467
      %v1518 = vunpack.c.l.s4 1934713408
      %v1519 = vunpack.c.0.s8 %v1518
      %v1520 = vlaneseq
      %v1521 = vshrl.u32 %v1520, 7
      %v1522 = vsub.s32 %v1519, %v1521
      %v1523 = vrot.slane %v1516, %v1522
      %v1524 = vcombine.low %v1476, %v1492
      %v1525 = vcombine.high %v1476, %v1492
      %v1527 = vunpack.c.l.s4 1934713408
      %v1528 = vunpack.c.0.s8 %v1527
      %v1529 = vlaneseq
      %v1530 = vshrl.u32 %v1529, 7
      %v1531 = vsub.s32 %v1528, %v1530
      %v1532 = vrot.slane %v1524, %v1531
      %v1534 = vunpack.c.l.s4 1934713408
      %v1535 = vunpack.c.0.s8 %v1534
      %v1536 = vlaneseq
      %v1537 = vshrl.u32 %v1536, 7
      %v1538 = vsub.s32 %v1535, %v1537
      %v1539 = vrot.slane %v1525, %v1538
      %v1540 = vcombine.low %v1483, %v1499
      %v1542 = vunpack.c.l.s4 1934713408
      %v1543 = vunpack.c.0.s8 %v1542
      %v1544 = vlaneseq
      %v1545 = vshrl.u32 %v1544, 7
      %v1546 = vsub.s32 %v1543, %v1545
      %v1547 = vrot.slane %v1540, %v1546
      %v1548 = vcombine.low %v1508, %v1532
      %v1549 = vcombine.high %v1508, %v1532
      %v1550 = vcombine.low %v1515, %v1539
      %v1551 = vcombine.high %v1515, %v1539
      %v1552 = vcombine.low %v1523, %v1547
      %v1553 = vcombine.high %v1523, %v1547
      %v1554 = vcombine.low %v1176, %v1178
      %v1555 = vcombine.high %v1176, %v1178
      %v1557 = vunpack.c.l.s4 1983009808
      %v1558 = vunpack.c.0.s8 %v1557
      %v1559 = vlaneseq
      %v1560 = vshrl.u32 %v1559, 7
      %v1561 = vsub.s32 %v1558, %v1560
      %v1562 = vrot.slane %v1554, %v1561
      %v1564 = vunpack.c.l.s4 1983009808
      %v1565 = vunpack.c.0.s8 %v1564
      %v1566 = vlaneseq
      %v1567 = vshrl.u32 %v1566, 7
      %v1568 = vsub.s32 %v1565, %v1567
      %v1569 = vrot.slane %v1555, %v1568
      %v1570 = vcombine.low %v1177, %v1179
      %v1571 = vcombine.high %v1177, %v1179
      %v1573 = vunpack.c.l.s4 1983009808
      %v1574 = vunpack.c.0.s8 %v1573
      %v1575 = vlaneseq
      %v1576 = vshrl.u32 %v1575, 7
      %v1577 = vsub.s32 %v1574, %v1576
      %v1578 = vrot.slane %v1570, %v1577
      %v1580 = vunpack.c.l.s4 1983009808
      %v1581 = vunpack.c.0.s8 %v1580
      %v1582 = vlaneseq
      %v1583 = vshrl.u32 %v1582, 7
      %v1584 = vsub.s32 %v1581, %v1583
      %v1585 = vrot.slane %v1571, %v1584
      %v1586 = vcombine.low %v1180, %v1182
      %v1587 = vcombine.high %v1180, %v1182
      %v1589 = vunpack.c.l.s4 1983009808
      %v1590 = vunpack.c.0.s8 %v1589
      %v1591 = vlaneseq
      %v1592 = vshrl.u32 %v1591, 7
      %v1593 = vsub.s32 %v1590, %v1592
      %v1594 = vrot.slane %v1586, %v1593
      %v1596 = vunpack.c.l.s4 1983009808
      %v1597 = vunpack.c.0.s8 %v1596
      %v1598 = vlaneseq
      %v1599 = vshrl.u32 %v1598, 7
      %v1600 = vsub.s32 %v1597, %v1599
      %v1601 = vrot.slane %v1587, %v1600
      %v1602 = vcombine.low %v1181, %v1183
      %v1603 = vcombine.high %v1181, %v1183
      %v1605 = vunpack.c.l.s4 1983009808
      %v1606 = vunpack.c.0.s8 %v1605
      %v1607 = vlaneseq
      %v1608 = vshrl.u32 %v1607, 7
      %v1609 = vsub.s32 %v1606, %v1608
      %v1610 = vrot.slane %v1602, %v1609
      %v1612 = vunpack.c.l.s4 1983009808
      %v1613 = vunpack.c.0.s8 %v1612
      %v1614 = vlaneseq
      %v1615 = vshrl.u32 %v1614, 7
      %v1616 = vsub.s32 %v1613, %v1615
      %v1617 = vrot.slane %v1603, %v1616
      %v1618 = vcombine.low %v1562, %v1578
      %v1619 = vcombine.high %v1562, %v1578
      %v1621 = vunpack.c.l.s4 1934713408
      %v1622 = vunpack.c.0.s8 %v1621
      %v1623 = vlaneseq
      %v1624 = vshrl.u32 %v1623, 7
      %v1625 = vsub.s32 %v1622, %v1624
      %v1626 = vrot.slane %v1618, %v1625
      %v1628 = vunpack.c.l.s4 1934713408
      %v1629 = vunpack.c.0.s8 %v1628
      %v1630 = vlaneseq
      %v1631 = vshrl.u32 %v1630, 7
      %v1632 = vsub.s32 %v1629, %v1631
      %v1633 = vrot.slane %v1619, %v1632
      %v1634 = vcombine.low %v1569, %v1585
      %v1636 = vunpack.c.l.s4 1934713408
      %v1637 = vunpack.c.0.s8 %v1636
      %v1638 = vlaneseq
      %v1639 = vshrl.u32 %v1638, 7
      %v1640 = vsub.s32 %v1637, %v1639
      %v1641 = vrot.slane %v1634, %v1640
      %v1642 = vcombine.low %v1594, %v1610
      %v1643 = vcombine.high %v1594, %v1610
      %v1645 = vunpack.c.l.s4 1934713408
      %v1646 = vunpack.c.0.s8 %v1645
      %v1647 = vlaneseq
      %v1648 = vshrl.u32 %v1647, 7
      %v1649 = vsub.s32 %v1646, %v1648
      %v1650 = vrot.slane %v1642, %v1649
      %v1652 = vunpack.c.l.s4 1934713408
      %v1653 = vunpack.c.0.s8 %v1652
      %v1654 = vlaneseq
      %v1655 = vshrl.u32 %v1654, 7
      %v1656 = vsub.s32 %v1653, %v1655
      %v1657 = vrot.slane %v1643, %v1656
      %v1658 = vcombine.low %v1601, %v1617
      %v1660 = vunpack.c.l.s4 1934713408
      %v1661 = vunpack.c.0.s8 %v1660
      %v1662 = vlaneseq
      %v1663 = vshrl.u32 %v1662, 7
      %v1664 = vsub.s32 %v1661, %v1663
      %v1665 = vrot.slane %v1658, %v1664
      %v1666 = vcombine.low %v1626, %v1650
      %v1667 = vcombine.high %v1626, %v1650
      %v1668 = vcombine.low %v1633, %v1657
      %v1669 = vcombine.high %v1633, %v1657
      %v1670 = vcombine.low %v1641, %v1665
      %v1671 = vcombine.high %v1641, %v1665
      %v1672 = vcombine.low %v1310, %v1312
      %v1673 = vcombine.high %v1310, %v1312
      %v1675 = vunpack.c.l.s4 1983009808
      %v1676 = vunpack.c.0.s8 %v1675
      %v1677 = vlaneseq
      %v1678 = vshrl.u32 %v1677, 7
      %v1679 = vsub.s32 %v1676, %v1678
      %v1680 = vrot.slane %v1672, %v1679
      %v1682 = vunpack.c.l.s4 1983009808
      %v1683 = vunpack.c.0.s8 %v1682
      %v1684 = vlaneseq
      %v1685 = vshrl.u32 %v1684, 7
      %v1686 = vsub.s32 %v1683, %v1685
      %v1687 = vrot.slane %v1673, %v1686
      %v1688 = vcombine.low %v1311, %v1313
      %v1689 = vcombine.high %v1311, %v1313
      %v1691 = vunpack.c.l.s4 1983009808
      %v1692 = vunpack.c.0.s8 %v1691
      %v1693 = vlaneseq
      %v1694 = vshrl.u32 %v1693, 7
      %v1695 = vsub.s32 %v1692, %v1694
      %v1696 = vrot.slane %v1688, %v1695
      %v1698 = vunpack.c.l.s4 1983009808
      %v1699 = vunpack.c.0.s8 %v1698
      %v1700 = vlaneseq
      %v1701 = vshrl.u32 %v1700, 7
      %v1702 = vsub.s32 %v1699, %v1701
      %v1703 = vrot.slane %v1689, %v1702
      %v1704 = vcombine.low %v1314, %v1316
      %v1705 = vcombine.high %v1314, %v1316
      %v1707 = vunpack.c.l.s4 1983009808
      %v1708 = vunpack.c.0.s8 %v1707
      %v1709 = vlaneseq
      %v1710 = vshrl.u32 %v1709, 7
      %v1711 = vsub.s32 %v1708, %v1710
      %v1712 = vrot.slane %v1704, %v1711
      %v1714 = vunpack.c.l.s4 1983009808
      %v1715 = vunpack.c.0.s8 %v1714
      %v1716 = vlaneseq
      %v1717 = vshrl.u32 %v1716, 7
      %v1718 = vsub.s32 %v1715, %v1717
      %v1719 = vrot.slane %v1705, %v1718
      %v1720 = vcombine.low %v1315, %v1317
      %v1721 = vcombine.high %v1315, %v1317
      %v1723 = vunpack.c.l.s4 1983009808
      %v1724 = vunpack.c.0.s8 %v1723
      %v1725 = vlaneseq
      %v1726 = vshrl.u32 %v1725, 7
      %v1727 = vsub.s32 %v1724, %v1726
      %v1728 = vrot.slane %v1720, %v1727
      %v1730 = vunpack.c.l.s4 1983009808
      %v1731 = vunpack.c.0.s8 %v1730
      %v1732 = vlaneseq
      %v1733 = vshrl.u32 %v1732, 7
      %v1734 = vsub.s32 %v1731, %v1733
      %v1735 = vrot.slane %v1721, %v1734
      %v1736 = vcombine.low %v1680, %v1696
      %v1737 = vcombine.high %v1680, %v1696
      %v1739 = vunpack.c.l.s4 1934713408
      %v1740 = vunpack.c.0.s8 %v1739
      %v1741 = vlaneseq
      %v1742 = vshrl.u32 %v1741, 7
      %v1743 = vsub.s32 %v1740, %v1742
      %v1744 = vrot.slane %v1736, %v1743
      %v1746 = vunpack.c.l.s4 1934713408
      %v1747 = vunpack.c.0.s8 %v1746
      %v1748 = vlaneseq
      %v1749 = vshrl.u32 %v1748, 7
      %v1750 = vsub.s32 %v1747, %v1749
      %v1751 = vrot.slane %v1737, %v1750
      %v1752 = vcombine.low %v1687, %v1703
      %v1754 = vunpack.c.l.s4 1934713408
      %v1755 = vunpack.c.0.s8 %v1754
      %v1756 = vlaneseq
      %v1757 = vshrl.u32 %v1756, 7
      %v1758 = vsub.s32 %v1755, %v1757
      %v1759 = vrot.slane %v1752, %v1758
      %v1760 = vcombine.low %v1712, %v1728
      %v1761 = vcombine.high %v1712, %v1728
      %v1763 = vunpack.c.l.s4 1934713408
      %v1764 = vunpack.c.0.s8 %v1763
      %v1765 = vlaneseq
      %v1766 = vshrl.u32 %v1765, 7
      %v1767 = vsub.s32 %v1764, %v1766
      %v1768 = vrot.slane %v1760, %v1767
      %v1770 = vunpack.c.l.s4 1934713408
      %v1771 = vunpack.c.0.s8 %v1770
      %v1772 = vlaneseq
      %v1773 = vshrl.u32 %v1772, 7
      %v1774 = vsub.s32 %v1771, %v1773
      %v1775 = vrot.slane %v1761, %v1774
      %v1776 = vcombine.low %v1719, %v1735
      %v1778 = vunpack.c.l.s4 1934713408
      %v1779 = vunpack.c.0.s8 %v1778
      %v1780 = vlaneseq
      %v1781 = vshrl.u32 %v1780, 7
      %v1782 = vsub.s32 %v1779, %v1781
      %v1783 = vrot.slane %v1776, %v1782
      %v1784 = vcombine.low %v1744, %v1768
      %v1785 = vcombine.high %v1744, %v1768
      %v1786 = vcombine.low %v1751, %v1775
      %v1787 = vcombine.high %v1751, %v1775
      %v1788 = vcombine.low %v1759, %v1783
      %v1789 = vcombine.high %v1759, %v1783
      %v1792 = vpack.i.b16 %v1548, %v1430
      %v1793 = vshrl.u32 %v1430, 16
      %v1794 = vshrl.u32 %v1548, 16
      %v1795 = vpack.i.b16 %v1794, %v1793
      %v1798 = vpack.i.b16 %v1549, %v1431
      %v1799 = vshrl.u32 %v1431, 16
      %v1800 = vshrl.u32 %v1549, 16
      %v1801 = vpack.i.b16 %v1800, %v1799
      %v1804 = vpack.i.b16 %v1550, %v1432
      %v1805 = vshrl.u32 %v1432, 16
      %v1806 = vshrl.u32 %v1550, 16
      %v1807 = vpack.i.b16 %v1806, %v1805
      %v1810 = vpack.i.b16 %v1551, %v1433
      %v1811 = vshrl.u32 %v1433, 16
      %v1812 = vshrl.u32 %v1551, 16
      %v1813 = vpack.i.b16 %v1812, %v1811
      %v1816 = vpack.i.b16 %v1552, %v1434
      %v1817 = vshrl.u32 %v1434, 16
      %v1818 = vshrl.u32 %v1552, 16
      %v1819 = vpack.i.b16 %v1818, %v1817
      %v1822 = vpack.i.b16 %v1553, %v1435
      %v1823 = vshrl.u32 %v1435, 16
      %v1824 = vshrl.u32 %v1553, 16
      %v1825 = vpack.i.b16 %v1824, %v1823
      %v1828 = vpack.i.b16 %v1784, %v1666
      %v1829 = vshrl.u32 %v1666, 16
      %v1830 = vshrl.u32 %v1784, 16
      %v1831 = vpack.i.b16 %v1830, %v1829
      %v1834 = vpack.i.b16 %v1785, %v1667
      %v1835 = vshrl.u32 %v1667, 16
      %v1836 = vshrl.u32 %v1785, 16
      %v1837 = vpack.i.b16 %v1836, %v1835
      %v1840 = vpack.i.b16 %v1786, %v1668
      %v1841 = vshrl.u32 %v1668, 16
      %v1842 = vshrl.u32 %v1786, 16
      %v1843 = vpack.i.b16 %v1842, %v1841
      %v1846 = vpack.i.b16 %v1787, %v1669
      %v1847 = vshrl.u32 %v1669, 16
      %v1848 = vshrl.u32 %v1787, 16
      %v1849 = vpack.i.b16 %v1848, %v1847
      %v1852 = vpack.i.b16 %v1788, %v1670
      %v1853 = vshrl.u32 %v1670, 16
      %v1854 = vshrl.u32 %v1788, 16
      %v1855 = vpack.i.b16 %v1854, %v1853
      %v1858 = vpack.i.b16 %v1789, %v1671
      %v1859 = vshrl.u32 %v1671, 16
      %v1860 = vshrl.u32 %v1789, 16
      %v1861 = vpack.i.b16 %v1860, %v1859
      %v1862 = vunpack.c.l.b16 %v1792
      %v1863 = vunpack.c.h.b16 %v1792
      %v1864 = vunpack.c.l.b16 %v1828
      %v1865 = vunpack.c.h.b16 %v1828
      %v1866 = vunpack.c.l.b16 %v1795
      %v1867 = vunpack.c.h.b16 %v1795
      %v1868 = vunpack.c.l.b16 %v1831
      %v1869 = vunpack.c.h.b16 %v1831
      %v1870 = vunpack.c.l.b16 %v1798
      %v1871 = vunpack.c.h.b16 %v1798
      %v1872 = vunpack.c.l.b16 %v1834
      %v1873 = vunpack.c.h.b16 %v1834
      %v1874 = vunpack.c.l.b16 %v1801
      %v1875 = vunpack.c.h.b16 %v1801
      %v1876 = vunpack.c.l.b16 %v1837
      %v1877 = vunpack.c.h.b16 %v1837
      %v1878 = vpack.c.b16 %v1862, %v1862
      %v1879 = vpack.c.b16 %v1863, %v1863
      %v1880 = vpack.c.b16 %v1864, %v1864
      %v1881 = vpack.c.b16 %v1865, %v1865
      %v1882 = vpack.c.b16 %v1866, %v1866
      %v1883 = vpack.c.b16 %v1867, %v1867
      %v1884 = vpack.c.b16 %v1868, %v1868
      %v1885 = vpack.c.b16 %v1869, %v1869
      %v1886 = vpack.c.b16 %v1870, %v1870
      %v1887 = vpack.c.b16 %v1871, %v1871
      %v1888 = vpack.c.b16 %v1872, %v1872
      %v1889 = vpack.c.b16 %v1873, %v1873
      %v1890 = vpack.c.b16 %v1874, %v1874
      %v1891 = vpack.c.b16 %v1875, %v1875
      %v1892 = vpack.c.b16 %v1876, %v1876
      %v1893 = vpack.c.b16 %v1877, %v1877
      %v1894 = vunpack.c.l.b16 %v1804
      %v1895 = vunpack.c.h.b16 %v1804
      %v1896 = vunpack.c.l.b16 %v1840
      %v1897 = vunpack.c.h.b16 %v1840
      %v1898 = vunpack.c.l.b16 %v1807
      %v1899 = vunpack.c.h.b16 %v1807
      %v1900 = vunpack.c.l.b16 %v1843
      %v1901 = vunpack.c.h.b16 %v1843
      %v1902 = vunpack.c.l.b16 %v1810
      %v1903 = vunpack.c.h.b16 %v1810
      %v1904 = vunpack.c.l.b16 %v1846
      %v1905 = vunpack.c.h.b16 %v1846
      %v1906 = vunpack.c.l.b16 %v1813
      %v1907 = vunpack.c.h.b16 %v1813
      %v1908 = vunpack.c.l.b16 %v1849
      %v1909 = vunpack.c.h.b16 %v1849
      %v1910 = vunpack.c.l.b16 %v1816
      %v1911 = vunpack.c.h.b16 %v1816
      %v1912 = vunpack.c.l.b16 %v1852
      %v1913 = vunpack.c.h.b16 %v1852
      %v1914 = vunpack.c.l.b16 %v1819
      %v1915 = vunpack.c.h.b16 %v1819
      %v1916 = vunpack.c.l.b16 %v1855
      %v1917 = vunpack.c.h.b16 %v1855
      %v1918 = vunpack.c.l.b16 %v1822
      %v1919 = vunpack.c.h.b16 %v1822
      %v1920 = vunpack.c.l.b16 %v1858
      %v1921 = vunpack.c.h.b16 %v1858
      %v1922 = vunpack.c.l.b16 %v1825
      %v1923 = vunpack.c.h.b16 %v1825
      %v1924 = vunpack.c.l.b16 %v1861
      %v1925 = vunpack.c.h.b16 %v1861
      %v1926 = vpack.c.b16 %v1894, %v1894
      %v1927 = vpack.c.b16 %v1895, %v1895
      %v1928 = vpack.c.b16 %v1896, %v1896
      %v1929 = vpack.c.b16 %v1897, %v1897
      %v1930 = vpack.c.b16 %v1898, %v1898
      %v1931 = vpack.c.b16 %v1899, %v1899
      %v1932 = vpack.c.b16 %v1900, %v1900
      %v1933 = vpack.c.b16 %v1901, %v1901
      %v1934 = vpack.c.b16 %v1902, %v1902
      %v1935 = vpack.c.b16 %v1903, %v1903
      %v1936 = vpack.c.b16 %v1904, %v1904
      %v1937 = vpack.c.b16 %v1905, %v1905
      %v1938 = vpack.c.b16 %v1906, %v1906
      %v1939 = vpack.c.b16 %v1907, %v1907
      %v1940 = vpack.c.b16 %v1908, %v1908
      %v1941 = vpack.c.b16 %v1909, %v1909
      %v1942 = vpack.c.b16 %v1910, %v1910
      %v1943 = vpack.c.b16 %v1911, %v1911
      %v1944 = vpack.c.b16 %v1912, %v1912
      %v1945 = vpack.c.b16 %v1913, %v1913
      %v1946 = vpack.c.b16 %v1914, %v1914
      %v1947 = vpack.c.b16 %v1915, %v1915
      %v1948 = vpack.c.b16 %v1916, %v1916
      %v1949 = vpack.c.b16 %v1917, %v1917
      %v1950 = vpack.c.b16 %v1918, %v1918
      %v1951 = vpack.c.b16 %v1919, %v1919
      %v1952 = vpack.c.b16 %v1920, %v1920
      %v1953 = vpack.c.b16 %v1921, %v1921
      %v1954 = vpack.c.b16 %v1922, %v1922
      %v1955 = vpack.c.b16 %v1923, %v1923
      %v1956 = vpack.c.b16 %v1924, %v1924
      %v1957 = vpack.c.b16 %v1925, %v1925
      %vm1958 = vcmask 1043456
      %v1960 = vsel %vm1958, %v1926, 0
      %v1962 = vsel %vm1958, %v1927, 0
      %v1964 = vsel %vm1958, %v1928, 0
      %v1966 = vsel %vm1958, %v1929, 0
      %v1968 = vsel %vm1958, %v1930, 0
      %v1970 = vsel %vm1958, %v1931, 0
      %v1972 = vsel %vm1958, %v1932, 0
      %v1974 = vsel %vm1958, %v1933, 0
      %v1976 = vsel %vm1958, %v1934, 0
      %v1978 = vsel %vm1958, %v1935, 0
      %v1980 = vsel %vm1958, %v1936, 0
      %v1982 = vsel %vm1958, %v1937, 0
      %v1984 = vsel %vm1958, %v1938, 0
      %v1986 = vsel %vm1958, %v1939, 0
      %v1988 = vsel %vm1958, %v1940, 0
      %v1990 = vsel %vm1958, %v1941, 0
      %v1992 = vsel %vm1958, %v1942, 0
      %v1995 = vsel %vm1958, %v1943, 0
      %v1998 = vsel %vm1958, %v1944, 0
      %v2001 = vsel %vm1958, %v1945, 0
      %v2004 = vsel %vm1958, %v1946, 0
      %v2007 = vsel %vm1958, %v1947, 0
      %v2010 = vsel %vm1958, %v1948, 0
      %v2013 = vsel %vm1958, %v1949, 0
      %v2016 = vsel %vm1958, %v1950, 0
      %v2019 = vsel %vm1958, %v1951, 0
      %v2022 = vsel %vm1958, %v1952, 0
      %v2025 = vsel %vm1958, %v1953, 0
      %v2028 = vsel %vm1958, %v1954, 0
      %v2031 = vsel %vm1958, %v1955, 0
      %v2034 = vsel %vm1958, %v1956, 0
      %v2037 = vsel %vm1958, %v1957, 0
      %v2039 = vld [vmem:[%s1] sm:$0xff]
      %vm2040 = vcmask 64512
      %v2042 = vsel %vm2040, %v1878, 0
      %v2044 = vsel %vm2040, %v1960, 0
      %v2046 = vsel %vm2040, 0, 0
      %2048 = vmatprep.subr.bf16.mxu0 0
      %2049 = vmatpush1.bf16.xpose.msra.mxu0 %v2044
      %2050 = vmatprep.subr.bf16.mxu0 0
      %2051 = vmatpush1.bf16.xpose.msra.mxu0 %v2046
      %2052 = vmatprep.subr.bf16.mxu0 0
      %2053 = vmatpush1.bf16.xpose.msra.mxu0 %v2046
      %2054 = vmatprep.subr.bf16.mxu0 0
      %2055 = vmatpush1.bf16.xpose.msra.mxu0 %v2046
      %2056 = vmatprep.subr.bf16.mxu0 0
      %2057 = vmatpush1.bf16.xpose.msra.mxu0 %v2046
      %2058 = vmatprep.subr.bf16.mxu0 0
      %2059 = vmatpush1.bf16.xpose.msra.mxu0 %v2046
      %2060 = vmatprep.subr.bf16.mxu0 0
      %2061 = vmatpush1.bf16.xpose.msra.mxu0 %v2046
      %2062 = vmatprep.subr.bf16.mxu0 0
      %2063 = vmatpush1.bf16.xpose.msra.mxu0 %v2046
      %2064 = vmatprep.subr.bf16.mxu0 0
      %2065 = vmatpush1.bf16.xpose.msra.mxu0 0
      %2066 = vmatprep.subr.bf16.mxu0 0
      %2067 = vmatpush1.bf16.xpose.msra.mxu0 0
      %2068 = vmatprep.subr.bf16.mxu0 0
      %2069 = vmatpush1.bf16.xpose.msra.mxu0 0
      %2070 = vmatprep.subr.bf16.mxu0 0
      %2071 = vmatpush1.bf16.xpose.msra.mxu0 0
      %2072 = vmatprep.subr.bf16.mxu0 0
      %2073 = vmatpush1.bf16.xpose.msra.mxu0 0
      %2074 = vmatprep.subr.bf16.mxu0 0
      %2075 = vmatpush1.bf16.xpose.msra.mxu0 0
      %2076 = vmatprep.subr.bf16.mxu0 0
      %2077 = vmatpush1.bf16.xpose.msra.mxu0 0
      %2078 = vmatprep.subr.bf16.mxu0 0
      %2079 = vmatpush1.bf16.xpose.msra.mxu0 0
      %2080 = vmatprep.mubr.bf16.mxu0 0
      %2081 = vmatmul.mubr.bf16.gmra.mrb[0].mxu0 %v2042
      %v2082 = vpop.f32.mrb[0].mxu0
      %v2083 = vadd.f32 %v2039, %v2082
      %v2084 = vpop.f32.mrb[0].mxu0
      %v2085 = vpop.f32.mrb[0].mxu0
      %v2086 = vpop.f32.mrb[0].mxu0
      %2087 = vdwg.mxu0
      %v2089 = vsel %vm2040, %v1879, 0
      %v2091 = vsel %vm2040, %v1962, 0
      %2093 = vmatprep.subr.bf16.mxu0 0
      %2094 = vmatpush1.bf16.xpose.msra.mxu0 %v2091
      %2095 = vmatprep.subr.bf16.mxu0 0
      %2096 = vmatpush1.bf16.xpose.msra.mxu0 %v2046
      %2097 = vmatprep.subr.bf16.mxu0 0
      %2098 = vmatpush1.bf16.xpose.msra.mxu0 %v2046
      %2099 = vmatprep.subr.bf16.mxu0 0
      %2100 = vmatpush1.bf16.xpose.msra.mxu0 %v2046
      %2101 = vmatprep.subr.bf16.mxu0 0
      %2102 = vmatpush1.bf16.xpose.msra.mxu0 %v2046
      %2103 = vmatprep.subr.bf16.mxu0 0
      %2104 = vmatpush1.bf16.xpose.msra.mxu0 %v2046
      %2105 = vmatprep.subr.bf16.mxu0 0
      %2106 = vmatpush1.bf16.xpose.msra.mxu0 %v2046
      %2107 = vmatprep.subr.bf16.mxu0 0
      %2108 = vmatpush1.bf16.xpose.msra.mxu0 %v2046
      %2109 = vmatprep.subr.bf16.mxu0 0
      %2110 = vmatpush1.bf16.xpose.msra.mxu0 0
      %2111 = vmatprep.subr.bf16.mxu0 0
      %2112 = vmatpush1.bf16.xpose.msra.mxu0 0
      %2113 = vmatprep.subr.bf16.mxu0 0
      %2114 = vmatpush1.bf16.xpose.msra.mxu0 0
      %2115 = vmatprep.subr.bf16.mxu0 0
      %2116 = vmatpush1.bf16.xpose.msra.mxu0 0
      %2117 = vmatprep.subr.bf16.mxu0 0
      %2118 = vmatpush1.bf16.xpose.msra.mxu0 0
      %2119 = vmatprep.subr.bf16.mxu0 0
      %2120 = vmatpush1.bf16.xpose.msra.mxu0 0
      %2121 = vmatprep.subr.bf16.mxu0 0
      %2122 = vmatpush1.bf16.xpose.msra.mxu0 0
      %2123 = vmatprep.subr.bf16.mxu0 0
      %2124 = vmatpush1.bf16.xpose.msra.mxu0 0
      %2125 = vmatprep.mubr.bf16.mxu0 0
      %2126 = vmatmul.mubr.bf16.gmra.mrb[0].mxu0 %v2089
      %v2127 = vpop.f32.mrb[0].mxu0
      %v2128 = vadd.f32 %v2039, %v2127
      %v2129 = vpop.f32.mrb[0].mxu0
      %v2130 = vpop.f32.mrb[0].mxu0
      %v2131 = vpop.f32.mrb[0].mxu0
      %2132 = vdwg.mxu0
      %v2134 = vsel %vm2040, %v1880, 0
      %v2136 = vsel %vm2040, %v1964, 0
      %2138 = vmatprep.subr.bf16.mxu0 0
      %2139 = vmatpush1.bf16.xpose.msra.mxu0 %v2136
      %2140 = vmatprep.subr.bf16.mxu0 0
      %2141 = vmatpush1.bf16.xpose.msra.mxu0 %v2046
      %2142 = vmatprep.subr.bf16.mxu0 0
      %2143 = vmatpush1.bf16.xpose.msra.mxu0 %v2046
      %2144 = vmatprep.subr.bf16.mxu0 0
      %2145 = vmatpush1.bf16.xpose.msra.mxu0 %v2046
      %2146 = vmatprep.subr.bf16.mxu0 0
      %2147 = vmatpush1.bf16.xpose.msra.mxu0 %v2046
      %2148 = vmatprep.subr.bf16.mxu0 0
      %2149 = vmatpush1.bf16.xpose.msra.mxu0 %v2046
      %2150 = vmatprep.subr.bf16.mxu0 0
      %2151 = vmatpush1.bf16.xpose.msra.mxu0 %v2046
      %2152 = vmatprep.subr.bf16.mxu0 0
      %2153 = vmatpush1.bf16.xpose.msra.mxu0 %v2046
      %2154 = vmatprep.subr.bf16.mxu0 0
      %2155 = vmatpush1.bf16.xpose.msra.mxu0 0
      %2156 = vmatprep.subr.bf16.mxu0 0
      %2157 = vmatpush1.bf16.xpose.msra.mxu0 0
      %2158 = vmatprep.subr.bf16.mxu0 0
      %2159 = vmatpush1.bf16.xpose.msra.mxu0 0
      %2160 = vmatprep.subr.bf16.mxu0 0
      %2161 = vmatpush1.bf16.xpose.msra.mxu0 0
      %2162 = vmatprep.subr.bf16.mxu0 0
      %2163 = vmatpush1.bf16.xpose.msra.mxu0 0
      %2164 = vmatprep.subr.bf16.mxu0 0
      %2165 = vmatpush1.bf16.xpose.msra.mxu0 0
      %2166 = vmatprep.subr.bf16.mxu0 0
      %2167 = vmatpush1.bf16.xpose.msra.mxu0 0
      %2168 = vmatprep.subr.bf16.mxu0 0
      %2169 = vmatpush1.bf16.xpose.msra.mxu0 0
      %2170 = vmatprep.mubr.bf16.mxu0 0
      %2171 = vmatmul.mubr.bf16.gmra.mrb[0].mxu0 %v2134
      %v2172 = vpop.f32.mrb[0].mxu0
      %v2173 = vadd.f32 %v2039, %v2172
      %v2174 = vpop.f32.mrb[0].mxu0
      %v2175 = vpop.f32.mrb[0].mxu0
      %v2176 = vpop.f32.mrb[0].mxu0
      %2177 = vdwg.mxu0
      %v2179 = vsel %vm2040, %v1881, 0
      %v2181 = vsel %vm2040, %v1966, 0
      %2183 = vmatprep.subr.bf16.mxu0 0
      %2184 = vmatpush1.bf16.xpose.msra.mxu0 %v2181
      %2185 = vmatprep.subr.bf16.mxu0 0
      %2186 = vmatpush1.bf16.xpose.msra.mxu0 %v2046
      %2187 = vmatprep.subr.bf16.mxu0 0
      %2188 = vmatpush1.bf16.xpose.msra.mxu0 %v2046
      %2189 = vmatprep.subr.bf16.mxu0 0
      %2190 = vmatpush1.bf16.xpose.msra.mxu0 %v2046
      %2191 = vmatprep.subr.bf16.mxu0 0
      %2192 = vmatpush1.bf16.xpose.msra.mxu0 %v2046
      %2193 = vmatprep.subr.bf16.mxu0 0
      %2194 = vmatpush1.bf16.xpose.msra.mxu0 %v2046
      %2195 = vmatprep.subr.bf16.mxu0 0
      %2196 = vmatpush1.bf16.xpose.msra.mxu0 %v2046
      %2197 = vmatprep.subr.bf16.mxu0 0
      %2198 = vmatpush1.bf16.xpose.msra.mxu0 %v2046
      %2199 = vmatprep.subr.bf16.mxu0 0
      %2200 = vmatpush1.bf16.xpose.msra.mxu0 0
      %2201 = vmatprep.subr.bf16.mxu0 0
      %2202 = vmatpush1.bf16.xpose.msra.mxu0 0
      %2203 = vmatprep.subr.bf16.mxu0 0
      %2204 = vmatpush1.bf16.xpose.msra.mxu0 0
      %2205 = vmatprep.subr.bf16.mxu0 0
      %2206 = vmatpush1.bf16.xpose.msra.mxu0 0
      %2207 = vmatprep.subr.bf16.mxu0 0
      %2208 = vmatpush1.bf16.xpose.msra.mxu0 0
      %2209 = vmatprep.subr.bf16.mxu0 0
      %2210 = vmatpush1.bf16.xpose.msra.mxu0 0
      %2211 = vmatprep.subr.bf16.mxu0 0
      %2212 = vmatpush1.bf16.xpose.msra.mxu0 0
      %2213 = vmatprep.subr.bf16.mxu0 0
      %2214 = vmatpush1.bf16.xpose.msra.mxu0 0
      %2215 = vmatprep.mubr.bf16.mxu0 0
      %2216 = vmatmul.mubr.bf16.gmra.mrb[0].mxu0 %v2179
      %v2217 = vpop.f32.mrb[0].mxu0
      %v2218 = vadd.f32 %v2039, %v2217
      %v2219 = vpop.f32.mrb[0].mxu0
      %v2220 = vpop.f32.mrb[0].mxu0
      %v2221 = vpop.f32.mrb[0].mxu0
      %2222 = vdwg.mxu0
      %v2224 = vsel %vm2040, %v1882, 0
      %v2226 = vsel %vm2040, %v1968, 0
      %2228 = vmatprep.subr.bf16.mxu0 0
      %2229 = vmatpush1.bf16.xpose.msra.mxu0 %v2226
      %2230 = vmatprep.subr.bf16.mxu0 0
      %2231 = vmatpush1.bf16.xpose.msra.mxu0 %v2046
      %2232 = vmatprep.subr.bf16.mxu0 0
      %2233 = vmatpush1.bf16.xpose.msra.mxu0 %v2046
      %2234 = vmatprep.subr.bf16.mxu0 0
      %2235 = vmatpush1.bf16.xpose.msra.mxu0 %v2046
      %2236 = vmatprep.subr.bf16.mxu0 0
      %2237 = vmatpush1.bf16.xpose.msra.mxu0 %v2046
      %2238 = vmatprep.subr.bf16.mxu0 0
      %2239 = vmatpush1.bf16.xpose.msra.mxu0 %v2046
      %2240 = vmatprep.subr.bf16.mxu0 0
      %2241 = vmatpush1.bf16.xpose.msra.mxu0 %v2046
      %2242 = vmatprep.subr.bf16.mxu0 0
      %2243 = vmatpush1.bf16.xpose.msra.mxu0 %v2046
      %2244 = vmatprep.subr.bf16.mxu0 0
      %2245 = vmatpush1.bf16.xpose.msra.mxu0 0
      %2246 = vmatprep.subr.bf16.mxu0 0
      %2247 = vmatpush1.bf16.xpose.msra.mxu0 0
      %2248 = vmatprep.subr.bf16.mxu0 0
      %2249 = vmatpush1.bf16.xpose.msra.mxu0 0
      %2250 = vmatprep.subr.bf16.mxu0 0
      %2251 = vmatpush1.bf16.xpose.msra.mxu0 0
      %2252 = vmatprep.subr.bf16.mxu0 0
      %2253 = vmatpush1.bf16.xpose.msra.mxu0 0
      %2254 = vmatprep.subr.bf16.mxu0 0
      %2255 = vmatpush1.bf16.xpose.msra.mxu0 0
      %2256 = vmatprep.subr.bf16.mxu0 0
      %2257 = vmatpush1.bf16.xpose.msra.mxu0 0
      %2258 = vmatprep.subr.bf16.mxu0 0
      %2259 = vmatpush1.bf16.xpose.msra.mxu0 0
      %2260 = vmatprep.mubr.bf16.mxu0 0
      %2261 = vmatmul.mubr.bf16.gmra.mrb[0].mxu0 %v2224
      %v2262 = vpop.f32.mrb[0].mxu0
      %v2263 = vadd.f32 %v2039, %v2262
      %v2264 = vpop.f32.mrb[0].mxu0
      %v2265 = vpop.f32.mrb[0].mxu0
      %v2266 = vpop.f32.mrb[0].mxu0
      %2267 = vdwg.mxu0
      %v2269 = vsel %vm2040, %v1883, 0
      %v2271 = vsel %vm2040, %v1970, 0
      %2273 = vmatprep.subr.bf16.mxu0 0
      %2274 = vmatpush1.bf16.xpose.msra.mxu0 %v2271
      %2275 = vmatprep.subr.bf16.mxu0 0
      %2276 = vmatpush1.bf16.xpose.msra.mxu0 %v2046
      %2277 = vmatprep.subr.bf16.mxu0 0
      %2278 = vmatpush1.bf16.xpose.msra.mxu0 %v2046
      %2279 = vmatprep.subr.bf16.mxu0 0
      %2280 = vmatpush1.bf16.xpose.msra.mxu0 %v2046
      %2281 = vmatprep.subr.bf16.mxu0 0
      %2282 = vmatpush1.bf16.xpose.msra.mxu0 %v2046
      %2283 = vmatprep.subr.bf16.mxu0 0
      %2284 = vmatpush1.bf16.xpose.msra.mxu0 %v2046
      %2285 = vmatprep.subr.bf16.mxu0 0
      %2286 = vmatpush1.bf16.xpose.msra.mxu0 %v2046
      %2287 = vmatprep.subr.bf16.mxu0 0
      %2288 = vmatpush1.bf16.xpose.msra.mxu0 %v2046
      %2289 = vmatprep.subr.bf16.mxu0 0
      %2290 = vmatpush1.bf16.xpose.msra.mxu0 0
      %2291 = vmatprep.subr.bf16.mxu0 0
      %2292 = vmatpush1.bf16.xpose.msra.mxu0 0
      %2293 = vmatprep.subr.bf16.mxu0 0
      %2294 = vmatpush1.bf16.xpose.msra.mxu0 0
      %2295 = vmatprep.subr.bf16.mxu0 0
      %2296 = vmatpush1.bf16.xpose.msra.mxu0 0
      %2297 = vmatprep.subr.bf16.mxu0 0
      %2298 = vmatpush1.bf16.xpose.msra.mxu0 0
      %2299 = vmatprep.subr.bf16.mxu0 0
      %2300 = vmatpush1.bf16.xpose.msra.mxu0 0
      %2301 = vmatprep.subr.bf16.mxu0 0
      %2302 = vmatpush1.bf16.xpose.msra.mxu0 0
      %2303 = vmatprep.subr.bf16.mxu0 0
      %2304 = vmatpush1.bf16.xpose.msra.mxu0 0
      %2305 = vmatprep.mubr.bf16.mxu0 0
      %2306 = vmatmul.mubr.bf16.gmra.mrb[0].mxu0 %v2269
      %v2307 = vpop.f32.mrb[0].mxu0
      %v2308 = vadd.f32 %v2039, %v2307
      %v2309 = vpop.f32.mrb[0].mxu0
      %v2310 = vpop.f32.mrb[0].mxu0
      %v2311 = vpop.f32.mrb[0].mxu0
      %2312 = vdwg.mxu0
      %v2314 = vsel %vm2040, %v1884, 0
      %v2316 = vsel %vm2040, %v1972, 0
      %2318 = vmatprep.subr.bf16.mxu0 0
      %2319 = vmatpush1.bf16.xpose.msra.mxu0 %v2316
      %2320 = vmatprep.subr.bf16.mxu0 0
      %2321 = vmatpush1.bf16.xpose.msra.mxu0 %v2046
      %2322 = vmatprep.subr.bf16.mxu0 0
      %2323 = vmatpush1.bf16.xpose.msra.mxu0 %v2046
      %2324 = vmatprep.subr.bf16.mxu0 0
      %2325 = vmatpush1.bf16.xpose.msra.mxu0 %v2046
      %2326 = vmatprep.subr.bf16.mxu0 0
      %2327 = vmatpush1.bf16.xpose.msra.mxu0 %v2046
      %2328 = vmatprep.subr.bf16.mxu0 0
      %2329 = vmatpush1.bf16.xpose.msra.mxu0 %v2046
      %2330 = vmatprep.subr.bf16.mxu0 0
      %2331 = vmatpush1.bf16.xpose.msra.mxu0 %v2046
      %2332 = vmatprep.subr.bf16.mxu0 0
      %2333 = vmatpush1.bf16.xpose.msra.mxu0 %v2046
      %2334 = vmatprep.subr.bf16.mxu0 0
      %2335 = vmatpush1.bf16.xpose.msra.mxu0 0
      %2336 = vmatprep.subr.bf16.mxu0 0
      %2337 = vmatpush1.bf16.xpose.msra.mxu0 0
      %2338 = vmatprep.subr.bf16.mxu0 0
      %2339 = vmatpush1.bf16.xpose.msra.mxu0 0
      %2340 = vmatprep.subr.bf16.mxu0 0
      %2341 = vmatpush1.bf16.xpose.msra.mxu0 0
      %2342 = vmatprep.subr.bf16.mxu0 0
      %2343 = vmatpush1.bf16.xpose.msra.mxu0 0
      %2344 = vmatprep.subr.bf16.mxu0 0
      %2345 = vmatpush1.bf16.xpose.msra.mxu0 0
      %2346 = vmatprep.subr.bf16.mxu0 0
      %2347 = vmatpush1.bf16.xpose.msra.mxu0 0
      %2348 = vmatprep.subr.bf16.mxu0 0
      %2349 = vmatpush1.bf16.xpose.msra.mxu0 0
      %2350 = vmatprep.mubr.bf16.mxu0 0
      %2351 = vmatmul.mubr.bf16.gmra.mrb[0].mxu0 %v2314
      %v2352 = vpop.f32.mrb[0].mxu0
      %v2353 = vadd.f32 %v2039, %v2352
      %v2354 = vpop.f32.mrb[0].mxu0
      %v2355 = vpop.f32.mrb[0].mxu0
      %v2356 = vpop.f32.mrb[0].mxu0
      %2357 = vdwg.mxu0
      %v2359 = vsel %vm2040, %v1885, 0
      %v2361 = vsel %vm2040, %v1974, 0
      %2363 = vmatprep.subr.bf16.mxu0 0
      %2364 = vmatpush1.bf16.xpose.msra.mxu0 %v2361
      %2365 = vmatprep.subr.bf16.mxu0 0
      %2366 = vmatpush1.bf16.xpose.msra.mxu0 %v2046
      %2367 = vmatprep.subr.bf16.mxu0 0
      %2368 = vmatpush1.bf16.xpose.msra.mxu0 %v2046
      %2369 = vmatprep.subr.bf16.mxu0 0
      %2370 = vmatpush1.bf16.xpose.msra.mxu0 %v2046
      %2371 = vmatprep.subr.bf16.mxu0 0
      %2372 = vmatpush1.bf16.xpose.msra.mxu0 %v2046
      %2373 = vmatprep.subr.bf16.mxu0 0
      %2374 = vmatpush1.bf16.xpose.msra.mxu0 %v2046
      %2375 = vmatprep.subr.bf16.mxu0 0
      %2376 = vmatpush1.bf16.xpose.msra.mxu0 %v2046
      %2377 = vmatprep.subr.bf16.mxu0 0
      %2378 = vmatpush1.bf16.xpose.msra.mxu0 %v2046
      %2379 = vmatprep.subr.bf16.mxu0 0
      %2380 = vmatpush1.bf16.xpose.msra.mxu0 0
      %2381 = vmatprep.subr.bf16.mxu0 0
      %2382 = vmatpush1.bf16.xpose.msra.mxu0 0
      %2383 = vmatprep.subr.bf16.mxu0 0
      %2384 = vmatpush1.bf16.xpose.msra.mxu0 0
      %2385 = vmatprep.subr.bf16.mxu0 0
      %2386 = vmatpush1.bf16.xpose.msra.mxu0 0
      %2387 = vmatprep.subr.bf16.mxu0 0
      %2388 = vmatpush1.bf16.xpose.msra.mxu0 0
      %2389 = vmatprep.subr.bf16.mxu0 0
      %2390 = vmatpush1.bf16.xpose.msra.mxu0 0
      %2391 = vmatprep.subr.bf16.mxu0 0
      %2392 = vmatpush1.bf16.xpose.msra.mxu0 0
      %2393 = vmatprep.subr.bf16.mxu0 0
      %2394 = vmatpush1.bf16.xpose.msra.mxu0 0
      %2395 = vmatprep.mubr.bf16.mxu0 0
      %2396 = vmatmul.mubr.bf16.gmra.mrb[0].mxu0 %v2359
      %v2397 = vpop.f32.mrb[0].mxu0
      %v2398 = vadd.f32 %v2039, %v2397
      %v2399 = vpop.f32.mrb[0].mxu0
      %v2400 = vpop.f32.mrb[0].mxu0
      %v2401 = vpop.f32.mrb[0].mxu0
      %2402 = vdwg.mxu0
      %v2404 = vsel %vm2040, %v1886, 0
      %v2406 = vsel %vm2040, %v1976, 0
      %2408 = vmatprep.subr.bf16.mxu0 0
      %2409 = vmatpush1.bf16.xpose.msra.mxu0 %v2406
      %2410 = vmatprep.subr.bf16.mxu0 0
      %2411 = vmatpush1.bf16.xpose.msra.mxu0 %v2046
      %2412 = vmatprep.subr.bf16.mxu0 0
      %2413 = vmatpush1.bf16.xpose.msra.mxu0 %v2046
      %2414 = vmatprep.subr.bf16.mxu0 0
      %2415 = vmatpush1.bf16.xpose.msra.mxu0 %v2046
      %2416 = vmatprep.subr.bf16.mxu0 0
      %2417 = vmatpush1.bf16.xpose.msra.mxu0 %v2046
      %2418 = vmatprep.subr.bf16.mxu0 0
      %2419 = vmatpush1.bf16.xpose.msra.mxu0 %v2046
      %2420 = vmatprep.subr.bf16.mxu0 0
      %2421 = vmatpush1.bf16.xpose.msra.mxu0 %v2046
      %2422 = vmatprep.subr.bf16.mxu0 0
      %2423 = vmatpush1.bf16.xpose.msra.mxu0 %v2046
      %2424 = vmatprep.subr.bf16.mxu0 0
      %2425 = vmatpush1.bf16.xpose.msra.mxu0 0
      %2426 = vmatprep.subr.bf16.mxu0 0
      %2427 = vmatpush1.bf16.xpose.msra.mxu0 0
      %2428 = vmatprep.subr.bf16.mxu0 0
      %2429 = vmatpush1.bf16.xpose.msra.mxu0 0
      %2430 = vmatprep.subr.bf16.mxu0 0
      %2431 = vmatpush1.bf16.xpose.msra.mxu0 0
      %2432 = vmatprep.subr.bf16.mxu0 0
      %2433 = vmatpush1.bf16.xpose.msra.mxu0 0
      %2434 = vmatprep.subr.bf16.mxu0 0
      %2435 = vmatpush1.bf16.xpose.msra.mxu0 0
      %2436 = vmatprep.subr.bf16.mxu0 0
      %2437 = vmatpush1.bf16.xpose.msra.mxu0 0
      %2438 = vmatprep.subr.bf16.mxu0 0
      %2439 = vmatpush1.bf16.xpose.msra.mxu0 0
      %2440 = vmatprep.mubr.bf16.mxu0 0
      %2441 = vmatmul.mubr.bf16.gmra.mrb[0].mxu0 %v2404
      %v2442 = vpop.f32.mrb[0].mxu0
      %v2443 = vadd.f32 %v2039, %v2442
      %v2444 = vpop.f32.mrb[0].mxu0
      %v2445 = vpop.f32.mrb[0].mxu0
      %v2446 = vpop.f32.mrb[0].mxu0
      %2447 = vdwg.mxu0
      %v2449 = vsel %vm2040, %v1887, 0
      %v2451 = vsel %vm2040, %v1978, 0
      %2453 = vmatprep.subr.bf16.mxu0 0
      %2454 = vmatpush1.bf16.xpose.msra.mxu0 %v2451
      %2455 = vmatprep.subr.bf16.mxu0 0
      %2456 = vmatpush1.bf16.xpose.msra.mxu0 %v2046
      %2457 = vmatprep.subr.bf16.mxu0 0
      %2458 = vmatpush1.bf16.xpose.msra.mxu0 %v2046
      %2459 = vmatprep.subr.bf16.mxu0 0
      %2460 = vmatpush1.bf16.xpose.msra.mxu0 %v2046
      %2461 = vmatprep.subr.bf16.mxu0 0
      %2462 = vmatpush1.bf16.xpose.msra.mxu0 %v2046
      %2463 = vmatprep.subr.bf16.mxu0 0
      %2464 = vmatpush1.bf16.xpose.msra.mxu0 %v2046
      %2465 = vmatprep.subr.bf16.mxu0 0
      %2466 = vmatpush1.bf16.xpose.msra.mxu0 %v2046
      %2467 = vmatprep.subr.bf16.mxu0 0
      %2468 = vmatpush1.bf16.xpose.msra.mxu0 %v2046
      %2469 = vmatprep.subr.bf16.mxu0 0
      %2470 = vmatpush1.bf16.xpose.msra.mxu0 0
      %2471 = vmatprep.subr.bf16.mxu0 0
      %2472 = vmatpush1.bf16.xpose.msra.mxu0 0
      %2473 = vmatprep.subr.bf16.mxu0 0
      %2474 = vmatpush1.bf16.xpose.msra.mxu0 0
      %2475 = vmatprep.subr.bf16.mxu0 0
      %2476 = vmatpush1.bf16.xpose.msra.mxu0 0
      %2477 = vmatprep.subr.bf16.mxu0 0
      %2478 = vmatpush1.bf16.xpose.msra.mxu0 0
      %2479 = vmatprep.subr.bf16.mxu0 0
      %2480 = vmatpush1.bf16.xpose.msra.mxu0 0
      %2481 = vmatprep.subr.bf16.mxu0 0
      %2482 = vmatpush1.bf16.xpose.msra.mxu0 0
      %2483 = vmatprep.subr.bf16.mxu0 0
      %2484 = vmatpush1.bf16.xpose.msra.mxu0 0
      %2485 = vmatprep.mubr.bf16.mxu0 0
      %2486 = vmatmul.mubr.bf16.gmra.mrb[0].mxu0 %v2449
      %v2487 = vpop.f32.mrb[0].mxu0
      %v2488 = vadd.f32 %v2039, %v2487
      %v2489 = vpop.f32.mrb[0].mxu0
      %v2490 = vpop.f32.mrb[0].mxu0
      %v2491 = vpop.f32.mrb[0].mxu0
      %2492 = vdwg.mxu0
      %v2494 = vsel %vm2040, %v1888, 0
      %v2496 = vsel %vm2040, %v1980, 0
      %2498 = vmatprep.subr.bf16.mxu0 0
      %2499 = vmatpush1.bf16.xpose.msra.mxu0 %v2496
      %2500 = vmatprep.subr.bf16.mxu0 0
      %2501 = vmatpush1.bf16.xpose.msra.mxu0 %v2046
      %2502 = vmatprep.subr.bf16.mxu0 0
      %2503 = vmatpush1.bf16.xpose.msra.mxu0 %v2046
      %2504 = vmatprep.subr.bf16.mxu0 0
      %2505 = vmatpush1.bf16.xpose.msra.mxu0 %v2046
      %2506 = vmatprep.subr.bf16.mxu0 0
      %2507 = vmatpush1.bf16.xpose.msra.mxu0 %v2046
      %2508 = vmatprep.subr.bf16.mxu0 0
      %2509 = vmatpush1.bf16.xpose.msra.mxu0 %v2046
      %2510 = vmatprep.subr.bf16.mxu0 0
      %2511 = vmatpush1.bf16.xpose.msra.mxu0 %v2046
      %2512 = vmatprep.subr.bf16.mxu0 0
      %2513 = vmatpush1.bf16.xpose.msra.mxu0 %v2046
      %2514 = vmatprep.subr.bf16.mxu0 0
      %2515 = vmatpush1.bf16.xpose.msra.mxu0 0
      %2516 = vmatprep.subr.bf16.mxu0 0
      %2517 = vmatpush1.bf16.xpose.msra.mxu0 0
      %2518 = vmatprep.subr.bf16.mxu0 0
      %2519 = vmatpush1.bf16.xpose.msra.mxu0 0
      %2520 = vmatprep.subr.bf16.mxu0 0
      %2521 = vmatpush1.bf16.xpose.msra.mxu0 0
      %2522 = vmatprep.subr.bf16.mxu0 0
      %2523 = vmatpush1.bf16.xpose.msra.mxu0 0
      %2524 = vmatprep.subr.bf16.mxu0 0
      %2525 = vmatpush1.bf16.xpose.msra.mxu0 0
      %2526 = vmatprep.subr.bf16.mxu0 0
      %2527 = vmatpush1.bf16.xpose.msra.mxu0 0
      %2528 = vmatprep.subr.bf16.mxu0 0
      %2529 = vmatpush1.bf16.xpose.msra.mxu0 0
      %2530 = vmatprep.mubr.bf16.mxu0 0
      %2531 = vmatmul.mubr.bf16.gmra.mrb[0].mxu0 %v2494
      %v2532 = vpop.f32.mrb[0].mxu0
      %v2533 = vadd.f32 %v2039, %v2532
      %v2534 = vpop.f32.mrb[0].mxu0
      %v2535 = vpop.f32.mrb[0].mxu0
      %v2536 = vpop.f32.mrb[0].mxu0
      %2537 = vdwg.mxu0
      %v2539 = vsel %vm2040, %v1889, 0
      %v2541 = vsel %vm2040, %v1982, 0
      %2543 = vmatprep.subr.bf16.mxu0 0
      %2544 = vmatpush1.bf16.xpose.msra.mxu0 %v2541
      %2545 = vmatprep.subr.bf16.mxu0 0
      %2546 = vmatpush1.bf16.xpose.msra.mxu0 %v2046
      %2547 = vmatprep.subr.bf16.mxu0 0
      %2548 = vmatpush1.bf16.xpose.msra.mxu0 %v2046
      %2549 = vmatprep.subr.bf16.mxu0 0
      %2550 = vmatpush1.bf16.xpose.msra.mxu0 %v2046
      %2551 = vmatprep.subr.bf16.mxu0 0
      %2552 = vmatpush1.bf16.xpose.msra.mxu0 %v2046
      %2553 = vmatprep.subr.bf16.mxu0 0
      %2554 = vmatpush1.bf16.xpose.msra.mxu0 %v2046
      %2555 = vmatprep.subr.bf16.mxu0 0
      %2556 = vmatpush1.bf16.xpose.msra.mxu0 %v2046
      %2557 = vmatprep.subr.bf16.mxu0 0
      %2558 = vmatpush1.bf16.xpose.msra.mxu0 %v2046
      %2559 = vmatprep.subr.bf16.mxu0 0
      %2560 = vmatpush1.bf16.xpose.msra.mxu0 0
      %2561 = vmatprep.subr.bf16.mxu0 0
      %2562 = vmatpush1.bf16.xpose.msra.mxu0 0
      %2563 = vmatprep.subr.bf16.mxu0 0
      %2564 = vmatpush1.bf16.xpose.msra.mxu0 0
      %2565 = vmatprep.subr.bf16.mxu0 0
      %2566 = vmatpush1.bf16.xpose.msra.mxu0 0
      %2567 = vmatprep.subr.bf16.mxu0 0
      %2568 = vmatpush1.bf16.xpose.msra.mxu0 0
      %2569 = vmatprep.subr.bf16.mxu0 0
      %2570 = vmatpush1.bf16.xpose.msra.mxu0 0
      %2571 = vmatprep.subr.bf16.mxu0 0
      %2572 = vmatpush1.bf16.xpose.msra.mxu0 0
      %2573 = vmatprep.subr.bf16.mxu0 0
      %2574 = vmatpush1.bf16.xpose.msra.mxu0 0
      %2575 = vmatprep.mubr.bf16.mxu0 0
      %2576 = vmatmul.mubr.bf16.gmra.mrb[0].mxu0 %v2539
      %v2577 = vpop.f32.mrb[0].mxu0
      %v2578 = vadd.f32 %v2039, %v2577
      %v2579 = vpop.f32.mrb[0].mxu0
      %v2580 = vpop.f32.mrb[0].mxu0
      %v2581 = vpop.f32.mrb[0].mxu0
      %2582 = vdwg.mxu0
      %v2584 = vsel %vm2040, %v1890, 0
      %v2586 = vsel %vm2040, %v1984, 0
      %2588 = vmatprep.subr.bf16.mxu0 0
      %2589 = vmatpush1.bf16.xpose.msra.mxu0 %v2586
      %2590 = vmatprep.subr.bf16.mxu0 0
      %2591 = vmatpush1.bf16.xpose.msra.mxu0 %v2046
      %2592 = vmatprep.subr.bf16.mxu0 0
      %2593 = vmatpush1.bf16.xpose.msra.mxu0 %v2046
      %2594 = vmatprep.subr.bf16.mxu0 0
      %2595 = vmatpush1.bf16.xpose.msra.mxu0 %v2046
      %2596 = vmatprep.subr.bf16.mxu0 0
      %2597 = vmatpush1.bf16.xpose.msra.mxu0 %v2046
      %2598 = vmatprep.subr.bf16.mxu0 0
      %2599 = vmatpush1.bf16.xpose.msra.mxu0 %v2046
      %2600 = vmatprep.subr.bf16.mxu0 0
      %2601 = vmatpush1.bf16.xpose.msra.mxu0 %v2046
      %2602 = vmatprep.subr.bf16.mxu0 0
      %2603 = vmatpush1.bf16.xpose.msra.mxu0 %v2046
      %2604 = vmatprep.subr.bf16.mxu0 0
      %2605 = vmatpush1.bf16.xpose.msra.mxu0 0
      %2606 = vmatprep.subr.bf16.mxu0 0
      %2607 = vmatpush1.bf16.xpose.msra.mxu0 0
      %2608 = vmatprep.subr.bf16.mxu0 0
      %2609 = vmatpush1.bf16.xpose.msra.mxu0 0
      %2610 = vmatprep.subr.bf16.mxu0 0
      %2611 = vmatpush1.bf16.xpose.msra.mxu0 0
      %2612 = vmatprep.subr.bf16.mxu0 0
      %2613 = vmatpush1.bf16.xpose.msra.mxu0 0
      %2614 = vmatprep.subr.bf16.mxu0 0
      %2615 = vmatpush1.bf16.xpose.msra.mxu0 0
      %2616 = vmatprep.subr.bf16.mxu0 0
      %2617 = vmatpush1.bf16.xpose.msra.mxu0 0
      %2618 = vmatprep.subr.bf16.mxu0 0
      %2619 = vmatpush1.bf16.xpose.msra.mxu0 0
      %2620 = vmatprep.mubr.bf16.mxu0 0
      %2621 = vmatmul.mubr.bf16.gmra.mrb[0].mxu0 %v2584
      %v2622 = vpop.f32.mrb[0].mxu0
      %v2623 = vadd.f32 %v2039, %v2622
      %v2624 = vpop.f32.mrb[0].mxu0
      %v2625 = vpop.f32.mrb[0].mxu0
      %v2626 = vpop.f32.mrb[0].mxu0
      %2627 = vdwg.mxu0
      %v2629 = vsel %vm2040, %v1891, 0
      %v2631 = vsel %vm2040, %v1986, 0
      %2633 = vmatprep.subr.bf16.mxu0 0
      %2634 = vmatpush1.bf16.xpose.msra.mxu0 %v2631
      %2635 = vmatprep.subr.bf16.mxu0 0
      %2636 = vmatpush1.bf16.xpose.msra.mxu0 %v2046
      %2637 = vmatprep.subr.bf16.mxu0 0
      %2638 = vmatpush1.bf16.xpose.msra.mxu0 %v2046
      %2639 = vmatprep.subr.bf16.mxu0 0
      %2640 = vmatpush1.bf16.xpose.msra.mxu0 %v2046
      %2641 = vmatprep.subr.bf16.mxu0 0
      %2642 = vmatpush1.bf16.xpose.msra.mxu0 %v2046
      %2643 = vmatprep.subr.bf16.mxu0 0
      %2644 = vmatpush1.bf16.xpose.msra.mxu0 %v2046
      %2645 = vmatprep.subr.bf16.mxu0 0
      %2646 = vmatpush1.bf16.xpose.msra.mxu0 %v2046
      %2647 = vmatprep.subr.bf16.mxu0 0
      %2648 = vmatpush1.bf16.xpose.msra.mxu0 %v2046
      %2649 = vmatprep.subr.bf16.mxu0 0
      %2650 = vmatpush1.bf16.xpose.msra.mxu0 0
      %2651 = vmatprep.subr.bf16.mxu0 0
      %2652 = vmatpush1.bf16.xpose.msra.mxu0 0
      %2653 = vmatprep.subr.bf16.mxu0 0
      %2654 = vmatpush1.bf16.xpose.msra.mxu0 0
      %2655 = vmatprep.subr.bf16.mxu0 0
      %2656 = vmatpush1.bf16.xpose.msra.mxu0 0
      %2657 = vmatprep.subr.bf16.mxu0 0
      %2658 = vmatpush1.bf16.xpose.msra.mxu0 0
      %2659 = vmatprep.subr.bf16.mxu0 0
      %2660 = vmatpush1.bf16.xpose.msra.mxu0 0
      %2661 = vmatprep.subr.bf16.mxu0 0
      %2662 = vmatpush1.bf16.xpose.msra.mxu0 0
      %2663 = vmatprep.subr.bf16.mxu0 0
      %2664 = vmatpush1.bf16.xpose.msra.mxu0 0
      %2665 = vmatprep.mubr.bf16.mxu0 0
      %2666 = vmatmul.mubr.bf16.gmra.mrb[0].mxu0 %v2629
      %v2667 = vpop.f32.mrb[0].mxu0
      %v2668 = vadd.f32 %v2039, %v2667
      %v2669 = vpop.f32.mrb[0].mxu0
      %v2670 = vpop.f32.mrb[0].mxu0
      %v2671 = vpop.f32.mrb[0].mxu0
      %2672 = vdwg.mxu0
      %v2674 = vsel %vm2040, %v1892, 0
      %v2676 = vsel %vm2040, %v1988, 0
      %2678 = vmatprep.subr.bf16.mxu0 0
      %2679 = vmatpush1.bf16.xpose.msra.mxu0 %v2676
      %2680 = vmatprep.subr.bf16.mxu0 0
      %2681 = vmatpush1.bf16.xpose.msra.mxu0 %v2046
      %2682 = vmatprep.subr.bf16.mxu0 0
      %2683 = vmatpush1.bf16.xpose.msra.mxu0 %v2046
      %2684 = vmatprep.subr.bf16.mxu0 0
      %2685 = vmatpush1.bf16.xpose.msra.mxu0 %v2046
      %2686 = vmatprep.subr.bf16.mxu0 0
      %2687 = vmatpush1.bf16.xpose.msra.mxu0 %v2046
      %2688 = vmatprep.subr.bf16.mxu0 0
      %2689 = vmatpush1.bf16.xpose.msra.mxu0 %v2046
      %2690 = vmatprep.subr.bf16.mxu0 0
      %2691 = vmatpush1.bf16.xpose.msra.mxu0 %v2046
      %2692 = vmatprep.subr.bf16.mxu0 0
      %2693 = vmatpush1.bf16.xpose.msra.mxu0 %v2046
      %2694 = vmatprep.subr.bf16.mxu0 0
      %2695 = vmatpush1.bf16.xpose.msra.mxu0 0
      %2696 = vmatprep.subr.bf16.mxu0 0
      %2697 = vmatpush1.bf16.xpose.msra.mxu0 0
      %2698 = vmatprep.subr.bf16.mxu0 0
      %2699 = vmatpush1.bf16.xpose.msra.mxu0 0
      %2700 = vmatprep.subr.bf16.mxu0 0
      %2701 = vmatpush1.bf16.xpose.msra.mxu0 0
      %2702 = vmatprep.subr.bf16.mxu0 0
      %2703 = vmatpush1.bf16.xpose.msra.mxu0 0
      %2704 = vmatprep.subr.bf16.mxu0 0
      %2705 = vmatpush1.bf16.xpose.msra.mxu0 0
      %2706 = vmatprep.subr.bf16.mxu0 0
      %2707 = vmatpush1.bf16.xpose.msra.mxu0 0
      %2708 = vmatprep.subr.bf16.mxu0 0
      %2709 = vmatpush1.bf16.xpose.msra.mxu0 0
      %2710 = vmatprep.mubr.bf16.mxu0 0
      %2711 = vmatmul.mubr.bf16.gmra.mrb[0].mxu0 %v2674
      %v2712 = vpop.f32.mrb[0].mxu0
      %v2713 = vadd.f32 %v2039, %v2712
      %v2714 = vpop.f32.mrb[0].mxu0
      %v2715 = vpop.f32.mrb[0].mxu0
      %v2716 = vpop.f32.mrb[0].mxu0
      %2717 = vdwg.mxu0
      %v2719 = vsel %vm2040, %v1893, 0
      %v2721 = vsel %vm2040, %v1990, 0
      %2723 = vmatprep.subr.bf16.mxu0 0
      %2724 = vmatpush1.bf16.xpose.msra.mxu0 %v2721
      %2725 = vmatprep.subr.bf16.mxu0 0
      %2726 = vmatpush1.bf16.xpose.msra.mxu0 %v2046
      %2727 = vmatprep.subr.bf16.mxu0 0
      %2728 = vmatpush1.bf16.xpose.msra.mxu0 %v2046
      %2729 = vmatprep.subr.bf16.mxu0 0
      %2730 = vmatpush1.bf16.xpose.msra.mxu0 %v2046
      %2731 = vmatprep.subr.bf16.mxu0 0
      %2732 = vmatpush1.bf16.xpose.msra.mxu0 %v2046
      %2733 = vmatprep.subr.bf16.mxu0 0
      %2734 = vmatpush1.bf16.xpose.msra.mxu0 %v2046
      %2735 = vmatprep.subr.bf16.mxu0 0
      %2736 = vmatpush1.bf16.xpose.msra.mxu0 %v2046
      %2737 = vmatprep.subr.bf16.mxu0 0
      %2738 = vmatpush1.bf16.xpose.msra.mxu0 %v2046
      %2739 = vmatprep.subr.bf16.mxu0 0
      %2740 = vmatpush1.bf16.xpose.msra.mxu0 0
      %2741 = vmatprep.subr.bf16.mxu0 0
      %2742 = vmatpush1.bf16.xpose.msra.mxu0 0
      %2743 = vmatprep.subr.bf16.mxu0 0
      %2744 = vmatpush1.bf16.xpose.msra.mxu0 0
      %2745 = vmatprep.subr.bf16.mxu0 0
      %2746 = vmatpush1.bf16.xpose.msra.mxu0 0
      %2747 = vmatprep.subr.bf16.mxu0 0
      %2748 = vmatpush1.bf16.xpose.msra.mxu0 0
      %2749 = vmatprep.subr.bf16.mxu0 0
      %2750 = vmatpush1.bf16.xpose.msra.mxu0 0
      %2751 = vmatprep.subr.bf16.mxu0 0
      %2752 = vmatpush1.bf16.xpose.msra.mxu0 0
      %2753 = vmatprep.subr.bf16.mxu0 0
      %2754 = vmatpush1.bf16.xpose.msra.mxu0 0
      %2755 = vmatprep.mubr.bf16.mxu0 0
      %2756 = vmatmul.mubr.bf16.gmra.mrb[0].mxu0 %v2719
      %v2757 = vpop.f32.mrb[0].mxu0
      %v2758 = vadd.f32 %v2039, %v2757
      %v2759 = vpop.f32.mrb[0].mxu0
      %v2760 = vpop.f32.mrb[0].mxu0
      %v2761 = vpop.f32.mrb[0].mxu0
      %2762 = vdwg.mxu0
      %2763 = vmax.xlane.f32.xlu0 %v2083
      %v2764 = vpop.xlane.xlu0 %2763
      %2765 = vmax.xlane.f32.xlu0 %v2128
      %v2766 = vpop.xlane.xlu0 %2765
      %2767 = vmax.xlane.f32.xlu0 %v2173
      %v2768 = vpop.xlane.xlu0 %2767
      %2769 = vmax.xlane.f32.xlu0 %v2218
      %v2770 = vpop.xlane.xlu0 %2769
      %2771 = vmax.xlane.f32.xlu0 %v2263
      %v2772 = vpop.xlane.xlu0 %2771
      %2773 = vmax.xlane.f32.xlu0 %v2308
      %v2774 = vpop.xlane.xlu0 %2773
      %2775 = vmax.xlane.f32.xlu0 %v2353
      %v2776 = vpop.xlane.xlu0 %2775
      %2777 = vmax.xlane.f32.xlu0 %v2398
      %v2778 = vpop.xlane.xlu0 %2777
      %2779 = vmax.xlane.f32.xlu0 %v2443
      %v2780 = vpop.xlane.xlu0 %2779
      %2781 = vmax.xlane.f32.xlu0 %v2488
      %v2782 = vpop.xlane.xlu0 %2781
      %2783 = vmax.xlane.f32.xlu0 %v2533
      %v2784 = vpop.xlane.xlu0 %2783
      %2785 = vmax.xlane.f32.xlu0 %v2578
      %v2786 = vpop.xlane.xlu0 %2785
      %2787 = vmax.xlane.f32.xlu0 %v2623
      %v2788 = vpop.xlane.xlu0 %2787
      %2789 = vmax.xlane.f32.xlu0 %v2668
      %v2790 = vpop.xlane.xlu0 %2789
      %2791 = vmax.xlane.f32.xlu0 %v2713
      %v2792 = vpop.xlane.xlu0 %2791
      %2793 = vmax.xlane.f32.xlu0 %v2758
      %v2794 = vpop.xlane.xlu0 %2793
      %v2795 = vsub.f32 %v2083, %v2764
      %v2796 = vsub.f32 %v2128, %v2766
      %v2797 = vsub.f32 %v2173, %v2768
      %v2798 = vsub.f32 %v2218, %v2770
      %v2799 = vsub.f32 %v2263, %v2772
      %v2800 = vsub.f32 %v2308, %v2774
      %v2801 = vsub.f32 %v2353, %v2776
      %v2802 = vsub.f32 %v2398, %v2778
      %v2803 = vsub.f32 %v2443, %v2780
      %v2804 = vsub.f32 %v2488, %v2782
      %v2805 = vsub.f32 %v2533, %v2784
      %v2806 = vsub.f32 %v2578, %v2786
      %v2807 = vsub.f32 %v2623, %v2788
      %v2808 = vsub.f32 %v2668, %v2790
      %v2809 = vsub.f32 %v2713, %v2792
      %v2810 = vsub.f32 %v2758, %v2794
      %v2811 = vmul.f32 %v2795, 1.442695
      %v2812 = vpow.pop %v2811
      %v2813 = vmul.f32 %v2796, 1.442695
      %v2814 = vpow.pop %v2813
      %v2815 = vmul.f32 %v2797, 1.442695
      %v2816 = vpow.pop %v2815
      %v2817 = vmul.f32 %v2798, 1.442695
      %v2818 = vpow.pop %v2817
      %v2819 = vmul.f32 %v2799, 1.442695
      %v2820 = vpow.pop %v2819
      %v2821 = vmul.f32 %v2800, 1.442695
      %v2822 = vpow.pop %v2821
      %v2823 = vmul.f32 %v2801, 1.442695
      %v2824 = vpow.pop %v2823
      %v2825 = vmul.f32 %v2802, 1.442695
      %v2826 = vpow.pop %v2825
      %v2827 = vmul.f32 %v2803, 1.442695
      %v2828 = vpow.pop %v2827
      %v2829 = vmul.f32 %v2804, 1.442695
      %v2830 = vpow.pop %v2829
      %v2831 = vmul.f32 %v2805, 1.442695
      %v2832 = vpow.pop %v2831
      %v2833 = vmul.f32 %v2806, 1.442695
      %v2834 = vpow.pop %v2833
      %v2835 = vmul.f32 %v2807, 1.442695
      %v2836 = vpow.pop %v2835
      %v2837 = vmul.f32 %v2808, 1.442695
      %v2838 = vpow.pop %v2837
      %v2839 = vmul.f32 %v2809, 1.442695
      %v2840 = vpow.pop %v2839
      %v2841 = vmul.f32 %v2810, 1.442695
      %v2842 = vpow.pop %v2841
      %2843 = vadd.xlane.f32.xlu0 %v2812
      %v2844 = vpop.xlane.xlu0 %2843
      %2845 = vadd.xlane.f32.xlu0 %v2814
      %v2846 = vpop.xlane.xlu0 %2845
      %2847 = vadd.xlane.f32.xlu0 %v2816
      %v2848 = vpop.xlane.xlu0 %2847
      %2849 = vadd.xlane.f32.xlu0 %v2818
      %v2850 = vpop.xlane.xlu0 %2849
      %2851 = vadd.xlane.f32.xlu0 %v2820
      %v2852 = vpop.xlane.xlu0 %2851
      %2853 = vadd.xlane.f32.xlu0 %v2822
      %v2854 = vpop.xlane.xlu0 %2853
      %2855 = vadd.xlane.f32.xlu0 %v2824
      %v2856 = vpop.xlane.xlu0 %2855
      %2857 = vadd.xlane.f32.xlu0 %v2826
      %v2858 = vpop.xlane.xlu0 %2857
      %2859 = vadd.xlane.f32.xlu0 %v2828
      %v2860 = vpop.xlane.xlu0 %2859
      %2861 = vadd.xlane.f32.xlu0 %v2830
      %v2862 = vpop.xlane.xlu0 %2861
      %2863 = vadd.xlane.f32.xlu0 %v2832
      %v2864 = vpop.xlane.xlu0 %2863
      %2865 = vadd.xlane.f32.xlu0 %v2834
      %v2866 = vpop.xlane.xlu0 %2865
      %2867 = vadd.xlane.f32.xlu0 %v2836
      %v2868 = vpop.xlane.xlu0 %2867
      %2869 = vadd.xlane.f32.xlu0 %v2838
      %v2870 = vpop.xlane.xlu0 %2869
      %2871 = vadd.xlane.f32.xlu0 %v2840
      %v2872 = vpop.xlane.xlu0 %2871
      %2873 = vadd.xlane.f32.xlu0 %v2842
      %v2874 = vpop.xlane.xlu0 %2873
      %v2875 = vrcp.pop %v2844
      %v2876 = vrcp.pop %v2846
      %v2877 = vrcp.pop %v2848
      %v2878 = vrcp.pop %v2850
      %v2879 = vrcp.pop %v2852
      %v2880 = vrcp.pop %v2854
      %v2881 = vrcp.pop %v2856
      %v2882 = vrcp.pop %v2858
      %v2883 = vrcp.pop %v2860
      %v2884 = vrcp.pop %v2862
      %v2885 = vrcp.pop %v2864
      %v2886 = vrcp.pop %v2866
      %v2887 = vrcp.pop %v2868
      %v2888 = vrcp.pop %v2870
      %v2889 = vrcp.pop %v2872
      %v2890 = vrcp.pop %v2874
      %v2891 = vmul.f32 %v2812, %v2875
      %v2892 = vmul.f32 %v2814, %v2876
      %v2893 = vmul.f32 %v2816, %v2877
      %v2894 = vmul.f32 %v2818, %v2878
      %v2895 = vmul.f32 %v2820, %v2879
      %v2896 = vmul.f32 %v2822, %v2880
      %v2897 = vmul.f32 %v2824, %v2881
      %v2898 = vmul.f32 %v2826, %v2882
      %v2899 = vmul.f32 %v2828, %v2883
      %v2900 = vmul.f32 %v2830, %v2884
      %v2901 = vmul.f32 %v2832, %v2885
      %v2902 = vmul.f32 %v2834, %v2886
      %v2903 = vmul.f32 %v2836, %v2887
      %v2904 = vmul.f32 %v2838, %v2888
      %v2905 = vmul.f32 %v2840, %v2889
      %v2906 = vmul.f32 %v2842, %v2890
      %v2907 = vpack.c.bf16 %v2891, %v2891
      %v2908 = vpack.c.bf16 %v2892, %v2892
      %v2909 = vpack.c.bf16 %v2893, %v2893
      %v2910 = vpack.c.bf16 %v2894, %v2894
      %v2911 = vpack.c.bf16 %v2895, %v2895
      %v2912 = vpack.c.bf16 %v2896, %v2896
      %v2913 = vpack.c.bf16 %v2897, %v2897
      %v2914 = vpack.c.bf16 %v2898, %v2898
      %v2915 = vpack.c.bf16 %v2899, %v2899
      %v2916 = vpack.c.bf16 %v2900, %v2900
      %v2917 = vpack.c.bf16 %v2901, %v2901
      %v2918 = vpack.c.bf16 %v2902, %v2902
      %v2919 = vpack.c.bf16 %v2903, %v2903
      %v2920 = vpack.c.bf16 %v2904, %v2904
      %v2921 = vpack.c.bf16 %v2905, %v2905
      %v2922 = vpack.c.bf16 %v2906, %v2906
      %2923 = vmatprep.subr.bf16.mxu0 0
      %2924 = vmatpush1.bf16.msra.mxu0 %v1992
      %2925 = vmatprep.subr.bf16.mxu0 0
      %2926 = vmatpush1.bf16.msra.mxu0 0
      %2927 = vmatprep.subr.bf16.mxu0 0
      %2928 = vmatpush1.bf16.msra.mxu0 0
      %2929 = vmatprep.subr.bf16.mxu0 0
      %2930 = vmatpush1.bf16.msra.mxu0 0
      %2931 = vmatprep.subr.bf16.mxu0 0
      %2932 = vmatpush1.bf16.msra.mxu0 0
      %2933 = vmatprep.subr.bf16.mxu0 0
      %2934 = vmatpush1.bf16.msra.mxu0 0
      %2935 = vmatprep.subr.bf16.mxu0 0
      %2936 = vmatpush1.bf16.msra.mxu0 0
      %2937 = vmatprep.subr.bf16.mxu0 0
      %2938 = vmatpush1.bf16.msra.mxu0 0
      %2939 = vmatprep.subr.bf16.mxu0 0
      %2940 = vmatpush1.bf16.msra.mxu0 0
      %2941 = vmatprep.subr.bf16.mxu0 0
      %2942 = vmatpush1.bf16.msra.mxu0 0
      %2943 = vmatprep.subr.bf16.mxu0 0
      %2944 = vmatpush1.bf16.msra.mxu0 0
      %2945 = vmatprep.subr.bf16.mxu0 0
      %2946 = vmatpush1.bf16.msra.mxu0 0
      %2947 = vmatprep.subr.bf16.mxu0 0
      %2948 = vmatpush1.bf16.msra.mxu0 0
      %2949 = vmatprep.subr.bf16.mxu0 0
      %2950 = vmatpush1.bf16.msra.mxu0 0
      %2951 = vmatprep.subr.bf16.mxu0 0
      %2952 = vmatpush1.bf16.msra.mxu0 0
      %2953 = vmatprep.subr.bf16.mxu0 0
      %2954 = vmatpush1.bf16.msra.mxu0 0
      %2955 = vmatprep.mubr.bf16.mxu0 0
      %2956 = vmatmul.mubr.bf16.gmra.mrb[0].mxu0 %v2907
      %v2957 = vpop.f32.mrb[0].mxu0
      %v2958 = vadd.f32 0.0, %v2957
      %v2959 = vpop.f32.mrb[0].mxu0
      %v2960 = vpop.f32.mrb[0].mxu0
      %v2961 = vpop.f32.mrb[0].mxu0
      %2962 = vdwg.mxu0
      %2963 = vmatprep.subr.bf16.mxu0 0
      %2964 = vmatpush1.bf16.msra.mxu0 %v1995
      %2965 = vmatprep.subr.bf16.mxu0 0
      %2966 = vmatpush1.bf16.msra.mxu0 0
      %2967 = vmatprep.subr.bf16.mxu0 0
      %2968 = vmatpush1.bf16.msra.mxu0 0
      %2969 = vmatprep.subr.bf16.mxu0 0
      %2970 = vmatpush1.bf16.msra.mxu0 0
      %2971 = vmatprep.subr.bf16.mxu0 0
      %2972 = vmatpush1.bf16.msra.mxu0 0
      %2973 = vmatprep.subr.bf16.mxu0 0
      %2974 = vmatpush1.bf16.msra.mxu0 0
      %2975 = vmatprep.subr.bf16.mxu0 0
      %2976 = vmatpush1.bf16.msra.mxu0 0
      %2977 = vmatprep.subr.bf16.mxu0 0
      %2978 = vmatpush1.bf16.msra.mxu0 0
      %2979 = vmatprep.subr.bf16.mxu0 0
      %2980 = vmatpush1.bf16.msra.mxu0 0
      %2981 = vmatprep.subr.bf16.mxu0 0
      %2982 = vmatpush1.bf16.msra.mxu0 0
      %2983 = vmatprep.subr.bf16.mxu0 0
      %2984 = vmatpush1.bf16.msra.mxu0 0
      %2985 = vmatprep.subr.bf16.mxu0 0
      %2986 = vmatpush1.bf16.msra.mxu0 0
      %2987 = vmatprep.subr.bf16.mxu0 0
      %2988 = vmatpush1.bf16.msra.mxu0 0
      %2989 = vmatprep.subr.bf16.mxu0 0
      %2990 = vmatpush1.bf16.msra.mxu0 0
      %2991 = vmatprep.subr.bf16.mxu0 0
      %2992 = vmatpush1.bf16.msra.mxu0 0
      %2993 = vmatprep.subr.bf16.mxu0 0
      %2994 = vmatpush1.bf16.msra.mxu0 0
      %2995 = vmatprep.mubr.bf16.mxu0 0
      %2996 = vmatmul.mubr.bf16.gmra.mrb[0].mxu0 %v2908
      %v2997 = vpop.f32.mrb[0].mxu0
      %v2998 = vadd.f32 0.0, %v2997
      %v2999 = vpop.f32.mrb[0].mxu0
      %v3000 = vpop.f32.mrb[0].mxu0
      %v3001 = vpop.f32.mrb[0].mxu0
      %3002 = vdwg.mxu0
      %3003 = vmatprep.subr.bf16.mxu0 0
      %3004 = vmatpush1.bf16.msra.mxu0 %v1998
      %3005 = vmatprep.subr.bf16.mxu0 0
      %3006 = vmatpush1.bf16.msra.mxu0 0
      %3007 = vmatprep.subr.bf16.mxu0 0
      %3008 = vmatpush1.bf16.msra.mxu0 0
      %3009 = vmatprep.subr.bf16.mxu0 0
      %3010 = vmatpush1.bf16.msra.mxu0 0
      %3011 = vmatprep.subr.bf16.mxu0 0
      %3012 = vmatpush1.bf16.msra.mxu0 0
      %3013 = vmatprep.subr.bf16.mxu0 0
      %3014 = vmatpush1.bf16.msra.mxu0 0
      %3015 = vmatprep.subr.bf16.mxu0 0
      %3016 = vmatpush1.bf16.msra.mxu0 0
      %3017 = vmatprep.subr.bf16.mxu0 0
      %3018 = vmatpush1.bf16.msra.mxu0 0
      %3019 = vmatprep.subr.bf16.mxu0 0
      %3020 = vmatpush1.bf16.msra.mxu0 0
      %3021 = vmatprep.subr.bf16.mxu0 0
      %3022 = vmatpush1.bf16.msra.mxu0 0
      %3023 = vmatprep.subr.bf16.mxu0 0
      %3024 = vmatpush1.bf16.msra.mxu0 0
      %3025 = vmatprep.subr.bf16.mxu0 0
      %3026 = vmatpush1.bf16.msra.mxu0 0
      %3027 = vmatprep.subr.bf16.mxu0 0
      %3028 = vmatpush1.bf16.msra.mxu0 0
      %3029 = vmatprep.subr.bf16.mxu0 0
      %3030 = vmatpush1.bf16.msra.mxu0 0
      %3031 = vmatprep.subr.bf16.mxu0 0
      %3032 = vmatpush1.bf16.msra.mxu0 0
      %3033 = vmatprep.subr.bf16.mxu0 0
      %3034 = vmatpush1.bf16.msra.mxu0 0
      %3035 = vmatprep.mubr.bf16.mxu0 0
      %3036 = vmatmul.mubr.bf16.gmra.mrb[0].mxu0 %v2909
      %v3037 = vpop.f32.mrb[0].mxu0
      %v3038 = vadd.f32 0.0, %v3037
      %v3039 = vpop.f32.mrb[0].mxu0
      %v3040 = vpop.f32.mrb[0].mxu0
      %v3041 = vpop.f32.mrb[0].mxu0
      %3042 = vdwg.mxu0
      %3043 = vmatprep.subr.bf16.mxu0 0
      %3044 = vmatpush1.bf16.msra.mxu0 %v2001
      %3045 = vmatprep.subr.bf16.mxu0 0
      %3046 = vmatpush1.bf16.msra.mxu0 0
      %3047 = vmatprep.subr.bf16.mxu0 0
      %3048 = vmatpush1.bf16.msra.mxu0 0
      %3049 = vmatprep.subr.bf16.mxu0 0
      %3050 = vmatpush1.bf16.msra.mxu0 0
      %3051 = vmatprep.subr.bf16.mxu0 0
      %3052 = vmatpush1.bf16.msra.mxu0 0
      %3053 = vmatprep.subr.bf16.mxu0 0
      %3054 = vmatpush1.bf16.msra.mxu0 0
      %3055 = vmatprep.subr.bf16.mxu0 0
      %3056 = vmatpush1.bf16.msra.mxu0 0
      %3057 = vmatprep.subr.bf16.mxu0 0
      %3058 = vmatpush1.bf16.msra.mxu0 0
      %3059 = vmatprep.subr.bf16.mxu0 0
      %3060 = vmatpush1.bf16.msra.mxu0 0
      %3061 = vmatprep.subr.bf16.mxu0 0
      %3062 = vmatpush1.bf16.msra.mxu0 0
      %3063 = vmatprep.subr.bf16.mxu0 0
      %3064 = vmatpush1.bf16.msra.mxu0 0
      %3065 = vmatprep.subr.bf16.mxu0 0
      %3066 = vmatpush1.bf16.msra.mxu0 0
      %3067 = vmatprep.subr.bf16.mxu0 0
      %3068 = vmatpush1.bf16.msra.mxu0 0
      %3069 = vmatprep.subr.bf16.mxu0 0
      %3070 = vmatpush1.bf16.msra.mxu0 0
      %3071 = vmatprep.subr.bf16.mxu0 0
      %3072 = vmatpush1.bf16.msra.mxu0 0
      %3073 = vmatprep.subr.bf16.mxu0 0
      %3074 = vmatpush1.bf16.msra.mxu0 0
      %3075 = vmatprep.mubr.bf16.mxu0 0
      %3076 = vmatmul.mubr.bf16.gmra.mrb[0].mxu0 %v2910
      %v3077 = vpop.f32.mrb[0].mxu0
      %v3078 = vadd.f32 0.0, %v3077
      %v3079 = vpop.f32.mrb[0].mxu0
      %v3080 = vpop.f32.mrb[0].mxu0
      %v3081 = vpop.f32.mrb[0].mxu0
      %3082 = vdwg.mxu0
      %3083 = vmatprep.subr.bf16.mxu0 0
      %3084 = vmatpush1.bf16.msra.mxu0 %v2004
      %3085 = vmatprep.subr.bf16.mxu0 0
      %3086 = vmatpush1.bf16.msra.mxu0 0
      %3087 = vmatprep.subr.bf16.mxu0 0
      %3088 = vmatpush1.bf16.msra.mxu0 0
      %3089 = vmatprep.subr.bf16.mxu0 0
      %3090 = vmatpush1.bf16.msra.mxu0 0
      %3091 = vmatprep.subr.bf16.mxu0 0
      %3092 = vmatpush1.bf16.msra.mxu0 0
      %3093 = vmatprep.subr.bf16.mxu0 0
      %3094 = vmatpush1.bf16.msra.mxu0 0
      %3095 = vmatprep.subr.bf16.mxu0 0
      %3096 = vmatpush1.bf16.msra.mxu0 0
      %3097 = vmatprep.subr.bf16.mxu0 0
      %3098 = vmatpush1.bf16.msra.mxu0 0
      %3099 = vmatprep.subr.bf16.mxu0 0
      %3100 = vmatpush1.bf16.msra.mxu0 0
      %3101 = vmatprep.subr.bf16.mxu0 0
      %3102 = vmatpush1.bf16.msra.mxu0 0
      %3103 = vmatprep.subr.bf16.mxu0 0
      %3104 = vmatpush1.bf16.msra.mxu0 0
      %3105 = vmatprep.subr.bf16.mxu0 0
      %3106 = vmatpush1.bf16.msra.mxu0 0
      %3107 = vmatprep.subr.bf16.mxu0 0
      %3108 = vmatpush1.bf16.msra.mxu0 0
      %3109 = vmatprep.subr.bf16.mxu0 0
      %3110 = vmatpush1.bf16.msra.mxu0 0
      %3111 = vmatprep.subr.bf16.mxu0 0
      %3112 = vmatpush1.bf16.msra.mxu0 0
      %3113 = vmatprep.subr.bf16.mxu0 0
      %3114 = vmatpush1.bf16.msra.mxu0 0
      %3115 = vmatprep.mubr.bf16.mxu0 0
      %3116 = vmatmul.mubr.bf16.gmra.mrb[0].mxu0 %v2911
      %v3117 = vpop.f32.mrb[0].mxu0
      %v3118 = vadd.f32 0.0, %v3117
      %v3119 = vpop.f32.mrb[0].mxu0
      %v3120 = vpop.f32.mrb[0].mxu0
      %v3121 = vpop.f32.mrb[0].mxu0
      %3122 = vdwg.mxu0
      %3123 = vmatprep.subr.bf16.mxu0 0
      %3124 = vmatpush1.bf16.msra.mxu0 %v2007
      %3125 = vmatprep.subr.bf16.mxu0 0
      %3126 = vmatpush1.bf16.msra.mxu0 0
      %3127 = vmatprep.subr.bf16.mxu0 0
      %3128 = vmatpush1.bf16.msra.mxu0 0
      %3129 = vmatprep.subr.bf16.mxu0 0
      %3130 = vmatpush1.bf16.msra.mxu0 0
      %3131 = vmatprep.subr.bf16.mxu0 0
      %3132 = vmatpush1.bf16.msra.mxu0 0
      %3133 = vmatprep.subr.bf16.mxu0 0
      %3134 = vmatpush1.bf16.msra.mxu0 0
      %3135 = vmatprep.subr.bf16.mxu0 0
      %3136 = vmatpush1.bf16.msra.mxu0 0
      %3137 = vmatprep.subr.bf16.mxu0 0
      %3138 = vmatpush1.bf16.msra.mxu0 0
      %3139 = vmatprep.subr.bf16.mxu0 0
      %3140 = vmatpush1.bf16.msra.mxu0 0
      %3141 = vmatprep.subr.bf16.mxu0 0
      %3142 = vmatpush1.bf16.msra.mxu0 0
      %3143 = vmatprep.subr.bf16.mxu0 0
      %3144 = vmatpush1.bf16.msra.mxu0 0
      %3145 = vmatprep.subr.bf16.mxu0 0
      %3146 = vmatpush1.bf16.msra.mxu0 0
      %3147 = vmatprep.subr.bf16.mxu0 0
      %3148 = vmatpush1.bf16.msra.mxu0 0
      %3149 = vmatprep.subr.bf16.mxu0 0
      %3150 = vmatpush1.bf16.msra.mxu0 0
      %3151 = vmatprep.subr.bf16.mxu0 0
      %3152 = vmatpush1.bf16.msra.mxu0 0
      %3153 = vmatprep.subr.bf16.mxu0 0
      %3154 = vmatpush1.bf16.msra.mxu0 0
      %3155 = vmatprep.mubr.bf16.mxu0 0
      %3156 = vmatmul.mubr.bf16.gmra.mrb[0].mxu0 %v2912
      %v3157 = vpop.f32.mrb[0].mxu0
      %v3158 = vadd.f32 0.0, %v3157
      %v3159 = vpop.f32.mrb[0].mxu0
      %v3160 = vpop.f32.mrb[0].mxu0
      %v3161 = vpop.f32.mrb[0].mxu0
      %3162 = vdwg.mxu0
      %3163 = vmatprep.subr.bf16.mxu0 0
      %3164 = vmatpush1.bf16.msra.mxu0 %v2010
      %3165 = vmatprep.subr.bf16.mxu0 0
      %3166 = vmatpush1.bf16.msra.mxu0 0
      %3167 = vmatprep.subr.bf16.mxu0 0
      %3168 = vmatpush1.bf16.msra.mxu0 0
      %3169 = vmatprep.subr.bf16.mxu0 0
      %3170 = vmatpush1.bf16.msra.mxu0 0
      %3171 = vmatprep.subr.bf16.mxu0 0
      %3172 = vmatpush1.bf16.msra.mxu0 0
      %3173 = vmatprep.subr.bf16.mxu0 0
      %3174 = vmatpush1.bf16.msra.mxu0 0
      %3175 = vmatprep.subr.bf16.mxu0 0
      %3176 = vmatpush1.bf16.msra.mxu0 0
      %3177 = vmatprep.subr.bf16.mxu0 0
      %3178 = vmatpush1.bf16.msra.mxu0 0
      %3179 = vmatprep.subr.bf16.mxu0 0
      %3180 = vmatpush1.bf16.msra.mxu0 0
      %3181 = vmatprep.subr.bf16.mxu0 0
      %3182 = vmatpush1.bf16.msra.mxu0 0
      %3183 = vmatprep.subr.bf16.mxu0 0
      %3184 = vmatpush1.bf16.msra.mxu0 0
      %3185 = vmatprep.subr.bf16.mxu0 0
      %3186 = vmatpush1.bf16.msra.mxu0 0
      %3187 = vmatprep.subr.bf16.mxu0 0
      %3188 = vmatpush1.bf16.msra.mxu0 0
      %3189 = vmatprep.subr.bf16.mxu0 0
      %3190 = vmatpush1.bf16.msra.mxu0 0
      %3191 = vmatprep.subr.bf16.mxu0 0
      %3192 = vmatpush1.bf16.msra.mxu0 0
      %3193 = vmatprep.subr.bf16.mxu0 0
      %3194 = vmatpush1.bf16.msra.mxu0 0
      %3195 = vmatprep.mubr.bf16.mxu0 0
      %3196 = vmatmul.mubr.bf16.gmra.mrb[0].mxu0 %v2913
      %v3197 = vpop.f32.mrb[0].mxu0
      %v3198 = vadd.f32 0.0, %v3197
      %v3199 = vpop.f32.mrb[0].mxu0
      %v3200 = vpop.f32.mrb[0].mxu0
      %v3201 = vpop.f32.mrb[0].mxu0
      %3202 = vdwg.mxu0
      %3203 = vmatprep.subr.bf16.mxu0 0
      %3204 = vmatpush1.bf16.msra.mxu0 %v2013
      %3205 = vmatprep.subr.bf16.mxu0 0
      %3206 = vmatpush1.bf16.msra.mxu0 0
      %3207 = vmatprep.subr.bf16.mxu0 0
      %3208 = vmatpush1.bf16.msra.mxu0 0
      %3209 = vmatprep.subr.bf16.mxu0 0
      %3210 = vmatpush1.bf16.msra.mxu0 0
      %3211 = vmatprep.subr.bf16.mxu0 0
      %3212 = vmatpush1.bf16.msra.mxu0 0
      %3213 = vmatprep.subr.bf16.mxu0 0
      %3214 = vmatpush1.bf16.msra.mxu0 0
      %3215 = vmatprep.subr.bf16.mxu0 0
      %3216 = vmatpush1.bf16.msra.mxu0 0
      %3217 = vmatprep.subr.bf16.mxu0 0
      %3218 = vmatpush1.bf16.msra.mxu0 0
      %3219 = vmatprep.subr.bf16.mxu0 0
      %3220 = vmatpush1.bf16.msra.mxu0 0
      %3221 = vmatprep.subr.bf16.mxu0 0
      %3222 = vmatpush1.bf16.msra.mxu0 0
      %3223 = vmatprep.subr.bf16.mxu0 0
      %3224 = vmatpush1.bf16.msra.mxu0 0
      %3225 = vmatprep.subr.bf16.mxu0 0
      %3226 = vmatpush1.bf16.msra.mxu0 0
      %3227 = vmatprep.subr.bf16.mxu0 0
      %3228 = vmatpush1.bf16.msra.mxu0 0
      %3229 = vmatprep.subr.bf16.mxu0 0
      %3230 = vmatpush1.bf16.msra.mxu0 0
      %3231 = vmatprep.subr.bf16.mxu0 0
      %3232 = vmatpush1.bf16.msra.mxu0 0
      %3233 = vmatprep.subr.bf16.mxu0 0
      %3234 = vmatpush1.bf16.msra.mxu0 0
      %3235 = vmatprep.mubr.bf16.mxu0 0
      %3236 = vmatmul.mubr.bf16.gmra.mrb[0].mxu0 %v2914
      %v3237 = vpop.f32.mrb[0].mxu0
      %v3238 = vadd.f32 0.0, %v3237
      %v3239 = vpop.f32.mrb[0].mxu0
      %v3240 = vpop.f32.mrb[0].mxu0
      %v3241 = vpop.f32.mrb[0].mxu0
      %3242 = vdwg.mxu0
      %3243 = vmatprep.subr.bf16.mxu0 0
      %3244 = vmatpush1.bf16.msra.mxu0 %v2016
      %3245 = vmatprep.subr.bf16.mxu0 0
      %3246 = vmatpush1.bf16.msra.mxu0 0
      %3247 = vmatprep.subr.bf16.mxu0 0
      %3248 = vmatpush1.bf16.msra.mxu0 0
      %3249 = vmatprep.subr.bf16.mxu0 0
      %3250 = vmatpush1.bf16.msra.mxu0 0
      %3251 = vmatprep.subr.bf16.mxu0 0
      %3252 = vmatpush1.bf16.msra.mxu0 0
      %3253 = vmatprep.subr.bf16.mxu0 0
      %3254 = vmatpush1.bf16.msra.mxu0 0
      %3255 = vmatprep.subr.bf16.mxu0 0
      %3256 = vmatpush1.bf16.msra.mxu0 0
      %3257 = vmatprep.subr.bf16.mxu0 0
      %3258 = vmatpush1.bf16.msra.mxu0 0
      %3259 = vmatprep.subr.bf16.mxu0 0
      %3260 = vmatpush1.bf16.msra.mxu0 0
      %3261 = vmatprep.subr.bf16.mxu0 0
      %3262 = vmatpush1.bf16.msra.mxu0 0
      %3263 = vmatprep.subr.bf16.mxu0 0
      %3264 = vmatpush1.bf16.msra.mxu0 0
      %3265 = vmatprep.subr.bf16.mxu0 0
      %3266 = vmatpush1.bf16.msra.mxu0 0
      %3267 = vmatprep.subr.bf16.mxu0 0
      %3268 = vmatpush1.bf16.msra.mxu0 0
      %3269 = vmatprep.subr.bf16.mxu0 0
      %3270 = vmatpush1.bf16.msra.mxu0 0
      %3271 = vmatprep.subr.bf16.mxu0 0
      %3272 = vmatpush1.bf16.msra.mxu0 0
      %3273 = vmatprep.subr.bf16.mxu0 0
      %3274 = vmatpush1.bf16.msra.mxu0 0
      %3275 = vmatprep.mubr.bf16.mxu0 0
      %3276 = vmatmul.mubr.bf16.gmra.mrb[0].mxu0 %v2915
      %v3277 = vpop.f32.mrb[0].mxu0
      %v3278 = vadd.f32 0.0, %v3277
      %v3279 = vpop.f32.mrb[0].mxu0
      %v3280 = vpop.f32.mrb[0].mxu0
      %v3281 = vpop.f32.mrb[0].mxu0
      %3282 = vdwg.mxu0
      %3283 = vmatprep.subr.bf16.mxu0 0
      %3284 = vmatpush1.bf16.msra.mxu0 %v2019
      %3285 = vmatprep.subr.bf16.mxu0 0
      %3286 = vmatpush1.bf16.msra.mxu0 0
      %3287 = vmatprep.subr.bf16.mxu0 0
      %3288 = vmatpush1.bf16.msra.mxu0 0
      %3289 = vmatprep.subr.bf16.mxu0 0
      %3290 = vmatpush1.bf16.msra.mxu0 0
      %3291 = vmatprep.subr.bf16.mxu0 0
      %3292 = vmatpush1.bf16.msra.mxu0 0
      %3293 = vmatprep.subr.bf16.mxu0 0
      %3294 = vmatpush1.bf16.msra.mxu0 0
      %3295 = vmatprep.subr.bf16.mxu0 0
      %3296 = vmatpush1.bf16.msra.mxu0 0
      %3297 = vmatprep.subr.bf16.mxu0 0
      %3298 = vmatpush1.bf16.msra.mxu0 0
      %3299 = vmatprep.subr.bf16.mxu0 0
      %3300 = vmatpush1.bf16.msra.mxu0 0
      %3301 = vmatprep.subr.bf16.mxu0 0
      %3302 = vmatpush1.bf16.msra.mxu0 0
      %3303 = vmatprep.subr.bf16.mxu0 0
      %3304 = vmatpush1.bf16.msra.mxu0 0
      %3305 = vmatprep.subr.bf16.mxu0 0
      %3306 = vmatpush1.bf16.msra.mxu0 0
      %3307 = vmatprep.subr.bf16.mxu0 0
      %3308 = vmatpush1.bf16.msra.mxu0 0
      %3309 = vmatprep.subr.bf16.mxu0 0
      %3310 = vmatpush1.bf16.msra.mxu0 0
      %3311 = vmatprep.subr.bf16.mxu0 0
      %3312 = vmatpush1.bf16.msra.mxu0 0
      %3313 = vmatprep.subr.bf16.mxu0 0
      %3314 = vmatpush1.bf16.msra.mxu0 0
      %3315 = vmatprep.mubr.bf16.mxu0 0
      %3316 = vmatmul.mubr.bf16.gmra.mrb[0].mxu0 %v2916
      %v3317 = vpop.f32.mrb[0].mxu0
      %v3318 = vadd.f32 0.0, %v3317
      %v3319 = vpop.f32.mrb[0].mxu0
      %v3320 = vpop.f32.mrb[0].mxu0
      %v3321 = vpop.f32.mrb[0].mxu0
      %3322 = vdwg.mxu0
      %3323 = vmatprep.subr.bf16.mxu0 0
      %3324 = vmatpush1.bf16.msra.mxu0 %v2022
      %3325 = vmatprep.subr.bf16.mxu0 0
      %3326 = vmatpush1.bf16.msra.mxu0 0
      %3327 = vmatprep.subr.bf16.mxu0 0
      %3328 = vmatpush1.bf16.msra.mxu0 0
      %3329 = vmatprep.subr.bf16.mxu0 0
      %3330 = vmatpush1.bf16.msra.mxu0 0
      %3331 = vmatprep.subr.bf16.mxu0 0
      %3332 = vmatpush1.bf16.msra.mxu0 0
      %3333 = vmatprep.subr.bf16.mxu0 0
      %3334 = vmatpush1.bf16.msra.mxu0 0
      %3335 = vmatprep.subr.bf16.mxu0 0
      %3336 = vmatpush1.bf16.msra.mxu0 0
      %3337 = vmatprep.subr.bf16.mxu0 0
      %3338 = vmatpush1.bf16.msra.mxu0 0
      %3339 = vmatprep.subr.bf16.mxu0 0
      %3340 = vmatpush1.bf16.msra.mxu0 0
      %3341 = vmatprep.subr.bf16.mxu0 0
      %3342 = vmatpush1.bf16.msra.mxu0 0
      %3343 = vmatprep.subr.bf16.mxu0 0
      %3344 = vmatpush1.bf16.msra.mxu0 0
      %3345 = vmatprep.subr.bf16.mxu0 0
      %3346 = vmatpush1.bf16.msra.mxu0 0
      %3347 = vmatprep.subr.bf16.mxu0 0
      %3348 = vmatpush1.bf16.msra.mxu0 0
      %3349 = vmatprep.subr.bf16.mxu0 0
      %3350 = vmatpush1.bf16.msra.mxu0 0
      %3351 = vmatprep.subr.bf16.mxu0 0
      %3352 = vmatpush1.bf16.msra.mxu0 0
      %3353 = vmatprep.subr.bf16.mxu0 0
      %3354 = vmatpush1.bf16.msra.mxu0 0
      %3355 = vmatprep.mubr.bf16.mxu0 0
      %3356 = vmatmul.mubr.bf16.gmra.mrb[0].mxu0 %v2917
      %v3357 = vpop.f32.mrb[0].mxu0
      %v3358 = vadd.f32 0.0, %v3357
      %v3359 = vpop.f32.mrb[0].mxu0
      %v3360 = vpop.f32.mrb[0].mxu0
      %v3361 = vpop.f32.mrb[0].mxu0
      %3362 = vdwg.mxu0
      %3363 = vmatprep.subr.bf16.mxu0 0
      %3364 = vmatpush1.bf16.msra.mxu0 %v2025
      %3365 = vmatprep.subr.bf16.mxu0 0
      %3366 = vmatpush1.bf16.msra.mxu0 0
      %3367 = vmatprep.subr.bf16.mxu0 0
      %3368 = vmatpush1.bf16.msra.mxu0 0
      %3369 = vmatprep.subr.bf16.mxu0 0
      %3370 = vmatpush1.bf16.msra.mxu0 0
      %3371 = vmatprep.subr.bf16.mxu0 0
      %3372 = vmatpush1.bf16.msra.mxu0 0
      %3373 = vmatprep.subr.bf16.mxu0 0
      %3374 = vmatpush1.bf16.msra.mxu0 0
      %3375 = vmatprep.subr.bf16.mxu0 0
      %3376 = vmatpush1.bf16.msra.mxu0 0
      %3377 = vmatprep.subr.bf16.mxu0 0
      %3378 = vmatpush1.bf16.msra.mxu0 0
      %3379 = vmatprep.subr.bf16.mxu0 0
      %3380 = vmatpush1.bf16.msra.mxu0 0
      %3381 = vmatprep.subr.bf16.mxu0 0
      %3382 = vmatpush1.bf16.msra.mxu0 0
      %3383 = vmatprep.subr.bf16.mxu0 0
      %3384 = vmatpush1.bf16.msra.mxu0 0
      %3385 = vmatprep.subr.bf16.mxu0 0
      %3386 = vmatpush1.bf16.msra.mxu0 0
      %3387 = vmatprep.subr.bf16.mxu0 0
      %3388 = vmatpush1.bf16.msra.mxu0 0
      %3389 = vmatprep.subr.bf16.mxu0 0
      %3390 = vmatpush1.bf16.msra.mxu0 0
      %3391 = vmatprep.subr.bf16.mxu0 0
      %3392 = vmatpush1.bf16.msra.mxu0 0
      %3393 = vmatprep.subr.bf16.mxu0 0
      %3394 = vmatpush1.bf16.msra.mxu0 0
      %3395 = vmatprep.mubr.bf16.mxu0 0
      %3396 = vmatmul.mubr.bf16.gmra.mrb[0].mxu0 %v2918
      %v3397 = vpop.f32.mrb[0].mxu0
      %v3398 = vadd.f32 0.0, %v3397
      %v3399 = vpop.f32.mrb[0].mxu0
      %v3400 = vpop.f32.mrb[0].mxu0
      %v3401 = vpop.f32.mrb[0].mxu0
      %3402 = vdwg.mxu0
      %3403 = vmatprep.subr.bf16.mxu0 0
      %3404 = vmatpush1.bf16.msra.mxu0 %v2028
      %3405 = vmatprep.subr.bf16.mxu0 0
      %3406 = vmatpush1.bf16.msra.mxu0 0
      %3407 = vmatprep.subr.bf16.mxu0 0
      %3408 = vmatpush1.bf16.msra.mxu0 0
      %3409 = vmatprep.subr.bf16.mxu0 0
      %3410 = vmatpush1.bf16.msra.mxu0 0
      %3411 = vmatprep.subr.bf16.mxu0 0
      %3412 = vmatpush1.bf16.msra.mxu0 0
      %3413 = vmatprep.subr.bf16.mxu0 0
      %3414 = vmatpush1.bf16.msra.mxu0 0
      %3415 = vmatprep.subr.bf16.mxu0 0
      %3416 = vmatpush1.bf16.msra.mxu0 0
      %3417 = vmatprep.subr.bf16.mxu0 0
      %3418 = vmatpush1.bf16.msra.mxu0 0
      %3419 = vmatprep.subr.bf16.mxu0 0
      %3420 = vmatpush1.bf16.msra.mxu0 0
      %3421 = vmatprep.subr.bf16.mxu0 0
      %3422 = vmatpush1.bf16.msra.mxu0 0
      %3423 = vmatprep.subr.bf16.mxu0 0
      %3424 = vmatpush1.bf16.msra.mxu0 0
      %3425 = vmatprep.subr.bf16.mxu0 0
      %3426 = vmatpush1.bf16.msra.mxu0 0
      %3427 = vmatprep.subr.bf16.mxu0 0
      %3428 = vmatpush1.bf16.msra.mxu0 0
      %3429 = vmatprep.subr.bf16.mxu0 0
      %3430 = vmatpush1.bf16.msra.mxu0 0
      %3431 = vmatprep.subr.bf16.mxu0 0
      %3432 = vmatpush1.bf16.msra.mxu0 0
      %3433 = vmatprep.subr.bf16.mxu0 0
      %3434 = vmatpush1.bf16.msra.mxu0 0
      %3435 = vmatprep.mubr.bf16.mxu0 0
      %3436 = vmatmul.mubr.bf16.gmra.mrb[0].mxu0 %v2919
      %v3437 = vpop.f32.mrb[0].mxu0
      %v3438 = vadd.f32 0.0, %v3437
      %v3439 = vpop.f32.mrb[0].mxu0
      %v3440 = vpop.f32.mrb[0].mxu0
      %v3441 = vpop.f32.mrb[0].mxu0
      %3442 = vdwg.mxu0
      %3443 = vmatprep.subr.bf16.mxu0 0
      %3444 = vmatpush1.bf16.msra.mxu0 %v2031
      %3445 = vmatprep.subr.bf16.mxu0 0
      %3446 = vmatpush1.bf16.msra.mxu0 0
      %3447 = vmatprep.subr.bf16.mxu0 0
      %3448 = vmatpush1.bf16.msra.mxu0 0
      %3449 = vmatprep.subr.bf16.mxu0 0
      %3450 = vmatpush1.bf16.msra.mxu0 0
      %3451 = vmatprep.subr.bf16.mxu0 0
      %3452 = vmatpush1.bf16.msra.mxu0 0
      %3453 = vmatprep.subr.bf16.mxu0 0
      %3454 = vmatpush1.bf16.msra.mxu0 0
      %3455 = vmatprep.subr.bf16.mxu0 0
      %3456 = vmatpush1.bf16.msra.mxu0 0
      %3457 = vmatprep.subr.bf16.mxu0 0
      %3458 = vmatpush1.bf16.msra.mxu0 0
      %3459 = vmatprep.subr.bf16.mxu0 0
      %3460 = vmatpush1.bf16.msra.mxu0 0
      %3461 = vmatprep.subr.bf16.mxu0 0
      %3462 = vmatpush1.bf16.msra.mxu0 0
      %3463 = vmatprep.subr.bf16.mxu0 0
      %3464 = vmatpush1.bf16.msra.mxu0 0
      %3465 = vmatprep.subr.bf16.mxu0 0
      %3466 = vmatpush1.bf16.msra.mxu0 0
      %3467 = vmatprep.subr.bf16.mxu0 0
      %3468 = vmatpush1.bf16.msra.mxu0 0
      %3469 = vmatprep.subr.bf16.mxu0 0
      %3470 = vmatpush1.bf16.msra.mxu0 0
      %3471 = vmatprep.subr.bf16.mxu0 0
      %3472 = vmatpush1.bf16.msra.mxu0 0
      %3473 = vmatprep.subr.bf16.mxu0 0
      %3474 = vmatpush1.bf16.msra.mxu0 0
      %3475 = vmatprep.mubr.bf16.mxu0 0
      %3476 = vmatmul.mubr.bf16.gmra.mrb[0].mxu0 %v2920
      %v3477 = vpop.f32.mrb[0].mxu0
      %v3478 = vadd.f32 0.0, %v3477
      %v3479 = vpop.f32.mrb[0].mxu0
      %v3480 = vpop.f32.mrb[0].mxu0
      %v3481 = vpop.f32.mrb[0].mxu0
      %3482 = vdwg.mxu0
      %3483 = vmatprep.subr.bf16.mxu0 0
      %3484 = vmatpush1.bf16.msra.mxu0 %v2034
      %3485 = vmatprep.subr.bf16.mxu0 0
      %3486 = vmatpush1.bf16.msra.mxu0 0
      %3487 = vmatprep.subr.bf16.mxu0 0
      %3488 = vmatpush1.bf16.msra.mxu0 0
      %3489 = vmatprep.subr.bf16.mxu0 0
      %3490 = vmatpush1.bf16.msra.mxu0 0
      %3491 = vmatprep.subr.bf16.mxu0 0
      %3492 = vmatpush1.bf16.msra.mxu0 0
      %3493 = vmatprep.subr.bf16.mxu0 0
      %3494 = vmatpush1.bf16.msra.mxu0 0
      %3495 = vmatprep.subr.bf16.mxu0 0
      %3496 = vmatpush1.bf16.msra.mxu0 0
      %3497 = vmatprep.subr.bf16.mxu0 0
      %3498 = vmatpush1.bf16.msra.mxu0 0
      %3499 = vmatprep.subr.bf16.mxu0 0
      %3500 = vmatpush1.bf16.msra.mxu0 0
      %3501 = vmatprep.subr.bf16.mxu0 0
      %3502 = vmatpush1.bf16.msra.mxu0 0
      %3503 = vmatprep.subr.bf16.mxu0 0
      %3504 = vmatpush1.bf16.msra.mxu0 0
      %3505 = vmatprep.subr.bf16.mxu0 0
      %3506 = vmatpush1.bf16.msra.mxu0 0
      %3507 = vmatprep.subr.bf16.mxu0 0
      %3508 = vmatpush1.bf16.msra.mxu0 0
      %3509 = vmatprep.subr.bf16.mxu0 0
      %3510 = vmatpush1.bf16.msra.mxu0 0
      %3511 = vmatprep.subr.bf16.mxu0 0
      %3512 = vmatpush1.bf16.msra.mxu0 0
      %3513 = vmatprep.subr.bf16.mxu0 0
      %3514 = vmatpush1.bf16.msra.mxu0 0
      %3515 = vmatprep.mubr.bf16.mxu0 0
      %3516 = vmatmul.mubr.bf16.gmra.mrb[0].mxu0 %v2921
      %v3517 = vpop.f32.mrb[0].mxu0
      %v3518 = vadd.f32 0.0, %v3517
      %v3519 = vpop.f32.mrb[0].mxu0
      %v3520 = vpop.f32.mrb[0].mxu0
      %v3521 = vpop.f32.mrb[0].mxu0
      %3522 = vdwg.mxu0
      %3523 = vmatprep.subr.bf16.mxu0 0
      %3524 = vmatpush1.bf16.msra.mxu0 %v2037
      %3525 = vmatprep.subr.bf16.mxu0 0
      %3526 = vmatpush1.bf16.msra.mxu0 0
      %3527 = vmatprep.subr.bf16.mxu0 0
      %3528 = vmatpush1.bf16.msra.mxu0 0
      %3529 = vmatprep.subr.bf16.mxu0 0
      %3530 = vmatpush1.bf16.msra.mxu0 0
      %3531 = vmatprep.subr.bf16.mxu0 0
      %3532 = vmatpush1.bf16.msra.mxu0 0
      %3533 = vmatprep.subr.bf16.mxu0 0
      %3534 = vmatpush1.bf16.msra.mxu0 0
      %3535 = vmatprep.subr.bf16.mxu0 0
      %3536 = vmatpush1.bf16.msra.mxu0 0
      %3537 = vmatprep.subr.bf16.mxu0 0
      %3538 = vmatpush1.bf16.msra.mxu0 0
      %3539 = vmatprep.subr.bf16.mxu0 0
      %3540 = vmatpush1.bf16.msra.mxu0 0
      %3541 = vmatprep.subr.bf16.mxu0 0
      %3542 = vmatpush1.bf16.msra.mxu0 0
      %3543 = vmatprep.subr.bf16.mxu0 0
      %3544 = vmatpush1.bf16.msra.mxu0 0
      %3545 = vmatprep.subr.bf16.mxu0 0
      %3546 = vmatpush1.bf16.msra.mxu0 0
      %3547 = vmatprep.subr.bf16.mxu0 0
      %3548 = vmatpush1.bf16.msra.mxu0 0
      %3549 = vmatprep.subr.bf16.mxu0 0
      %3550 = vmatpush1.bf16.msra.mxu0 0
      %3551 = vmatprep.subr.bf16.mxu0 0
      %3552 = vmatpush1.bf16.msra.mxu0 0
      %3553 = vmatprep.subr.bf16.mxu0 0
      %3554 = vmatpush1.bf16.msra.mxu0 0
      %3555 = vmatprep.mubr.bf16.mxu0 0
      %3556 = vmatmul.mubr.bf16.gmra.mrb[0].mxu0 %v2922
      %v3557 = vpop.f32.mrb[0].mxu0
      %v3558 = vadd.f32 0.0, %v3557
      %v3559 = vpop.f32.mrb[0].mxu0
      %v3560 = vpop.f32.mrb[0].mxu0
      %v3561 = vpop.f32.mrb[0].mxu0
      %3562 = vdwg.mxu0
      %v3563 = vpack.c.bf16 %v2958, %v2958
      %v3564 = vpack.c.bf16 %v2998, %v2998
      %v3565 = vpack.c.bf16 %v3038, %v3038
      %v3566 = vpack.c.bf16 %v3078, %v3078
      %v3567 = vpack.c.bf16 %v3118, %v3118
      %v3568 = vpack.c.bf16 %v3158, %v3158
      %v3569 = vpack.c.bf16 %v3198, %v3198
      %v3570 = vpack.c.bf16 %v3238, %v3238
      %v3571 = vpack.c.bf16 %v3278, %v3278
      %v3572 = vpack.c.bf16 %v3318, %v3318
      %v3573 = vpack.c.bf16 %v3358, %v3358
      %v3574 = vpack.c.bf16 %v3398, %v3398
      %v3575 = vpack.c.bf16 %v3438, %v3438
      %v3576 = vpack.c.bf16 %v3478, %v3478
      %v3577 = vpack.c.bf16 %v3518, %v3518
      %v3578 = vpack.c.bf16 %v3558, %v3558
      %v3581 = vpack.i.b16 %v3567, %v3563
      %v3582 = vshrl.u32 %v3563, 16
      %v3583 = vshrl.u32 %v3567, 16
      %v3584 = vpack.i.b16 %v3583, %v3582
      %v3587 = vpack.i.b16 %v3575, %v3571
      %v3588 = vshrl.u32 %v3571, 16
      %v3589 = vshrl.u32 %v3575, 16
      %v3590 = vpack.i.b16 %v3589, %v3588
      %v3593 = vpack.i.b16 %v3568, %v3564
      %v3594 = vshrl.u32 %v3564, 16
      %v3595 = vshrl.u32 %v3568, 16
      %v3596 = vpack.i.b16 %v3595, %v3594
      %v3599 = vpack.i.b16 %v3576, %v3572
      %v3600 = vshrl.u32 %v3572, 16
      %v3601 = vshrl.u32 %v3576, 16
      %v3602 = vpack.i.b16 %v3601, %v3600
      %v3605 = vpack.i.b16 %v3569, %v3565
      %v3606 = vshrl.u32 %v3565, 16
      %v3607 = vshrl.u32 %v3569, 16
      %v3608 = vpack.i.b16 %v3607, %v3606
      %v3611 = vpack.i.b16 %v3577, %v3573
      %v3612 = vshrl.u32 %v3573, 16
      %v3613 = vshrl.u32 %v3577, 16
      %v3614 = vpack.i.b16 %v3613, %v3612
      %v3617 = vpack.i.b16 %v3570, %v3566
      %v3618 = vshrl.u32 %v3566, 16
      %v3619 = vshrl.u32 %v3570, 16
      %v3620 = vpack.i.b16 %v3619, %v3618
      %v3623 = vpack.i.b16 %v3578, %v3574
      %v3624 = vshrl.u32 %v3574, 16
      %v3625 = vshrl.u32 %v3578, 16
      %v3626 = vpack.i.b16 %v3625, %v3624
      %v3629 = vunpack.c.l.s4 1983009808
      %v3630 = vunpack.c.0.s8 %v3629
      %v3631 = vlaneseq
      %v3632 = vshrl.u32 %v3631, 7
      %v3633 = vsub.s32 %v3630, %v3632
      %v3634 = vrot.slane %v3581, %v3633
      %v3637 = vunpack.c.l.s4 1983009808
      %v3638 = vunpack.c.0.s8 %v3637
      %v3639 = vlaneseq
      %v3640 = vshrl.u32 %v3639, 7
      %v3641 = vsub.s32 %v3638, %v3640
      %v3642 = vrot.slane %v3587, %v3641
      %v3643 = vcombine.low %v3634, %v3642
      %v3644 = vcombine.high %v3634, %v3642
      %v3646 = vunpack.c.l.s4 1934713408
      %v3647 = vunpack.c.0.s8 %v3646
      %v3648 = vlaneseq
      %v3649 = vshrl.u32 %v3648, 7
      %v3650 = vsub.s32 %v3647, %v3649
      %v3651 = vrot.slane %v3643, %v3650
      %v3653 = vunpack.c.l.s4 1934713408
      %v3654 = vunpack.c.0.s8 %v3653
      %v3655 = vlaneseq
      %v3656 = vshrl.u32 %v3655, 7
      %v3657 = vsub.s32 %v3654, %v3656
      %v3658 = vrot.slane %v3644, %v3657
      %v3659 = vcombine.high %v3651, 0
      %v3660 = vcombine.high %v3658, 0
      %v3663 = vunpack.c.l.s4 1983009808
      %v3664 = vunpack.c.0.s8 %v3663
      %v3665 = vlaneseq
      %v3666 = vshrl.u32 %v3665, 7
      %v3667 = vsub.s32 %v3664, %v3666
      %v3668 = vrot.slane %v3584, %v3667
      %v3671 = vunpack.c.l.s4 1983009808
      %v3672 = vunpack.c.0.s8 %v3671
      %v3673 = vlaneseq
      %v3674 = vshrl.u32 %v3673, 7
      %v3675 = vsub.s32 %v3672, %v3674
      %v3676 = vrot.slane %v3590, %v3675
      %v3677 = vcombine.low %v3668, %v3676
      %v3678 = vcombine.high %v3668, %v3676
      %v3680 = vunpack.c.l.s4 1934713408
      %v3681 = vunpack.c.0.s8 %v3680
      %v3682 = vlaneseq
      %v3683 = vshrl.u32 %v3682, 7
      %v3684 = vsub.s32 %v3681, %v3683
      %v3685 = vrot.slane %v3677, %v3684
      %v3687 = vunpack.c.l.s4 1934713408
      %v3688 = vunpack.c.0.s8 %v3687
      %v3689 = vlaneseq
      %v3690 = vshrl.u32 %v3689, 7
      %v3691 = vsub.s32 %v3688, %v3690
      %v3692 = vrot.slane %v3678, %v3691
      %v3693 = vcombine.high %v3685, 0
      %v3694 = vcombine.high %v3692, 0
      %v3697 = vunpack.c.l.s4 1983009808
      %v3698 = vunpack.c.0.s8 %v3697
      %v3699 = vlaneseq
      %v3700 = vshrl.u32 %v3699, 7
      %v3701 = vsub.s32 %v3698, %v3700
      %v3702 = vrot.slane %v3593, %v3701
      %v3705 = vunpack.c.l.s4 1983009808
      %v3706 = vunpack.c.0.s8 %v3705
      %v3707 = vlaneseq
      %v3708 = vshrl.u32 %v3707, 7
      %v3709 = vsub.s32 %v3706, %v3708
      %v3710 = vrot.slane %v3599, %v3709
      %v3711 = vcombine.low %v3702, %v3710
      %v3712 = vcombine.high %v3702, %v3710
      %v3714 = vunpack.c.l.s4 1934713408
      %v3715 = vunpack.c.0.s8 %v3714
      %v3716 = vlaneseq
      %v3717 = vshrl.u32 %v3716, 7
      %v3718 = vsub.s32 %v3715, %v3717
      %v3719 = vrot.slane %v3711, %v3718
      %v3721 = vunpack.c.l.s4 1934713408
      %v3722 = vunpack.c.0.s8 %v3721
      %v3723 = vlaneseq
      %v3724 = vshrl.u32 %v3723, 7
      %v3725 = vsub.s32 %v3722, %v3724
      %v3726 = vrot.slane %v3712, %v3725
      %v3727 = vcombine.high %v3719, 0
      %v3728 = vcombine.high %v3726, 0
      %v3731 = vunpack.c.l.s4 1983009808
      %v3732 = vunpack.c.0.s8 %v3731
      %v3733 = vlaneseq
      %v3734 = vshrl.u32 %v3733, 7
      %v3735 = vsub.s32 %v3732, %v3734
      %v3736 = vrot.slane %v3596, %v3735
      %v3739 = vunpack.c.l.s4 1983009808
      %v3740 = vunpack.c.0.s8 %v3739
      %v3741 = vlaneseq
      %v3742 = vshrl.u32 %v3741, 7
      %v3743 = vsub.s32 %v3740, %v3742
      %v3744 = vrot.slane %v3602, %v3743
      %v3745 = vcombine.low %v3736, %v3744
      %v3746 = vcombine.high %v3736, %v3744
      %v3748 = vunpack.c.l.s4 1934713408
      %v3749 = vunpack.c.0.s8 %v3748
      %v3750 = vlaneseq
      %v3751 = vshrl.u32 %v3750, 7
      %v3752 = vsub.s32 %v3749, %v3751
      %v3753 = vrot.slane %v3745, %v3752
      %v3755 = vunpack.c.l.s4 1934713408
      %v3756 = vunpack.c.0.s8 %v3755
      %v3757 = vlaneseq
      %v3758 = vshrl.u32 %v3757, 7
      %v3759 = vsub.s32 %v3756, %v3758
      %v3760 = vrot.slane %v3746, %v3759
      %v3761 = vcombine.high %v3753, 0
      %v3762 = vcombine.high %v3760, 0
      %v3765 = vunpack.c.l.s4 1983009808
      %v3766 = vunpack.c.0.s8 %v3765
      %v3767 = vlaneseq
      %v3768 = vshrl.u32 %v3767, 7
      %v3769 = vsub.s32 %v3766, %v3768
      %v3770 = vrot.slane %v3605, %v3769
      %v3773 = vunpack.c.l.s4 1983009808
      %v3774 = vunpack.c.0.s8 %v3773
      %v3775 = vlaneseq
      %v3776 = vshrl.u32 %v3775, 7
      %v3777 = vsub.s32 %v3774, %v3776
      %v3778 = vrot.slane %v3611, %v3777
      %v3779 = vcombine.low %v3770, %v3778
      %v3780 = vcombine.high %v3770, %v3778
      %v3782 = vunpack.c.l.s4 1934713408
      %v3783 = vunpack.c.0.s8 %v3782
      %v3784 = vlaneseq
      %v3785 = vshrl.u32 %v3784, 7
      %v3786 = vsub.s32 %v3783, %v3785
      %v3787 = vrot.slane %v3779, %v3786
      %v3789 = vunpack.c.l.s4 1934713408
      %v3790 = vunpack.c.0.s8 %v3789
      %v3791 = vlaneseq
      %v3792 = vshrl.u32 %v3791, 7
      %v3793 = vsub.s32 %v3790, %v3792
      %v3794 = vrot.slane %v3780, %v3793
      %v3795 = vcombine.high %v3787, 0
      %v3796 = vcombine.high %v3794, 0
      %v3799 = vunpack.c.l.s4 1983009808
      %v3800 = vunpack.c.0.s8 %v3799
      %v3801 = vlaneseq
      %v3802 = vshrl.u32 %v3801, 7
      %v3803 = vsub.s32 %v3800, %v3802
      %v3804 = vrot.slane %v3608, %v3803
      %v3807 = vunpack.c.l.s4 1983009808
      %v3808 = vunpack.c.0.s8 %v3807
      %v3809 = vlaneseq
      %v3810 = vshrl.u32 %v3809, 7
      %v3811 = vsub.s32 %v3808, %v3810
      %v3812 = vrot.slane %v3614, %v3811
      %v3813 = vcombine.low %v3804, %v3812
      %v3814 = vcombine.high %v3804, %v3812
      %v3816 = vunpack.c.l.s4 1934713408
      %v3817 = vunpack.c.0.s8 %v3816
      %v3818 = vlaneseq
      %v3819 = vshrl.u32 %v3818, 7
      %v3820 = vsub.s32 %v3817, %v3819
      %v3821 = vrot.slane %v3813, %v3820
      %v3823 = vunpack.c.l.s4 1934713408
      %v3824 = vunpack.c.0.s8 %v3823
      %v3825 = vlaneseq
      %v3826 = vshrl.u32 %v3825, 7
      %v3827 = vsub.s32 %v3824, %v3826
      %v3828 = vrot.slane %v3814, %v3827
      %v3829 = vcombine.high %v3821, 0
      %v3830 = vcombine.high %v3828, 0
      %v3833 = vunpack.c.l.s4 1983009808
      %v3834 = vunpack.c.0.s8 %v3833
      %v3835 = vlaneseq
      %v3836 = vshrl.u32 %v3835, 7
      %v3837 = vsub.s32 %v3834, %v3836
      %v3838 = vrot.slane %v3617, %v3837
      %v3841 = vunpack.c.l.s4 1983009808
      %v3842 = vunpack.c.0.s8 %v3841
      %v3843 = vlaneseq
      %v3844 = vshrl.u32 %v3843, 7
      %v3845 = vsub.s32 %v3842, %v3844
      %v3846 = vrot.slane %v3623, %v3845
      %v3847 = vcombine.low %v3838, %v3846
      %v3848 = vcombine.high %v3838, %v3846
      %v3850 = vunpack.c.l.s4 1934713408
      %v3851 = vunpack.c.0.s8 %v3850
      %v3852 = vlaneseq
      %v3853 = vshrl.u32 %v3852, 7
      %v3854 = vsub.s32 %v3851, %v3853
      %v3855 = vrot.slane %v3847, %v3854
      %v3857 = vunpack.c.l.s4 1934713408
      %v3858 = vunpack.c.0.s8 %v3857
      %v3859 = vlaneseq
      %v3860 = vshrl.u32 %v3859, 7
      %v3861 = vsub.s32 %v3858, %v3860
      %v3862 = vrot.slane %v3848, %v3861
      %v3863 = vcombine.high %v3855, 0
      %v3864 = vcombine.high %v3862, 0
      %v3867 = vunpack.c.l.s4 1983009808
      %v3868 = vunpack.c.0.s8 %v3867
      %v3869 = vlaneseq
      %v3870 = vshrl.u32 %v3869, 7
      %v3871 = vsub.s32 %v3868, %v3870
      %v3872 = vrot.slane %v3620, %v3871
      %v3875 = vunpack.c.l.s4 1983009808
      %v3876 = vunpack.c.0.s8 %v3875
      %v3877 = vlaneseq
      %v3878 = vshrl.u32 %v3877, 7
      %v3879 = vsub.s32 %v3876, %v3878
      %v3880 = vrot.slane %v3626, %v3879
      %v3881 = vcombine.low %v3872, %v3880
      %v3882 = vcombine.high %v3872, %v3880
      %v3884 = vunpack.c.l.s4 1934713408
      %v3885 = vunpack.c.0.s8 %v3884
      %v3886 = vlaneseq
      %v3887 = vshrl.u32 %v3886, 7
      %v3888 = vsub.s32 %v3885, %v3887
      %v3889 = vrot.slane %v3881, %v3888
      %v3891 = vunpack.c.l.s4 1934713408
      %v3892 = vunpack.c.0.s8 %v3891
      %v3893 = vlaneseq
      %v3894 = vshrl.u32 %v3893, 7
      %v3895 = vsub.s32 %v3892, %v3894
      %v3896 = vrot.slane %v3882, %v3895
      %v3897 = vcombine.high %v3889, 0
      %v3898 = vcombine.high %v3896, 0
      %v3899 = vcombine.low %v3651, %v3658
      %v3901 = vunpack.c.l.s4 1983009808
      %v3902 = vunpack.c.0.s8 %v3901
      %v3903 = vlaneseq
      %v3904 = vshrl.u32 %v3903, 7
      %v3905 = vsub.s32 %v3902, %v3904
      %v3906 = vrot.slane %v3899, %v3905
      %v3907 = vcombine.low %v3659, %v3660
      %v3909 = vunpack.c.l.s4 1983009808
      %v3910 = vunpack.c.0.s8 %v3909
      %v3911 = vlaneseq
      %v3912 = vshrl.u32 %v3911, 7
      %v3913 = vsub.s32 %v3910, %v3912
      %v3914 = vrot.slane %v3907, %v3913
      %v3915 = vcombine.low %v3906, %v3914
      %v3917 = vunpack.c.l.s4 1934713408
      %v3918 = vunpack.c.0.s8 %v3917
      %v3919 = vlaneseq
      %v3920 = vshrl.u32 %v3919, 7
      %v3921 = vsub.s32 %v3918, %v3920
      %v3922 = vrot.slane %v3915, %v3921
      %v3923 = vcombine.high %v3922, 0
      %v3924 = vcombine.low %v3685, %v3692
      %v3926 = vunpack.c.l.s4 1983009808
      %v3927 = vunpack.c.0.s8 %v3926
      %v3928 = vlaneseq
      %v3929 = vshrl.u32 %v3928, 7
      %v3930 = vsub.s32 %v3927, %v3929
      %v3931 = vrot.slane %v3924, %v3930
      %v3932 = vcombine.low %v3693, %v3694
      %v3934 = vunpack.c.l.s4 1983009808
      %v3935 = vunpack.c.0.s8 %v3934
      %v3936 = vlaneseq
      %v3937 = vshrl.u32 %v3936, 7
      %v3938 = vsub.s32 %v3935, %v3937
      %v3939 = vrot.slane %v3932, %v3938
      %v3940 = vcombine.low %v3931, %v3939
      %v3942 = vunpack.c.l.s4 1934713408
      %v3943 = vunpack.c.0.s8 %v3942
      %v3944 = vlaneseq
      %v3945 = vshrl.u32 %v3944, 7
      %v3946 = vsub.s32 %v3943, %v3945
      %v3947 = vrot.slane %v3940, %v3946
      %v3948 = vcombine.high %v3947, 0
      %v3949 = vcombine.low %v3719, %v3726
      %v3951 = vunpack.c.l.s4 1983009808
      %v3952 = vunpack.c.0.s8 %v3951
      %v3953 = vlaneseq
      %v3954 = vshrl.u32 %v3953, 7
      %v3955 = vsub.s32 %v3952, %v3954
      %v3956 = vrot.slane %v3949, %v3955
      %v3957 = vcombine.low %v3727, %v3728
      %v3959 = vunpack.c.l.s4 1983009808
      %v3960 = vunpack.c.0.s8 %v3959
      %v3961 = vlaneseq
      %v3962 = vshrl.u32 %v3961, 7
      %v3963 = vsub.s32 %v3960, %v3962
      %v3964 = vrot.slane %v3957, %v3963
      %v3965 = vcombine.low %v3956, %v3964
      %v3967 = vunpack.c.l.s4 1934713408
      %v3968 = vunpack.c.0.s8 %v3967
      %v3969 = vlaneseq
      %v3970 = vshrl.u32 %v3969, 7
      %v3971 = vsub.s32 %v3968, %v3970
      %v3972 = vrot.slane %v3965, %v3971
      %v3973 = vcombine.high %v3972, 0
      %v3974 = vcombine.low %v3753, %v3760
      %v3976 = vunpack.c.l.s4 1983009808
      %v3977 = vunpack.c.0.s8 %v3976
      %v3978 = vlaneseq
      %v3979 = vshrl.u32 %v3978, 7
      %v3980 = vsub.s32 %v3977, %v3979
      %v3981 = vrot.slane %v3974, %v3980
      %v3982 = vcombine.low %v3761, %v3762
      %v3984 = vunpack.c.l.s4 1983009808
      %v3985 = vunpack.c.0.s8 %v3984
      %v3986 = vlaneseq
      %v3987 = vshrl.u32 %v3986, 7
      %v3988 = vsub.s32 %v3985, %v3987
      %v3989 = vrot.slane %v3982, %v3988
      %v3990 = vcombine.low %v3981, %v3989
      %v3992 = vunpack.c.l.s4 1934713408
      %v3993 = vunpack.c.0.s8 %v3992
      %v3994 = vlaneseq
      %v3995 = vshrl.u32 %v3994, 7
      %v3996 = vsub.s32 %v3993, %v3995
      %v3997 = vrot.slane %v3990, %v3996
      %v3998 = vcombine.high %v3997, 0
      %v3999 = vcombine.low %v3787, %v3794
      %v4001 = vunpack.c.l.s4 1983009808
      %v4002 = vunpack.c.0.s8 %v4001
      %v4003 = vlaneseq
      %v4004 = vshrl.u32 %v4003, 7
      %v4005 = vsub.s32 %v4002, %v4004
      %v4006 = vrot.slane %v3999, %v4005
      %v4007 = vcombine.low %v3795, %v3796
      %v4009 = vunpack.c.l.s4 1983009808
      %v4010 = vunpack.c.0.s8 %v4009
      %v4011 = vlaneseq
      %v4012 = vshrl.u32 %v4011, 7
      %v4013 = vsub.s32 %v4010, %v4012
      %v4014 = vrot.slane %v4007, %v4013
      %v4015 = vcombine.low %v4006, %v4014
      %v4017 = vunpack.c.l.s4 1934713408
      %v4018 = vunpack.c.0.s8 %v4017
      %v4019 = vlaneseq
      %v4020 = vshrl.u32 %v4019, 7
      %v4021 = vsub.s32 %v4018, %v4020
      %v4022 = vrot.slane %v4015, %v4021
      %v4023 = vcombine.high %v4022, 0
      %v4024 = vcombine.low %v3821, %v3828
      %v4026 = vunpack.c.l.s4 1983009808
      %v4027 = vunpack.c.0.s8 %v4026
      %v4028 = vlaneseq
      %v4029 = vshrl.u32 %v4028, 7
      %v4030 = vsub.s32 %v4027, %v4029
      %v4031 = vrot.slane %v4024, %v4030
      %v4032 = vcombine.low %v3829, %v3830
      %v4034 = vunpack.c.l.s4 1983009808
      %v4035 = vunpack.c.0.s8 %v4034
      %v4036 = vlaneseq
      %v4037 = vshrl.u32 %v4036, 7
      %v4038 = vsub.s32 %v4035, %v4037
      %v4039 = vrot.slane %v4032, %v4038
      %v4040 = vcombine.low %v4031, %v4039
      %v4042 = vunpack.c.l.s4 1934713408
      %v4043 = vunpack.c.0.s8 %v4042
      %v4044 = vlaneseq
      %v4045 = vshrl.u32 %v4044, 7
      %v4046 = vsub.s32 %v4043, %v4045
      %v4047 = vrot.slane %v4040, %v4046
      %v4048 = vcombine.high %v4047, 0
      %v4049 = vcombine.low %v3855, %v3862
      %v4051 = vunpack.c.l.s4 1983009808
      %v4052 = vunpack.c.0.s8 %v4051
      %v4053 = vlaneseq
      %v4054 = vshrl.u32 %v4053, 7
      %v4055 = vsub.s32 %v4052, %v4054
      %v4056 = vrot.slane %v4049, %v4055
      %v4057 = vcombine.low %v3863, %v3864
      %v4059 = vunpack.c.l.s4 1983009808
      %v4060 = vunpack.c.0.s8 %v4059
      %v4061 = vlaneseq
      %v4062 = vshrl.u32 %v4061, 7
      %v4063 = vsub.s32 %v4060, %v4062
      %v4064 = vrot.slane %v4057, %v4063
      %v4065 = vcombine.low %v4056, %v4064
      %v4067 = vunpack.c.l.s4 1934713408
      %v4068 = vunpack.c.0.s8 %v4067
      %v4069 = vlaneseq
      %v4070 = vshrl.u32 %v4069, 7
      %v4071 = vsub.s32 %v4068, %v4070
      %v4072 = vrot.slane %v4065, %v4071
      %v4073 = vcombine.high %v4072, 0
      %v4074 = vcombine.low %v3889, %v3896
      %v4076 = vunpack.c.l.s4 1983009808
      %v4077 = vunpack.c.0.s8 %v4076
      %v4078 = vlaneseq
      %v4079 = vshrl.u32 %v4078, 7
      %v4080 = vsub.s32 %v4077, %v4079
      %v4081 = vrot.slane %v4074, %v4080
      %v4082 = vcombine.low %v3897, %v3898
      %v4084 = vunpack.c.l.s4 1983009808
      %v4085 = vunpack.c.0.s8 %v4084
      %v4086 = vlaneseq
      %v4087 = vshrl.u32 %v4086, 7
      %v4088 = vsub.s32 %v4085, %v4087
      %v4089 = vrot.slane %v4082, %v4088
      %v4090 = vcombine.low %v4081, %v4089
      %v4092 = vunpack.c.l.s4 1934713408
      %v4093 = vunpack.c.0.s8 %v4092
      %v4094 = vlaneseq
      %v4095 = vshrl.u32 %v4094, 7
      %v4096 = vsub.s32 %v4093, %v4095
      %v4097 = vrot.slane %v4090, %v4096
      %v4098 = vcombine.high %v4097, 0
      %v4101 = vpack.i.b16 %v3947, %v3922
      %v4102 = vshrl.u32 %v3922, 16
      %v4103 = vshrl.u32 %v3947, 16
      %v4104 = vpack.i.b16 %v4103, %v4102
      %v4107 = vpack.i.b16 %v3948, %v3923
      %v4108 = vshrl.u32 %v3923, 16
      %v4109 = vshrl.u32 %v3948, 16
      %v4110 = vpack.i.b16 %v4109, %v4108
      %v4113 = vpack.i.b16 %v3997, %v3972
      %v4114 = vshrl.u32 %v3972, 16
      %v4115 = vshrl.u32 %v3997, 16
      %v4116 = vpack.i.b16 %v4115, %v4114
      %v4119 = vpack.i.b16 %v3998, %v3973
      %v4120 = vshrl.u32 %v3973, 16
      %v4121 = vshrl.u32 %v3998, 16
      %v4122 = vpack.i.b16 %v4121, %v4120
      %v4125 = vpack.i.b16 %v4047, %v4022
      %v4126 = vshrl.u32 %v4022, 16
      %v4127 = vshrl.u32 %v4047, 16
      %v4128 = vpack.i.b16 %v4127, %v4126
      %v4131 = vpack.i.b16 %v4048, %v4023
      %v4132 = vshrl.u32 %v4023, 16
      %v4133 = vshrl.u32 %v4048, 16
      %v4134 = vpack.i.b16 %v4133, %v4132
      %v4137 = vpack.i.b16 %v4097, %v4072
      %v4138 = vshrl.u32 %v4072, 16
      %v4139 = vshrl.u32 %v4097, 16
      %v4140 = vpack.i.b16 %v4139, %v4138
      %v4143 = vpack.i.b16 %v4098, %v4073
      %v4144 = vshrl.u32 %v4073, 16
      %v4145 = vshrl.u32 %v4098, 16
      %v4146 = vpack.i.b16 %v4145, %v4144
      %v4147 = vunpack.c.l.b16 %v4101
      %v4148 = vunpack.c.l.b16 %v4113
      %v4149 = vunpack.c.l.b16 %v4125
      %v4150 = vunpack.c.l.b16 %v4137
      %v4151 = vpack.c.b16 %v4148, %v4147
      %v4152 = vpack.c.b16 %v4150, %v4149
      %v4153 = vunpack.c.l.b16 %v4104
      %v4154 = vunpack.c.l.b16 %v4116
      %v4155 = vunpack.c.l.b16 %v4128
      %v4156 = vunpack.c.l.b16 %v4140
      %v4157 = vpack.c.b16 %v4154, %v4153
      %v4158 = vpack.c.b16 %v4156, %v4155
      %4159 = vrot.lane.b32.xlu0 %v4157, 8
      %v4160 = vpop.permute.xlu0 %4159
      %4161 = vrot.lane.b32.xlu0 %v4158, 8
      %v4162 = vpop.permute.xlu0 %4161
      %v4163 = vunpack.c.l.b16 %v4107
      %v4164 = vunpack.c.l.b16 %v4119
      %v4165 = vunpack.c.l.b16 %v4131
      %v4166 = vunpack.c.l.b16 %v4143
      %v4167 = vpack.c.b16 %v4164, %v4163
      %v4168 = vpack.c.b16 %v4166, %v4165
      %4169 = vrot.lane.b32.xlu0 %v4167, 16
      %v4170 = vpop.permute.xlu0 %4169
      %4171 = vrot.lane.b32.xlu0 %v4168, 16
      %v4172 = vpop.permute.xlu0 %4171
      %v4173 = vunpack.c.l.b16 %v4110
      %v4174 = vunpack.c.l.b16 %v4122
      %v4175 = vunpack.c.l.b16 %v4134
      %v4176 = vunpack.c.l.b16 %v4146
      %v4177 = vpack.c.b16 %v4174, %v4173
      %v4178 = vpack.c.b16 %v4176, %v4175
      %4179 = vrot.lane.b32.xlu0 %v4177, 24
      %v4180 = vpop.permute.xlu0 %4179
      %4181 = vrot.lane.b32.xlu0 %v4178, 24
      %v4182 = vpop.permute.xlu0 %4181
      %v4185 = vsel %vm2040, %v4151, %v4160
      %v4188 = vsel %vm2040, %v4152, %v4162
      %vm4189 = vcmask 130048
      %v4191 = vsel %vm4189, %v4185, %v4170
      %v4193 = vsel %vm4189, %v4188, %v4172
      %vm4194 = vcmask 195584
      %v4196 = vsel %vm4194, %v4191, %v4180
      %v4198 = vsel %vm4194, %v4193, %v4182
      %v4199 = vld [vmem:[%s4] sm:$0xf]
      %v4200 = vld [vmem:[%s4 + $0x4] sm:$0xf]
      %v4201 = vld [vmem:[%s4 + $0x8] sm:$0xf]
      %v4202 = vld [vmem:[%s4 + $0xc] sm:$0xf]
      %v4203 = vld [vmem:[%s5] sm:$0x1]
      %v4205 = vlaneseq
      %v4206 = vshrl.u32 %v4205, 7
      %v4207 = vsub.s32 0, %v4206
      %v4208 = vrot.slane %v4203, %v4207
      %v4214 = vunpack.c.l.b16 %v4199
      %v4215 = vunpack.c.l.b16 %v4200
      %v4216 = vunpack.c.l.b16 %v4201
      %v4217 = vunpack.c.l.b16 %v4202
      %v4218 = vpack.c.b16 %v4215, %v4214
      %v4219 = vpack.c.b16 %v4217, %v4216
      %v4222 = vsel %vm478, %v4196, 0
      %v4224 = vsel %vm478, %v4198, 0
      %4226 = vmatprep.subr.bf16.mxu0 0
      %4227 = vmatpush1.bf16.msra.mxu0 %v4218
      %4228 = vmatprep.subr.bf16.mxu0 0
      %4229 = vmatpush1.bf16.msra.mxu0 %v4219
      %4230 = vmatprep.subr.bf16.mxu0 0
      %4231 = vmatpush1.bf16.msra.mxu0 0
      %4232 = vmatprep.subr.bf16.mxu0 0
      %4233 = vmatpush1.bf16.msra.mxu0 0
      %4234 = vmatprep.subr.bf16.mxu0 0
      %4235 = vmatpush1.bf16.msra.mxu0 0
      %4236 = vmatprep.subr.bf16.mxu0 0
      %4237 = vmatpush1.bf16.msra.mxu0 0
      %4238 = vmatprep.subr.bf16.mxu0 0
      %4239 = vmatpush1.bf16.msra.mxu0 0
      %4240 = vmatprep.subr.bf16.mxu0 0
      %4241 = vmatpush1.bf16.msra.mxu0 0
      %4242 = vmatprep.subr.bf16.mxu0 0
      %4243 = vmatpush1.bf16.msra.mxu0 0
      %4244 = vmatprep.subr.bf16.mxu0 0
      %4245 = vmatpush1.bf16.msra.mxu0 0
      %4246 = vmatprep.subr.bf16.mxu0 0
      %4247 = vmatpush1.bf16.msra.mxu0 0
      %4248 = vmatprep.subr.bf16.mxu0 0
      %4249 = vmatpush1.bf16.msra.mxu0 0
      %4250 = vmatprep.subr.bf16.mxu0 0
      %4251 = vmatpush1.bf16.msra.mxu0 0
      %4252 = vmatprep.subr.bf16.mxu0 0
      %4253 = vmatpush1.bf16.msra.mxu0 0
      %4254 = vmatprep.subr.bf16.mxu0 0
      %4255 = vmatpush1.bf16.msra.mxu0 0
      %4256 = vmatprep.subr.bf16.mxu0 0
      %4257 = vmatpush1.bf16.msra.mxu0 0
      %4258 = vmatprep.mubr.bf16.mxu0 0
      %4259 = vmatmul.mubr.bf16.gmra.mrb[0].mxu0 %v4222
      %v4260 = vpop.f32.mrb[0].mxu0
      %v4261 = vadd.f32 %v4208, %v4260
      %v4262 = vpop.f32.mrb[0].mxu0
      %v4263 = vpop.f32.mrb[0].mxu0
      %v4264 = vadd.f32 %v4208, %v4263
      %v4265 = vpop.f32.mrb[0].mxu0
      %4266 = vmatprep.mubr.bf16.mxu0 0
      %4267 = vmatmul.mubr.bf16.gmra.mrb[0].mxu0 %v4224
      %v4268 = vpop.f32.mrb[0].mxu0
      %v4269 = vadd.f32 %v4208, %v4268
      %v4270 = vpop.f32.mrb[0].mxu0
      %v4271 = vpop.f32.mrb[0].mxu0
      %v4272 = vadd.f32 %v4208, %v4271
      %v4273 = vpop.f32.mrb[0].mxu0
      %4274 = vdwg.mxu0
      %v4275 = vadd.f32 %v472, %v4261
      %v4276 = vadd.f32 %v473, %v4264
      %v4277 = vadd.f32 %v474, %v4269
      %v4278 = vadd.f32 %v475, %v4272
      %v4279 = vld [vmem:[%s8] sm:$0x1]
      %v4280 = vld [vmem:[%s9] sm:$0x1]
      %v4281 = vsel %vm478, %v4275, 0.0
      %4282 = vadd.xlane.f32.xlu0 %v4281
      %v4283 = vpop.xlane.xlu0 %4282
      %v4284 = vsel %vm478, %v4276, 0.0
      %4285 = vadd.xlane.f32.xlu0 %v4284
      %v4286 = vpop.xlane.xlu0 %4285
      %v4287 = vsel %vm478, %v4277, 0.0
      %4288 = vadd.xlane.f32.xlu0 %v4287
      %v4289 = vpop.xlane.xlu0 %4288
      %v4290 = vsel %vm478, %v4278, 0.0
      %4291 = vadd.xlane.f32.xlu0 %v4290
      %v4292 = vpop.xlane.xlu0 %4291
      %v4293 = vmul.f32 %v4283, %v491
      %v4294 = vmul.f32 %v4286, %v491
      %v4295 = vmul.f32 %v4289, %v491
      %v4296 = vmul.f32 %v4292, %v491
      %v4297 = vsub.f32 %v4275, %v4293
      %v4298 = vsub.f32 %v4276, %v4294
      %v4299 = vsub.f32 %v4277, %v4295
      %v4300 = vsub.f32 %v4278, %v4296
      %v4301 = vmul.f32 %v4297, %v4297
      %v4302 = vmul.f32 %v4298, %v4298
      %v4303 = vmul.f32 %v4299, %v4299
      %v4304 = vmul.f32 %v4300, %v4300
      %v4305 = vsel %vm478, %v4301, 0.0
      %4306 = vadd.xlane.f32.xlu0 %v4305
      %v4307 = vpop.xlane.xlu0 %4306
      %v4308 = vsel %vm478, %v4302, 0.0
      %4309 = vadd.xlane.f32.xlu0 %v4308
      %v4310 = vpop.xlane.xlu0 %4309
      %v4311 = vsel %vm478, %v4303, 0.0
      %4312 = vadd.xlane.f32.xlu0 %v4311
      %v4313 = vpop.xlane.xlu0 %4312
      %v4314 = vsel %vm478, %v4304, 0.0
      %4315 = vadd.xlane.f32.xlu0 %v4314
      %v4316 = vpop.xlane.xlu0 %4315
      %v4317 = vmul.f32 %v4307, %v491
      %v4318 = vmul.f32 %v4310, %v491
      %v4319 = vmul.f32 %v4313, %v491
      %v4320 = vmul.f32 %v4316, %v491
      %v4321 = vadd.f32 %v4317, 1e-05
      %v4322 = vadd.f32 %v4318, 1e-05
      %v4323 = vadd.f32 %v4319, 1e-05
      %v4324 = vadd.f32 %v4320, 1e-05
      %v4325 = vrsqrt.pop %v4321
      %v4326 = vrsqrt.pop %v4322
      %v4327 = vrsqrt.pop %v4323
      %v4328 = vrsqrt.pop %v4324
      %v4329 = vmul.f32 %v4297, %v4325
      %v4330 = vmul.f32 %v4298, %v4326
      %v4331 = vmul.f32 %v4299, %v4327
      %v4332 = vmul.f32 %v4300, %v4328
      %v4334 = vlaneseq
      %v4335 = vshrl.u32 %v4334, 7
      %v4336 = vsub.s32 0, %v4335
      %v4337 = vrot.slane %v4279, %v4336
      %v4339 = vmul.f32 %v4329, %v4337
      %v4340 = vmul.f32 %v4330, %v4337
      %v4341 = vmul.f32 %v4331, %v4337
      %v4342 = vmul.f32 %v4332, %v4337
      %v4344 = vlaneseq
      %v4345 = vshrl.u32 %v4344, 7
      %v4346 = vsub.s32 0, %v4345
      %v4347 = vrot.slane %v4280, %v4346
      %v4349 = vadd.f32 %v4339, %v4347
      %v4350 = vadd.f32 %v4340, %v4347
      %v4351 = vadd.f32 %v4341, %v4347
      %v4352 = vadd.f32 %v4342, %v4347
      %v4353 = vpack.c.bf16 %v4350, %v4349
      %v4354 = vpack.c.bf16 %v4352, %v4351
      %v4355 = vld [vmem:[%s10] sm:$0xf]
      %v4356 = vld [vmem:[%s10 + $0x4] sm:$0xf]
      %v4357 = vld [vmem:[%s10 + $0x8] sm:$0xf]
      %v4358 = vld [vmem:[%s10 + $0xc] sm:$0xf]
      %v4359 = vld [vmem:[%s11] sm:$0x1]
      %v4361 = vlaneseq
      %v4362 = vshrl.u32 %v4361, 7
      %v4363 = vsub.s32 0, %v4362
      %v4364 = vrot.slane %v4359, %v4363
      %v4370 = vunpack.c.l.b16 %v4355
      %v4371 = vunpack.c.l.b16 %v4356
      %v4372 = vunpack.c.l.b16 %v4357
      %v4373 = vunpack.c.l.b16 %v4358
      %v4374 = vpack.c.b16 %v4371, %v4370
      %v4375 = vpack.c.b16 %v4373, %v4372
      %v4379 = vsel %vm478, %v4353, 0
      %v4382 = vsel %vm478, %v4354, 0
      %4384 = vmatprep.subr.bf16.mxu0 0
      %4385 = vmatpush1.bf16.msra.mxu0 %v4374
      %4386 = vmatprep.subr.bf16.mxu0 0
      %4387 = vmatpush1.bf16.msra.mxu0 %v4375
      %4388 = vmatprep.subr.bf16.mxu0 0
      %4389 = vmatpush1.bf16.msra.mxu0 0
      %4390 = vmatprep.subr.bf16.mxu0 0
      %4391 = vmatpush1.bf16.msra.mxu0 0
      %4392 = vmatprep.subr.bf16.mxu0 0
      %4393 = vmatpush1.bf16.msra.mxu0 0
      %4394 = vmatprep.subr.bf16.mxu0 0
      %4395 = vmatpush1.bf16.msra.mxu0 0
      %4396 = vmatprep.subr.bf16.mxu0 0
      %4397 = vmatpush1.bf16.msra.mxu0 0
      %4398 = vmatprep.subr.bf16.mxu0 0
      %4399 = vmatpush1.bf16.msra.mxu0 0
      %4400 = vmatprep.subr.bf16.mxu0 0
      %4401 = vmatpush1.bf16.msra.mxu0 0
      %4402 = vmatprep.subr.bf16.mxu0 0
      %4403 = vmatpush1.bf16.msra.mxu0 0
      %4404 = vmatprep.subr.bf16.mxu0 0
      %4405 = vmatpush1.bf16.msra.mxu0 0
      %4406 = vmatprep.subr.bf16.mxu0 0
      %4407 = vmatpush1.bf16.msra.mxu0 0
      %4408 = vmatprep.subr.bf16.mxu0 0
      %4409 = vmatpush1.bf16.msra.mxu0 0
      %4410 = vmatprep.subr.bf16.mxu0 0
      %4411 = vmatpush1.bf16.msra.mxu0 0
      %4412 = vmatprep.subr.bf16.mxu0 0
      %4413 = vmatpush1.bf16.msra.mxu0 0
      %4414 = vmatprep.subr.bf16.mxu0 0
      %4415 = vmatpush1.bf16.msra.mxu0 0
      %4416 = vmatprep.mubr.bf16.mxu0 0
      %4417 = vmatmul.mubr.bf16.gmra.mrb[0].mxu0 %v4379
      %v4418 = vpop.f32.mrb[0].mxu0
      %v4419 = vadd.f32 %v4364, %v4418
      %v4420 = vpop.f32.mrb[0].mxu0
      %v4421 = vpop.f32.mrb[0].mxu0
      %v4422 = vadd.f32 %v4364, %v4421
      %v4423 = vpop.f32.mrb[0].mxu0
      %4424 = vmatprep.mubr.bf16.mxu0 0
      %4425 = vmatmul.mubr.bf16.gmra.mrb[0].mxu0 %v4382
      %v4426 = vpop.f32.mrb[0].mxu0
      %v4427 = vadd.f32 %v4364, %v4426
      %v4428 = vpop.f32.mrb[0].mxu0
      %v4429 = vpop.f32.mrb[0].mxu0
      %v4430 = vadd.f32 %v4364, %v4429
      %v4431 = vpop.f32.mrb[0].mxu0
      %4432 = vdwg.mxu0
      %v4433 = vmul.f32 %v4419, 1.702
      %v4434 = vmul.f32 %v4422, 1.702
      %v4435 = vmul.f32 %v4427, 1.702
      %v4436 = vmul.f32 %v4430, 1.702
      %v4437 = vxor.u32 %v4433, 2147483648
      %v4438 = vxor.u32 %v4434, 2147483648
      %v4439 = vxor.u32 %v4435, 2147483648
      %v4440 = vxor.u32 %v4436, 2147483648
      %v4441 = vmul.f32 %v4437, 1.442695
      %v4442 = vpow.pop %v4441
      %v4443 = vmul.f32 %v4438, 1.442695
      %v4444 = vpow.pop %v4443
      %v4445 = vmul.f32 %v4439, 1.442695
      %v4446 = vpow.pop %v4445
      %v4447 = vmul.f32 %v4440, 1.442695
      %v4448 = vpow.pop %v4447
      %v4449 = vadd.f32 %v4442, 1.0
      %v4450 = vadd.f32 %v4444, 1.0
      %v4451 = vadd.f32 %v4446, 1.0
      %v4452 = vadd.f32 %v4448, 1.0
      %v4453 = vrcp.pop %v4449
      %v4454 = vmul.f32 1.0, %v4453
      %v4455 = vrcp.pop %v4450
      %v4456 = vmul.f32 1.0, %v4455
      %v4457 = vrcp.pop %v4451
      %v4458 = vmul.f32 1.0, %v4457
      %v4459 = vrcp.pop %v4452
      %v4460 = vmul.f32 1.0, %v4459
      %v4461 = vmul.f32 %v4419, %v4454
      %v4462 = vmul.f32 %v4422, %v4456
      %v4463 = vmul.f32 %v4427, %v4458
      %v4464 = vmul.f32 %v4430, %v4460
      %v4465 = vpack.c.bf16 %v4462, %v4461
      %v4466 = vpack.c.bf16 %v4464, %v4463
      %v4467 = vld [vmem:[%s12] sm:$0xf]
      %v4468 = vld [vmem:[%s12 + $0x4] sm:$0xf]
      %v4469 = vld [vmem:[%s12 + $0x8] sm:$0xf]
      %v4470 = vld [vmem:[%s12 + $0xc] sm:$0xf]
      %v4471 = vld [vmem:[%s12 + $0x10] sm:$0xf]
      %v4472 = vld [vmem:[%s12 + $0x14] sm:$0xf]
      %v4473 = vld [vmem:[%s12 + $0x18] sm:$0xf]
      %v4474 = vld [vmem:[%s12 + $0x1c] sm:$0xf]
      %v4475 = vld [vmem:[%s12 + $0x20] sm:$0xf]
      %v4476 = vld [vmem:[%s12 + $0x24] sm:$0xf]
      %v4477 = vld [vmem:[%s12 + $0x28] sm:$0xf]
      %v4478 = vld [vmem:[%s12 + $0x2c] sm:$0xf]
      %v4479 = vld [vmem:[%s12 + $0x30] sm:$0xf]
      %v4480 = vld [vmem:[%s12 + $0x34] sm:$0xf]
      %v4481 = vld [vmem:[%s12 + $0x38] sm:$0xf]
      %v4482 = vld [vmem:[%s12 + $0x3c] sm:$0xf]
      %v4483 = vld [vmem:[%s13] sm:$0x1]
      %v4485 = vlaneseq
      %v4486 = vshrl.u32 %v4485, 7
      %v4487 = vsub.s32 0, %v4486
      %v4488 = vrot.slane %v4483, %v4487
      %v4506 = vunpack.c.l.b16 %v4467
      %v4507 = vunpack.c.l.b16 %v4468
      %v4508 = vunpack.c.l.b16 %v4469
      %v4509 = vunpack.c.l.b16 %v4470
      %v4510 = vunpack.c.l.b16 %v4471
      %v4511 = vunpack.c.l.b16 %v4472
      %v4512 = vunpack.c.l.b16 %v4473
      %v4513 = vunpack.c.l.b16 %v4474
      %v4514 = vunpack.c.l.b16 %v4475
      %v4515 = vunpack.c.l.b16 %v4476
      %v4516 = vunpack.c.l.b16 %v4477
      %v4517 = vunpack.c.l.b16 %v4478
      %v4518 = vunpack.c.l.b16 %v4479
      %v4519 = vunpack.c.l.b16 %v4480
      %v4520 = vunpack.c.l.b16 %v4481
      %v4521 = vunpack.c.l.b16 %v4482
      %v4522 = vpack.c.b16 %v4507, %v4506
      %v4523 = vpack.c.b16 %v4509, %v4508
      %v4524 = vpack.c.b16 %v4511, %v4510
      %v4525 = vpack.c.b16 %v4513, %v4512
      %v4526 = vpack.c.b16 %v4515, %v4514
      %v4527 = vpack.c.b16 %v4517, %v4516
      %v4528 = vpack.c.b16 %v4519, %v4518
      %v4529 = vpack.c.b16 %v4521, %v4520
      %4538 = vmatprep.subr.bf16.mxu0 0
      %4539 = vmatpush1.bf16.msra.mxu0 %v4522
      %4540 = vmatprep.subr.bf16.mxu0 0
      %4541 = vmatpush1.bf16.msra.mxu0 %v4523
      %4542 = vmatprep.subr.bf16.mxu0 0
      %4543 = vmatpush1.bf16.msra.mxu0 %v4524
      %4544 = vmatprep.subr.bf16.mxu0 0
      %4545 = vmatpush1.bf16.msra.mxu0 %v4525
      %4546 = vmatprep.subr.bf16.mxu0 0
      %4547 = vmatpush1.bf16.msra.mxu0 %v4526
      %4548 = vmatprep.subr.bf16.mxu0 0
      %4549 = vmatpush1.bf16.msra.mxu0 %v4527
      %4550 = vmatprep.subr.bf16.mxu0 0
      %4551 = vmatpush1.bf16.msra.mxu0 %v4528
      %4552 = vmatprep.subr.bf16.mxu0 0
      %4553 = vmatpush1.bf16.msra.mxu0 %v4529
      %4554 = vmatprep.subr.bf16.mxu0 0
      %4555 = vmatpush1.bf16.msra.mxu0 0
      %4556 = vmatprep.subr.bf16.mxu0 0
      %4557 = vmatpush1.bf16.msra.mxu0 0
      %4558 = vmatprep.subr.bf16.mxu0 0
      %4559 = vmatpush1.bf16.msra.mxu0 0
      %4560 = vmatprep.subr.bf16.mxu0 0
      %4561 = vmatpush1.bf16.msra.mxu0 0
      %4562 = vmatprep.subr.bf16.mxu0 0
      %4563 = vmatpush1.bf16.msra.mxu0 0
      %4564 = vmatprep.subr.bf16.mxu0 0
      %4565 = vmatpush1.bf16.msra.mxu0 0
      %4566 = vmatprep.subr.bf16.mxu0 0
      %4567 = vmatpush1.bf16.msra.mxu0 0
      %4568 = vmatprep.subr.bf16.mxu0 0
      %4569 = vmatpush1.bf16.msra.mxu0 0
      %4570 = vmatprep.mubr.bf16.mxu0 0
      %4571 = vmatmul.mubr.bf16.gmra.mrb[0].mxu0 %v4465
      %v4572 = vpop.f32.mrb[0].mxu0
      %v4573 = vadd.f32 %v4488, %v4572
      %v4574 = vpop.f32.mrb[0].mxu0
      %v4575 = vpop.f32.mrb[0].mxu0
      %v4576 = vadd.f32 %v4488, %v4575
      %v4577 = vpop.f32.mrb[0].mxu0
      %4578 = vmatprep.mubr.bf16.mxu0 0
      %4579 = vmatmul.mubr.bf16.gmra.mrb[0].mxu0 %v4466
      %v4580 = vpop.f32.mrb[0].mxu0
      %v4581 = vadd.f32 %v4488, %v4580
      %v4582 = vpop.f32.mrb[0].mxu0
      %v4583 = vpop.f32.mrb[0].mxu0
      %v4584 = vadd.f32 %v4488, %v4583
      %v4585 = vpop.f32.mrb[0].mxu0
      %4586 = vdwg.mxu0
      %v4587 = vadd.f32 %v4275, %v4573
      %v4588 = vadd.f32 %v4276, %v4576
      %v4589 = vadd.f32 %v4277, %v4581
      %v4590 = vadd.f32 %v4278, %v4584
      %4591 = vst.msk [vmem:[%s469] sm:$0xff] %vm478, %v4587
      %4592 = vst.msk [vmem:[%s469 + $0x8] sm:$0xff] %vm478, %v4588
      %4593 = vst.msk [vmem:[%s469 + $0x10] sm:$0xff] %vm478, %v4589
      %4594 = vst.msk [vmem:[%s469 + $0x18] sm:$0xff] %vm478, %v4590
      %s4595 = smul.u32 4, %s25
      %p4596 = scmp.lt.s32.totalorder %s4595, 15
      %s4597 = scalar_select %p4596, %s4595, 15
      %s4598 = smul.addr %s4597, 8
      %s4599 = scalar_lea.vmem %s14, %s4598
      // Predicated region
      $region77: #{transformer_forward.2} parent=75 // pred_check
        %p4600 = pneg %p342
      $region78: #{transformer_forward.2} parent=75 // pred_check_branch
        %4602 = sbr.rel (%p4600) target = $region80
      $region79: #{transformer_forward.2} parent=75 // pred_region
        %s4603 = smul.u32 4, %s25
      $region80: #{transformer_forward.2} parent=75 // pred_fallthru
        _
    $region76: #{transformer_forward.2} parent=5 // pred_fallthru
      _
    %p4604 = scmp.le.s32.totalorder 2, %s20
    // Predicated region
    $region81: #{transformer_forward.2} parent=5 // pred_check
      %p4605 = pneg %p4604
    $region82: #{transformer_forward.2} parent=5 // pred_check_branch
      %4607 = sbr.rel (%p4605) target = $region84
    $region83: #{transformer_forward.2} parent=5 // pred_region
      %s4608 = ssub.s32 %s20, 2
      // Predicated region
      $region85: #{transformer_forward.2} parent=83 // pred_check
        %p4609 = pneg %p348
      $region86: #{transformer_forward.2} parent=83 // pred_check_branch
        %4611 = sbr.rel (%p4609) target = $region88
      $region87: #{transformer_forward.2} parent=83 // pred_region
        %s4612 = smul.u32 4, %s26
        %p4613 = scmp.lt.s32.totalorder %s4612, 15
        %s4614 = scalar_select %p4613, %s4612, 15
        %s4615 = smul.addr %s4614, 8
        %s4616 = scalar_lea.vmem %s14, %s4615
      $region88: #{transformer_forward.2} parent=83 // pred_fallthru
        _
    $region84: #{transformer_forward.2} parent=5 // pred_fallthru
      _
  $region6: #{transformer_forward.2} parent=0 // loop_footer
    %s24 = sadd.s32 1, %s20
  $region7: #{transformer_forward.2} parent=0 // loop_footer_branch
    %19 = sbr.rel target = $region3
  $region8: #{transformer_forward.2} parent=0 // loop_exit
    _

</llo_original>
